<compile_context>
chip_gen: v5e
topology: v5e:2x2
jax: 0.10.0
libtpu: 0.0.40
codegen_flags: <defaults>
</compile_context>

<pallas_src>
import math

import jax
import jax.numpy as jnp
from jax.experimental import pallas as pl
from jax.experimental.pallas import tpu as pltpu


def _softplus(x):
    # numerically stable softplus: log(1 + exp(x))
    return jnp.logaddexp(x, 0.0)


def _vmem_limit_bytes(default=64 * 1024 * 1024, frac=0.75, cap=96 * 1024 * 1024):
    """VMEM limit with headroom, derived from the actual chip when possible."""
    vmem = default
    try:
        info_fn = getattr(pltpu, "get_tpu_info", None)
        if info_fn is not None:
            vmem = int(getattr(info_fn(), "vmem_capacity_bytes", vmem))
    except Exception:
        pass
    return int(min(vmem * frac, cap))


def _build_kernel(tn, k_chunks, compute_dtype):
    """k_chunks: static tuple of (offset, size) chunks along in_features."""
    n_params = 3

    def kernel(x_ref, wmu_hbm, wsp_hbm, epsw_hbm, bmu_ref, bsp_ref, epsb_ref,
               o_ref, w_scratch, b_scratch, pbuf, sem):
        # Grid = (j: out-tiles [parallel], i: N-tiles [arbitrary, innermost]).
        # The sampled weight/bias cached in scratch at i == 0 stay valid across
        # the whole i sweep ONLY because i is the innermost sequential axis.
        # Do NOT reorder the grid or mark the i axis "parallel".
        j = pl.program_id(0)

        @pl.when(pl.program_id(1) == 0)
        def _sample():
            # Sampled bias for this out-tile (tiny, f32).  The bias blocks are
            # (1, tn) BlockSpec inputs indexed only by j, so they are DMA'd
            # once per out-tile (no re-fetch across the i sweep).
            b_scratch[...] = (bmu_ref[...].astype(jnp.float32)
                              + _softplus(bsp_ref[...].astype(jnp.float32))
                              * epsb_ref[...].astype(jnp.float32))

            # Sampled weight for this out-tile: DMA the three parameter chunks
            # straight from HBM, sample in f32 on the VPU/EUP, and cache the
            # result once as bf16 in w_scratch for the whole i sweep.
            jt = pl.multiple_of(j * tn, tn)
            srcs = (wmu_hbm, wsp_hbm, epsw_hbm)
            for koff, kc in k_chunks:
                copies = [
                    pltpu.make_async_copy(
                        srcs[p].at[pl.ds(koff, kc), pl.ds(jt, tn)],
                        pbuf.at[p, pl.ds(0, kc), :],
                        sem.at[p])
                    for p in range(n_params)
                ]
                for cp in copies:
                    cp.start()
                for cp in copies:
                    cp.wait()
                mu = pbuf[0, pl.ds(0, kc), :].astype(jnp.float32)
                sp = pbuf[1, pl.ds(0, kc), :].astype(jnp.float32)
                ep = pbuf[2, pl.ds(0, kc), :].astype(jnp.float32)
                w = mu + _softplus(sp) * ep
                w_scratch[pl.ds(koff, kc), :] = w.astype(w_scratch.dtype)

        # Steady state: bf16 MXU matmul against the cached weight + bias add.
        xv = x_ref[...].astype(compute_dtype)
        y = jnp.dot(xv, w_scratch[...], preferred_element_type=jnp.float32)
        o_ref[...] = (y + b_scratch[...]).astype(o_ref.dtype)

    return kernel


def stochastic_linear(x, weight_mu, weight_spsigma, eps_w,
                      bias_mu, bias_spsigma, eps_b, *,
                      tm=256, tn=256, tk=512,
                      compute_dtype=jnp.bfloat16,
                      param_dtype=None, out_dtype=None):
    """y = x @ (wmu + softplus(wsp)*eps_W).T + (bmu + softplus(bsp)*eps_b)."""
    orig_shape = x.shape
    in_f = int(orig_shape[-1])
    out_f = int(weight_mu.shape[0])
    out_dtype = x.dtype if out_dtype is None else out_dtype
    param_dtype = weight_mu.dtype if param_dtype is None else param_dtype

    vmem_limit = _vmem_limit_bytes()

    # Flatten any leading dims: (N, *, in_f) -> (N*, in_f).
    x2d = x.reshape(-1, in_f)
    N = int(x2d.shape[0])

    # ---- tile sizes --------------------------------------------------------
    tn = min(tn, out_f)
    if tn > 128:
        tn = (tn // 128) * 128        # lane alignment when tiling out_features
        # Keep >= 2 out-tiles so the "parallel" axis can be megacore-sharded.
        if out_f >= 256 and -(-out_f // tn) < 2:
            tn = max(128, (((out_f + 1) // 2 + 127) // 128) * 128)
    num_j = -(-out_f // tn)

    # Pre-cast x to bf16 only if it is re-read several times across out-tiles;
    # otherwise the wrapper cast is pure extra HBM traffic.
    precast_x = num_j >= 3
    if precast_x:
        x2d = x2d.astype(compute_dtype)
    x_item = jnp.dtype(x2d.dtype).itemsize

    tm = min(tm, N)
    if tm < N:
        # Bound the x / output double buffers by ~half the VMEM budget and
        # keep tm a multiple of 8 (sublane alignment).
        row_bytes = 2 * in_f * x_item + 2 * tn * 4
        max_tm = max(8, (vmem_limit // 2) // row_bytes)
        tm = max(8, (min(tm, max_tm) // 8) * 8)
    num_i = -(-N // tm)

    # Static chunking of the contraction axis for the manual parameter DMA.
    tk = max(8, min(tk, in_f))
    k_chunks = []
    koff = 0
    while koff < in_f:
        kc = min(tk, in_f - koff)
        k_chunks.append((koff, kc))
        koff += kc

    # ---- parameter layout --------------------------------------------------
    # Transposed (in_f, out_f) layout: contraction on sublanes, out_features on
    # lanes -> natural MXU feed, lane-dense output stores.  Pad out_f up to a
    # multiple of tn so the manual per-out-tile DMA never goes out of bounds;
    # padded columns sample to exactly 0 (mu=0, eps=0) so no NaN can appear,
    # and Pallas masks the corresponding output stores.
    out_f_p = num_j * tn
    pad = out_f_p - out_f
    wmu_t = weight_mu.astype(param_dtype).T
    wsp_t = weight_spsigma.astype(param_dtype).T
    epsw_t = eps_w.astype(param_dtype).T
    bmu2d = bias_mu.reshape(1, out_f).astype(param_dtype)
    bsp2d = bias_spsigma.reshape(1, out_f).astype(param_dtype)
    epsb2d = eps_b.reshape(1, out_f).astype(param_dtype)
    if pad:
        wmu_t = jnp.pad(wmu_t, ((0, 0), (0, pad)))
        wsp_t = jnp.pad(wsp_t, ((0, 0), (0, pad)))
        epsw_t = jnp.pad(epsw_t, ((0, 0), (0, pad)))
        bmu2d = jnp.pad(bmu2d, ((0, 0), (0, pad)))
        bsp2d = jnp.pad(bsp2d, ((0, 0), (0, pad)))
        epsb2d = jnp.pad(epsb2d, ((0, 0), (0, pad)))

    # ---- grid & specs ------------------------------------------------------
    grid = (num_j, num_i)   # j: out-tiles (parallel, outer), i: N-tiles (inner)

    x_spec = pl.BlockSpec((tm, in_f), lambda j, i: (i, 0))
    hbm_spec = pl.BlockSpec(memory_space=pl.ANY)   # raw HBM ref, manual DMA
    b_spec = pl.BlockSpec((1, tn), lambda j, i: (0, j))
    o_spec = pl.BlockSpec((tm, tn), lambda j, i: (i, j))

    kernel = _build_kernel(tn, tuple(k_chunks), compute_dtype)

    y2d = pl.pallas_call(
        kernel,
        out_shape=jax.ShapeDtypeStruct((N, out_f), out_dtype),
        grid_spec=pltpu.PrefetchScalarGridSpec(
            num_scalar_prefetch=0,
            grid=grid,
            in_specs=[
                x_spec,     # x tile                       (tm, in_f)
                hbm_spec,   # weight_mu.T      (HBM)       (in_f, out_f_p)
                hbm_spec,   # weight_spsigma.T (HBM)       (in_f, out_f_p)
                hbm_spec,   # eps_W.T          (HBM)       (in_f, out_f_p)
                b_spec,     # bias_mu                      (1, tn)
                b_spec,     # bias_spsigma                 (1, tn)
                b_spec,     # eps_b                        (1, tn)
            ],
            out_specs=o_spec,
            scratch_shapes=[
                pltpu.VMEM((in_f, tn), compute_dtype),   # cached sampled weight
                pltpu.VMEM((1, tn), jnp.float32),        # cached sampled bias
                pltpu.VMEM((3, tk, tn), param_dtype),    # parameter DMA chunk buf
                pltpu.SemaphoreType.DMA((3,)),
            ],
        ),
        compiler_params=pltpu.CompilerParams(
            # j (out-tile) axis is independent -> megacore can shard it (v7x);
            # the i (N) axis MUST stay sequential/innermost so the cached
            # sampled weight in scratch remains valid across it.
            dimension_semantics=("parallel", "arbitrary"),
            vmem_limit_bytes=vmem_limit,
        ),
    )(x2d, wmu_t, wsp_t, epsw_t, bmu2d, bsp2d, epsb2d)

    return y2d.reshape(orig_shape[:-1] + (out_f,))


if __name__ == "__main__":
    # Small shapes exercising: leading-dim flattening, >=2 out-tiles (megacore
    # parallel axis), out_f padding (384 % 256 != 0), multi-chunk parameter
    # DMA (tk=128 < in_f), and weight-cache reuse across two N tiles.
    batch, seq = 4, 128
    in_features, out_features = 256, 384
    sigma_init = 1.0

    key = jax.random.PRNGKey(0)
    k_x, k_wmu, k_bmu, k_epsw, k_epsb = jax.random.split(key, 5)

    # Deterministic parameter init mirroring reset_parameters().
    stdv = 1.0 / math.sqrt(in_features)
    weight_mu = jax.random.uniform(
        k_wmu, (out_features, in_features), jnp.float32, minval=-stdv, maxval=stdv)
    bias_mu = jax.random.uniform(
        k_bmu, (out_features,), jnp.float32, minval=-stdv, maxval=stdv)
    sp_fill = math.log(math.expm1(sigma_init))  # log(exp(sigma_init) - 1)
    weight_spsigma = jnp.full((out_features, in_features), sp_fill, jnp.float32)
    bias_spsigma = jnp.full((out_features,), sp_fill, jnp.float32)

    # Reparameterization noise drawn host-side (deterministic stand-in for the
    # module's torch.normal draws).
    # TODO(synk): could instead generate eps in-kernel with pltpu.prng_seed /
    # pltpu.stateful_normal to remove one weight-sized HBM read, at the cost
    # of a different RNG stream than torch.normal.
    x = jax.random.normal(k_x, (batch, seq, in_features), jnp.float32)
    eps_w = jax.random.normal(k_epsw, (out_features, in_features), jnp.float32)
    eps_b = jax.random.normal(k_epsb, (out_features,), jnp.float32)

    y = stochastic_linear(x, weight_mu, weight_spsigma, eps_w,
                          bias_mu, bias_spsigma, eps_b,
                          tm=256, tn=256, tk=128)
    y = jax.block_until_ready(y)

    # Pure-JAX reference with the same bf16-MXU / f32-accumulate semantics.
    w_ref = weight_mu + jax.nn.softplus(weight_spsigma) * eps_w
    b_ref = bias_mu + jax.nn.softplus(bias_spsigma) * eps_b
    x2 = x.reshape(-1, in_features)
    y_ref = (jnp.dot(x2.astype(jnp.bfloat16), w_ref.T.astype(jnp.bfloat16),
                     preferred_element_type=jnp.float32) + b_ref)
    y_ref = y_ref.reshape(batch, seq, out_features)

    assert y.shape == (batch, seq, out_features)
    y_f32 = y.astype(jnp.float32)
    max_err = float(jnp.max(jnp.abs(y_f32 - y_ref)))
    assert jnp.allclose(y_f32, y_ref, atol=2e-2, rtol=2e-2), max_err

    print("KERNEL_OK")
</pallas_src>

<mosaic_0001>
module attributes {stable_mosaic.version = 11 : i64} {
  func.func @kernel(%arg0: i32, %arg1: i32, %arg2: memref<256x256xf32, #tpu.memory_space<vmem>>, %arg3: memref<256x512xf32, #tpu.memory_space<any>>, %arg4: memref<256x512xf32, #tpu.memory_space<any>>, %arg5: memref<256x512xf32, #tpu.memory_space<any>>, %arg6: memref<1x256xf32, #tpu.memory_space<vmem>>, %arg7: memref<1x256xf32, #tpu.memory_space<vmem>>, %arg8: memref<1x256xf32, #tpu.memory_space<vmem>>, %arg9: memref<256x256xf32, #tpu.memory_space<vmem>>, %arg10: memref<256x256xbf16, #tpu.memory_space<vmem>>, %arg11: memref<1x256xf32, #tpu.memory_space<vmem>>, %arg12: memref<3x128x256xf32, #tpu.memory_space<vmem>>, %arg13: memref<3x!tpu.dma_semaphore, #tpu.memory_space<semaphore_mem>>) attributes {dimension_semantics = [#tpu.dimension_semantics<parallel>, #tpu.dimension_semantics<arbitrary>], iteration_bounds = array<i64: 2, 2>, scalar_prefetch = 0 : i64, scratch_operands = 4 : i64, tpu.core_type = #tpu.core_type<tc>, window_params = [{transform_indices = @transform_0, window_bounds = array<i64: 256, 256>}, {}, {}, {}, {transform_indices = @transform_4, window_bounds = array<i64: 1, 256>}, {transform_indices = @transform_5, window_bounds = array<i64: 1, 256>}, {transform_indices = @transform_6, window_bounds = array<i64: 1, 256>}, {transform_indices = @transform_7, window_bounds = array<i64: 256, 256>}]} {
    %c0_i32 = arith.constant 0 : i32
    %0 = arith.cmpi eq, %arg1, %c0_i32 : i32
    %1 = arith.extui %0 : i1 to i32
    %c0_i32_0 = arith.constant 0 : i32
    %2 = arith.cmpi ne, %1, %c0_i32_0 : i32
    scf.if %2 {
      %c0_8 = arith.constant 0 : index
      %c0_9 = arith.constant 0 : index
      %11 = vector.load %arg6[%c0_8, %c0_9] : memref<1x256xf32, #tpu.memory_space<vmem>>, vector<1x256xf32>
      %c0_10 = arith.constant 0 : index
      %c0_11 = arith.constant 0 : index
      %12 = vector.load %arg7[%c0_10, %c0_11] : memref<1x256xf32, #tpu.memory_space<vmem>>, vector<1x256xf32>
      %cst_12 = arith.constant 0.000000e+00 : f32
      %13 = vector.broadcast %cst_12 : f32 to vector<1x256xf32>
      %14 = arith.maximumf %12, %13 : vector<1x256xf32>
      %15 = vector.broadcast %cst_12 : f32 to vector<1x256xf32>
      %16 = arith.subf %12, %15 : vector<1x256xf32>
      %17 = arith.cmpf one, %16, %16 : vector<1x256xf32>
      %18 = vector.broadcast %cst_12 : f32 to vector<1x256xf32>
      %19 = arith.addf %12, %18 : vector<1x256xf32>
      %20 = math.absf %16 : vector<1x256xf32>
      %cst_13 = arith.constant 0.000000e+00 : f32
      %21 = vector.broadcast %cst_13 : f32 to vector<1x256xf32>
      %22 = arith.subf %21, %20 : vector<1x256xf32>
      %23 = math.exp %22 : vector<1x256xf32>
      %24 = math.log1p %23 : vector<1x256xf32>
      %25 = arith.addf %14, %24 : vector<1x256xf32>
      %26 = arith.select %17, %19, %25 : vector<1x256xi1>, vector<1x256xf32>
      %c0_14 = arith.constant 0 : index
      %c0_15 = arith.constant 0 : index
      %27 = vector.load %arg8[%c0_14, %c0_15] : memref<1x256xf32, #tpu.memory_space<vmem>>, vector<1x256xf32>
      %28 = arith.mulf %26, %27 : vector<1x256xf32>
      %29 = arith.addf %11, %28 : vector<1x256xf32>
      %c0_16 = arith.constant 0 : index
      %c0_17 = arith.constant 0 : index
      %30 = vector.load %arg11[%c0_16, %c0_17] : memref<1x256xf32, #tpu.memory_space<vmem>>, vector<1x256xf32>
      tpu.vector_store %arg11[%c0_16, %c0_17], %29 {strides = array<i32>} : memref<1x256xf32, #tpu.memory_space<vmem>>, vector<1x256xf32>,
      %c256_i32 = arith.constant 256 : i32
      %31 = arith.muli %arg0, %c256_i32 : i32
      %32 = tpu.assume_multiple %31, 256 : i32
      %c0_i32_18 = arith.constant 0 : i32
      %c0_i32_19 = arith.constant 0 : i32
      %c0_i32_20 = arith.constant 0 : i32
      %33 = tpu.memref_slice %arg3[%c0_i32_20, %32] : memref<256x512xf32, #tpu.memory_space<any>> -> memref<128x256xf32, #tpu.memory_space<any>>
      %c0_i32_21 = arith.constant 0 : i32
      %c0_i32_22 = arith.constant 0 : i32
      %34 = tpu.memref_slice %arg12[%c0_i32_18, %c0_i32_21, %c0_i32_22] : memref<3x128x256xf32, #tpu.memory_space<vmem>> -> memref<1x128x256xf32, #tpu.memory_space<vmem>>
      %35 = tpu.memref_squeeze %34 : memref<1x128x256xf32, #tpu.memory_space<vmem>> -> memref<128x256xf32, #tpu.memory_space<vmem>>
      %36 = tpu.memref_slice %arg13[%c0_i32_19] : memref<3x!tpu.dma_semaphore, #tpu.memory_space<semaphore_mem>> -> memref<1x!tpu.dma_semaphore, #tpu.memory_space<semaphore_mem>>
      %37 = tpu.memref_squeeze %36 : memref<1x!tpu.dma_semaphore, #tpu.memory_space<semaphore_mem>> -> memref<!tpu.dma_semaphore, #tpu.memory_space<semaphore_mem>>
      tpu.enqueue_dma source(%33 : memref<128x256xf32, #tpu.memory_space<any>>) target(%35 : memref<128x256xf32, #tpu.memory_space<vmem>>) target_semaphore(%37 : memref<!tpu.dma_semaphore, #tpu.memory_space<semaphore_mem>>)
      %c1_i32 = arith.constant 1 : i32
      %c1_i32_23 = arith.constant 1 : i32
      %c0_i32_24 = arith.constant 0 : i32
      %38 = tpu.memref_slice %arg4[%c0_i32_24, %32] : memref<256x512xf32, #tpu.memory_space<any>> -> memref<128x256xf32, #tpu.memory_space<any>>
      %c0_i32_25 = arith.constant 0 : i32
      %c0_i32_26 = arith.constant 0 : i32
      %39 = tpu.memref_slice %arg12[%c1_i32, %c0_i32_25, %c0_i32_26] : memref<3x128x256xf32, #tpu.memory_space<vmem>> -> memref<1x128x256xf32, #tpu.memory_space<vmem>>
      %40 = tpu.memref_squeeze %39 : memref<1x128x256xf32, #tpu.memory_space<vmem>> -> memref<128x256xf32, #tpu.memory_space<vmem>>
      %41 = tpu.memref_slice %arg13[%c1_i32_23] : memref<3x!tpu.dma_semaphore, #tpu.memory_space<semaphore_mem>> -> memref<1x!tpu.dma_semaphore, #tpu.memory_space<semaphore_mem>>
      %42 = tpu.memref_squeeze %41 : memref<1x!tpu.dma_semaphore, #tpu.memory_space<semaphore_mem>> -> memref<!tpu.dma_semaphore, #tpu.memory_space<semaphore_mem>>
      tpu.enqueue_dma source(%38 : memref<128x256xf32, #tpu.memory_space<any>>) target(%40 : memref<128x256xf32, #tpu.memory_space<vmem>>) target_semaphore(%42 : memref<!tpu.dma_semaphore, #tpu.memory_space<semaphore_mem>>)
      %c2_i32 = arith.constant 2 : i32
      %c2_i32_27 = arith.constant 2 : i32
      %c0_i32_28 = arith.constant 0 : i32
      %43 = tpu.memref_slice %arg5[%c0_i32_28, %32] : memref<256x512xf32, #tpu.memory_space<any>> -> memref<128x256xf32, #tpu.memory_space<any>>
      %c0_i32_29 = arith.constant 0 : i32
      %c0_i32_30 = arith.constant 0 : i32
      %44 = tpu.memref_slice %arg12[%c2_i32, %c0_i32_29, %c0_i32_30] : memref<3x128x256xf32, #tpu.memory_space<vmem>> -> memref<1x128x256xf32, #tpu.memory_space<vmem>>
      %45 = tpu.memref_squeeze %44 : memref<1x128x256xf32, #tpu.memory_space<vmem>> -> memref<128x256xf32, #tpu.memory_space<vmem>>
      %46 = tpu.memref_slice %arg13[%c2_i32_27] : memref<3x!tpu.dma_semaphore, #tpu.memory_space<semaphore_mem>> -> memref<1x!tpu.dma_semaphore, #tpu.memory_space<semaphore_mem>>
      %47 = tpu.memref_squeeze %46 : memref<1x!tpu.dma_semaphore, #tpu.memory_space<semaphore_mem>> -> memref<!tpu.dma_semaphore, #tpu.memory_space<semaphore_mem>>
      tpu.enqueue_dma source(%43 : memref<128x256xf32, #tpu.memory_space<any>>) target(%45 : memref<128x256xf32, #tpu.memory_space<vmem>>) target_semaphore(%47 : memref<!tpu.dma_semaphore, #tpu.memory_space<semaphore_mem>>)
      %c0_i32_31 = arith.constant 0 : i32
      %c0_i32_32 = arith.constant 0 : i32
      %c0_i32_33 = arith.constant 0 : i32
      %48 = tpu.memref_slice %arg3[%c0_i32_33, %32] : memref<256x512xf32, #tpu.memory_space<any>> -> memref<128x256xf32, #tpu.memory_space<any>>
      %c0_i32_34 = arith.constant 0 : i32
      %c0_i32_35 = arith.constant 0 : i32
      %49 = tpu.memref_slice %arg12[%c0_i32_31, %c0_i32_34, %c0_i32_35] : memref<3x128x256xf32, #tpu.memory_space<vmem>> -> memref<1x128x256xf32, #tpu.memory_space<vmem>>
      %50 = tpu.memref_squeeze %49 : memref<1x128x256xf32, #tpu.memory_space<vmem>> -> memref<128x256xf32, #tpu.memory_space<vmem>>
      %51 = tpu.memref_slice %arg13[%c0_i32_32] : memref<3x!tpu.dma_semaphore, #tpu.memory_space<semaphore_mem>> -> memref<1x!tpu.dma_semaphore, #tpu.memory_space<semaphore_mem>>
      %52 = tpu.memref_squeeze %51 : memref<1x!tpu.dma_semaphore, #tpu.memory_space<semaphore_mem>> -> memref<!tpu.dma_semaphore, #tpu.memory_space<semaphore_mem>>
      tpu.wait_dma2 semaphore(%52 : memref<!tpu.dma_semaphore, #tpu.memory_space<semaphore_mem>>) src(%48 : memref<128x256xf32, #tpu.memory_space<any>>) dst(%50 : memref<128x256xf32, #tpu.memory_space<vmem>>)
      %c1_i32_36 = arith.constant 1 : i32
      %c1_i32_37 = arith.constant 1 : i32
      %c0_i32_38 = arith.constant 0 : i32
      %53 = tpu.memref_slice %arg4[%c0_i32_38, %32] : memref<256x512xf32, #tpu.memory_space<any>> -> memref<128x256xf32, #tpu.memory_space<any>>
      %c0_i32_39 = arith.constant 0 : i32
      %c0_i32_40 = arith.constant 0 : i32
      %54 = tpu.memref_slice %arg12[%c1_i32_36, %c0_i32_39, %c0_i32_40] : memref<3x128x256xf32, #tpu.memory_space<vmem>> -> memref<1x128x256xf32, #tpu.memory_space<vmem>>
      %55 = tpu.memref_squeeze %54 : memref<1x128x256xf32, #tpu.memory_space<vmem>> -> memref<128x256xf32, #tpu.memory_space<vmem>>
      %56 = tpu.memref_slice %arg13[%c1_i32_37] : memref<3x!tpu.dma_semaphore, #tpu.memory_space<semaphore_mem>> -> memref<1x!tpu.dma_semaphore, #tpu.memory_space<semaphore_mem>>
      %57 = tpu.memref_squeeze %56 : memref<1x!tpu.dma_semaphore, #tpu.memory_space<semaphore_mem>> -> memref<!tpu.dma_semaphore, #tpu.memory_space<semaphore_mem>>
      tpu.wait_dma2 semaphore(%57 : memref<!tpu.dma_semaphore, #tpu.memory_space<semaphore_mem>>) src(%53 : memref<128x256xf32, #tpu.memory_space<any>>) dst(%55 : memref<128x256xf32, #tpu.memory_space<vmem>>)
      %c2_i32_41 = arith.constant 2 : i32
      %c2_i32_42 = arith.constant 2 : i32
      %c0_i32_43 = arith.constant 0 : i32
      %58 = tpu.memref_slice %arg5[%c0_i32_43, %32] : memref<256x512xf32, #tpu.memory_space<any>> -> memref<128x256xf32, #tpu.memory_space<any>>
      %c0_i32_44 = arith.constant 0 : i32
      %c0_i32_45 = arith.constant 0 : i32
      %59 = tpu.memref_slice %arg12[%c2_i32_41, %c0_i32_44, %c0_i32_45] : memref<3x128x256xf32, #tpu.memory_space<vmem>> -> memref<1x128x256xf32, #tpu.memory_space<vmem>>
      %60 = tpu.memref_squeeze %59 : memref<1x128x256xf32, #tpu.memory_space<vmem>> -> memref<128x256xf32, #tpu.memory_space<vmem>>
      %61 = tpu.memref_slice %arg13[%c2_i32_42] : memref<3x!tpu.dma_semaphore, #tpu.memory_space<semaphore_mem>> -> memref<1x!tpu.dma_semaphore, #tpu.memory_space<semaphore_mem>>
      %62 = tpu.memref_squeeze %61 : memref<1x!tpu.dma_semaphore, #tpu.memory_space<semaphore_mem>> -> memref<!tpu.dma_semaphore, #tpu.memory_space<semaphore_mem>>
      tpu.wait_dma2 semaphore(%62 : memref<!tpu.dma_semaphore, #tpu.memory_space<semaphore_mem>>) src(%58 : memref<128x256xf32, #tpu.memory_space<any>>) dst(%60 : memref<128x256xf32, #tpu.memory_space<vmem>>)
      %c0_46 = arith.constant 0 : index
      %c0_47 = arith.constant 0 : index
      %c0_48 = arith.constant 0 : index
      %63 = vector.load %arg12[%c0_46, %c0_47, %c0_48] : memref<3x128x256xf32, #tpu.memory_space<vmem>>, vector<1x128x256xf32>
      %64 = vector.shape_cast %63 : vector<1x128x256xf32> to vector<128x256xf32>
      %c1 = arith.constant 1 : index
      %c0_49 = arith.constant 0 : index
      %c0_50 = arith.constant 0 : index
      %65 = vector.load %arg12[%c1, %c0_49, %c0_50] : memref<3x128x256xf32, #tpu.memory_space<vmem>>, vector<1x128x256xf32>
      %66 = vector.shape_cast %65 : vector<1x128x256xf32> to vector<128x256xf32>
      %c2 = arith.constant 2 : index
      %c0_51 = arith.constant 0 : index
      %c0_52 = arith.constant 0 : index
      %67 = vector.load %arg12[%c2, %c0_51, %c0_52] : memref<3x128x256xf32, #tpu.memory_space<vmem>>, vector<1x128x256xf32>
      %68 = vector.shape_cast %67 : vector<1x128x256xf32> to vector<128x256xf32>
      %cst_53 = arith.constant 0.000000e+00 : f32
      %69 = vector.broadcast %cst_53 : f32 to vector<128x256xf32>
      %70 = arith.maximumf %66, %69 : vector<128x256xf32>
      %71 = vector.broadcast %cst_53 : f32 to vector<128x256xf32>
      %72 = arith.subf %66, %71 : vector<128x256xf32>
      %73 = arith.cmpf one, %72, %72 : vector<128x256xf32>
      %74 = vector.broadcast %cst_53 : f32 to vector<128x256xf32>
      %75 = arith.addf %66, %74 : vector<128x256xf32>
      %76 = math.absf %72 : vector<128x256xf32>
      %cst_54 = arith.constant 0.000000e+00 : f32
      %77 = vector.broadcast %cst_54 : f32 to vector<128x256xf32>
      %78 = arith.subf %77, %76 : vector<128x256xf32>
      %79 = math.exp %78 : vector<128x256xf32>
      %80 = math.log1p %79 : vector<128x256xf32>
      %81 = arith.addf %70, %80 : vector<128x256xf32>
      %82 = arith.select %73, %75, %81 : vector<128x256xi1>, vector<128x256xf32>
      %83 = arith.mulf %82, %68 : vector<128x256xf32>
      %84 = arith.addf %64, %83 : vector<128x256xf32>
      %85 = arith.truncf %84 : vector<128x256xf32> to vector<128x256xbf16>
      %c0_55 = arith.constant 0 : index
      %c0_56 = arith.constant 0 : index
      %86 = vector.load %arg10[%c0_55, %c0_56] : memref<256x256xbf16, #tpu.memory_space<vmem>>, vector<128x256xbf16>
      tpu.vector_store %arg10[%c0_55, %c0_56], %85 {strides = array<i32>} : memref<256x256xbf16, #tpu.memory_space<vmem>>, vector<128x256xbf16>,
      %c0_i32_57 = arith.constant 0 : i32
      %c0_i32_58 = arith.constant 0 : i32
      %c128_i32 = arith.constant 128 : i32
      %87 = tpu.memref_slice %arg3[%c128_i32, %32] : memref<256x512xf32, #tpu.memory_space<any>> -> memref<128x256xf32, #tpu.memory_space<any>>
      %c0_i32_59 = arith.constant 0 : i32
      %c0_i32_60 = arith.constant 0 : i32
      %88 = tpu.memref_slice %arg12[%c0_i32_57, %c0_i32_59, %c0_i32_60] : memref<3x128x256xf32, #tpu.memory_space<vmem>> -> memref<1x128x256xf32, #tpu.memory_space<vmem>>
      %89 = tpu.memref_squeeze %88 : memref<1x128x256xf32, #tpu.memory_space<vmem>> -> memref<128x256xf32, #tpu.memory_space<vmem>>
      %90 = tpu.memref_slice %arg13[%c0_i32_58] : memref<3x!tpu.dma_semaphore, #tpu.memory_space<semaphore_mem>> -> memref<1x!tpu.dma_semaphore, #tpu.memory_space<semaphore_mem>>
      %91 = tpu.memref_squeeze %90 : memref<1x!tpu.dma_semaphore, #tpu.memory_space<semaphore_mem>> -> memref<!tpu.dma_semaphore, #tpu.memory_space<semaphore_mem>>
      tpu.enqueue_dma source(%87 : memref<128x256xf32, #tpu.memory_space<any>>) target(%89 : memref<128x256xf32, #tpu.memory_space<vmem>>) target_semaphore(%91 : memref<!tpu.dma_semaphore, #tpu.memory_space<semaphore_mem>>)
      %c1_i32_61 = arith.constant 1 : i32
      %c1_i32_62 = arith.constant 1 : i32
      %c128_i32_63 = arith.constant 128 : i32
      %92 = tpu.memref_slice %arg4[%c128_i32_63, %32] : memref<256x512xf32, #tpu.memory_space<any>> -> memref<128x256xf32, #tpu.memory_space<any>>
      %c0_i32_64 = arith.constant 0 : i32
      %c0_i32_65 = arith.constant 0 : i32
      %93 = tpu.memref_slice %arg12[%c1_i32_61, %c0_i32_64, %c0_i32_65] : memref<3x128x256xf32, #tpu.memory_space<vmem>> -> memref<1x128x256xf32, #tpu.memory_space<vmem>>
      %94 = tpu.memref_squeeze %93 : memref<1x128x256xf32, #tpu.memory_space<vmem>> -> memref<128x256xf32, #tpu.memory_space<vmem>>
      %95 = tpu.memref_slice %arg13[%c1_i32_62] : memref<3x!tpu.dma_semaphore, #tpu.memory_space<semaphore_mem>> -> memref<1x!tpu.dma_semaphore, #tpu.memory_space<semaphore_mem>>
      %96 = tpu.memref_squeeze %95 : memref<1x!tpu.dma_semaphore, #tpu.memory_space<semaphore_mem>> -> memref<!tpu.dma_semaphore, #tpu.memory_space<semaphore_mem>>
      tpu.enqueue_dma source(%92 : memref<128x256xf32, #tpu.memory_space<any>>) target(%94 : memref<128x256xf32, #tpu.memory_space<vmem>>) target_semaphore(%96 : memref<!tpu.dma_semaphore, #tpu.memory_space<semaphore_mem>>)
      %c2_i32_66 = arith.constant 2 : i32
      %c2_i32_67 = arith.constant 2 : i32
      %c128_i32_68 = arith.constant 128 : i32
      %97 = tpu.memref_slice %arg5[%c128_i32_68, %32] : memref<256x512xf32, #tpu.memory_space<any>> -> memref<128x256xf32, #tpu.memory_space<any>>
      %c0_i32_69 = arith.constant 0 : i32
      %c0_i32_70 = arith.constant 0 : i32
      %98 = tpu.memref_slice %arg12[%c2_i32_66, %c0_i32_69, %c0_i32_70] : memref<3x128x256xf32, #tpu.memory_space<vmem>> -> memref<1x128x256xf32, #tpu.memory_space<vmem>>
      %99 = tpu.memref_squeeze %98 : memref<1x128x256xf32, #tpu.memory_space<vmem>> -> memref<128x256xf32, #tpu.memory_space<vmem>>
      %100 = tpu.memref_slice %arg13[%c2_i32_67] : memref<3x!tpu.dma_semaphore, #tpu.memory_space<semaphore_mem>> -> memref<1x!tpu.dma_semaphore, #tpu.memory_space<semaphore_mem>>
      %101 = tpu.memref_squeeze %100 : memref<1x!tpu.dma_semaphore, #tpu.memory_space<semaphore_mem>> -> memref<!tpu.dma_semaphore, #tpu.memory_space<semaphore_mem>>
      tpu.enqueue_dma source(%97 : memref<128x256xf32, #tpu.memory_space<any>>) target(%99 : memref<128x256xf32, #tpu.memory_space<vmem>>) target_semaphore(%101 : memref<!tpu.dma_semaphore, #tpu.memory_space<semaphore_mem>>)
      %c0_i32_71 = arith.constant 0 : i32
      %c0_i32_72 = arith.constant 0 : i32
      %c128_i32_73 = arith.constant 128 : i32
      %102 = tpu.memref_slice %arg3[%c128_i32_73, %32] : memref<256x512xf32, #tpu.memory_space<any>> -> memref<128x256xf32, #tpu.memory_space<any>>
      %c0_i32_74 = arith.constant 0 : i32
      %c0_i32_75 = arith.constant 0 : i32
      %103 = tpu.memref_slice %arg12[%c0_i32_71, %c0_i32_74, %c0_i32_75] : memref<3x128x256xf32, #tpu.memory_space<vmem>> -> memref<1x128x256xf32, #tpu.memory_space<vmem>>
      %104 = tpu.memref_squeeze %103 : memref<1x128x256xf32, #tpu.memory_space<vmem>> -> memref<128x256xf32, #tpu.memory_space<vmem>>
      %105 = tpu.memref_slice %arg13[%c0_i32_72] : memref<3x!tpu.dma_semaphore, #tpu.memory_space<semaphore_mem>> -> memref<1x!tpu.dma_semaphore, #tpu.memory_space<semaphore_mem>>
      %106 = tpu.memref_squeeze %105 : memref<1x!tpu.dma_semaphore, #tpu.memory_space<semaphore_mem>> -> memref<!tpu.dma_semaphore, #tpu.memory_space<semaphore_mem>>
      tpu.wait_dma2 semaphore(%106 : memref<!tpu.dma_semaphore, #tpu.memory_space<semaphore_mem>>) src(%102 : memref<128x256xf32, #tpu.memory_space<any>>) dst(%104 : memref<128x256xf32, #tpu.memory_space<vmem>>)
      %c1_i32_76 = arith.constant 1 : i32
      %c1_i32_77 = arith.constant 1 : i32
      %c128_i32_78 = arith.constant 128 : i32
      %107 = tpu.memref_slice %arg4[%c128_i32_78, %32] : memref<256x512xf32, #tpu.memory_space<any>> -> memref<128x256xf32, #tpu.memory_space<any>>
      %c0_i32_79 = arith.constant 0 : i32
      %c0_i32_80 = arith.constant 0 : i32
      %108 = tpu.memref_slice %arg12[%c1_i32_76, %c0_i32_79, %c0_i32_80] : memref<3x128x256xf32, #tpu.memory_space<vmem>> -> memref<1x128x256xf32, #tpu.memory_space<vmem>>
      %109 = tpu.memref_squeeze %108 : memref<1x128x256xf32, #tpu.memory_space<vmem>> -> memref<128x256xf32, #tpu.memory_space<vmem>>
      %110 = tpu.memref_slice %arg13[%c1_i32_77] : memref<3x!tpu.dma_semaphore, #tpu.memory_space<semaphore_mem>> -> memref<1x!tpu.dma_semaphore, #tpu.memory_space<semaphore_mem>>
      %111 = tpu.memref_squeeze %110 : memref<1x!tpu.dma_semaphore, #tpu.memory_space<semaphore_mem>> -> memref<!tpu.dma_semaphore, #tpu.memory_space<semaphore_mem>>
      tpu.wait_dma2 semaphore(%111 : memref<!tpu.dma_semaphore, #tpu.memory_space<semaphore_mem>>) src(%107 : memref<128x256xf32, #tpu.memory_space<any>>) dst(%109 : memref<128x256xf32, #tpu.memory_space<vmem>>)
      %c2_i32_81 = arith.constant 2 : i32
      %c2_i32_82 = arith.constant 2 : i32
      %c128_i32_83 = arith.constant 128 : i32
      %112 = tpu.memref_slice %arg5[%c128_i32_83, %32] : memref<256x512xf32, #tpu.memory_space<any>> -> memref<128x256xf32, #tpu.memory_space<any>>
      %c0_i32_84 = arith.constant 0 : i32
      %c0_i32_85 = arith.constant 0 : i32
      %113 = tpu.memref_slice %arg12[%c2_i32_81, %c0_i32_84, %c0_i32_85] : memref<3x128x256xf32, #tpu.memory_space<vmem>> -> memref<1x128x256xf32, #tpu.memory_space<vmem>>
      %114 = tpu.memref_squeeze %113 : memref<1x128x256xf32, #tpu.memory_space<vmem>> -> memref<128x256xf32, #tpu.memory_space<vmem>>
      %115 = tpu.memref_slice %arg13[%c2_i32_82] : memref<3x!tpu.dma_semaphore, #tpu.memory_space<semaphore_mem>> -> memref<1x!tpu.dma_semaphore, #tpu.memory_space<semaphore_mem>>
      %116 = tpu.memref_squeeze %115 : memref<1x!tpu.dma_semaphore, #tpu.memory_space<semaphore_mem>> -> memref<!tpu.dma_semaphore, #tpu.memory_space<semaphore_mem>>
      tpu.wait_dma2 semaphore(%116 : memref<!tpu.dma_semaphore, #tpu.memory_space<semaphore_mem>>) src(%112 : memref<128x256xf32, #tpu.memory_space<any>>) dst(%114 : memref<128x256xf32, #tpu.memory_space<vmem>>)
      %c0_86 = arith.constant 0 : index
      %c0_87 = arith.constant 0 : index
      %c0_88 = arith.constant 0 : index
      %117 = vector.load %arg12[%c0_86, %c0_87, %c0_88] : memref<3x128x256xf32, #tpu.memory_space<vmem>>, vector<1x128x256xf32>
      %118 = vector.shape_cast %117 : vector<1x128x256xf32> to vector<128x256xf32>
      %c1_89 = arith.constant 1 : index
      %c0_90 = arith.constant 0 : index
      %c0_91 = arith.constant 0 : index
      %119 = vector.load %arg12[%c1_89, %c0_90, %c0_91] : memref<3x128x256xf32, #tpu.memory_space<vmem>>, vector<1x128x256xf32>
      %120 = vector.shape_cast %119 : vector<1x128x256xf32> to vector<128x256xf32>
      %c2_92 = arith.constant 2 : index
      %c0_93 = arith.constant 0 : index
      %c0_94 = arith.constant 0 : index
      %121 = vector.load %arg12[%c2_92, %c0_93, %c0_94] : memref<3x128x256xf32, #tpu.memory_space<vmem>>, vector<1x128x256xf32>
      %122 = vector.shape_cast %121 : vector<1x128x256xf32> to vector<128x256xf32>
      %cst_95 = arith.constant 0.000000e+00 : f32
      %123 = vector.broadcast %cst_95 : f32 to vector<128x256xf32>
      %124 = arith.maximumf %120, %123 : vector<128x256xf32>
      %125 = vector.broadcast %cst_95 : f32 to vector<128x256xf32>
      %126 = arith.subf %120, %125 : vector<128x256xf32>
      %127 = arith.cmpf one, %126, %126 : vector<128x256xf32>
      %128 = vector.broadcast %cst_95 : f32 to vector<128x256xf32>
      %129 = arith.addf %120, %128 : vector<128x256xf32>
      %130 = math.absf %126 : vector<128x256xf32>
      %cst_96 = arith.constant 0.000000e+00 : f32
      %131 = vector.broadcast %cst_96 : f32 to vector<128x256xf32>
      %132 = arith.subf %131, %130 : vector<128x256xf32>
      %133 = math.exp %132 : vector<128x256xf32>
      %134 = math.log1p %133 : vector<128x256xf32>
      %135 = arith.addf %124, %134 : vector<128x256xf32>
      %136 = arith.select %127, %129, %135 : vector<128x256xi1>, vector<128x256xf32>
      %137 = arith.mulf %136, %122 : vector<128x256xf32>
      %138 = arith.addf %118, %137 : vector<128x256xf32>
      %139 = arith.truncf %138 : vector<128x256xf32> to vector<128x256xbf16>
      %c128 = arith.constant 128 : index
      %c0_97 = arith.constant 0 : index
      %140 = vector.load %arg10[%c128, %c0_97] : memref<256x256xbf16, #tpu.memory_space<vmem>>, vector<128x256xbf16>
      tpu.vector_store %arg10[%c128, %c0_97], %139 {strides = array<i32>} : memref<256x256xbf16, #tpu.memory_space<vmem>>, vector<128x256xbf16>,
    } else {
    }
    %c0 = arith.constant 0 : index
    %c0_1 = arith.constant 0 : index
    %3 = vector.load %arg2[%c0, %c0_1] : memref<256x256xf32, #tpu.memory_space<vmem>>, vector<256x256xf32>
    %4 = arith.truncf %3 : vector<256x256xf32> to vector<256x256xbf16>
    %c0_2 = arith.constant 0 : index
    %c0_3 = arith.constant 0 : index
    %5 = vector.load %arg10[%c0_2, %c0_3] : memref<256x256xbf16, #tpu.memory_space<vmem>>, vector<256x256xbf16>
    %cst = arith.constant dense<0.000000e+00> : vector<256x256xf32>
    %6 = tpu.matmul %4, %5, %cst {dimension_numbers = #tpu.dot_dimension_numbers<[1], [0], [0], [1], [0, 0, 1, 1], [], []>} : vector<256x256xbf16>, vector<256x256xbf16>, vector<256x256xf32> -> vector<256x256xf32>
    %c0_4 = arith.constant 0 : index
    %c0_5 = arith.constant 0 : index
    %7 = vector.load %arg11[%c0_4, %c0_5] : memref<1x256xf32, #tpu.memory_space<vmem>>, vector<1x256xf32>
    %8 = vector.broadcast %7 : vector<1x256xf32> to vector<256x256xf32>
    %9 = arith.addf %6, %8 : vector<256x256xf32>
    %c0_6 = arith.constant 0 : index
    %c0_7 = arith.constant 0 : index
    %10 = vector.load %arg9[%c0_6, %c0_7] : memref<256x256xf32, #tpu.memory_space<vmem>>, vector<256x256xf32>
    tpu.vector_store %arg9[%c0_6, %c0_7], %9 {strides = array<i32>} : memref<256x256xf32, #tpu.memory_space<vmem>>, vector<256x256xf32>,
    return
  }
  func.func @transform_0(%arg0: i32, %arg1: i32) -> (i32, i32) {
    %c0_i32 = arith.constant 0 : i32
    %c0_i32_0 = arith.constant 0 : i32
    return %arg1, %c0_i32 : i32, i32
  }
  func.func @transform_4(%arg0: i32, %arg1: i32) -> (i32, i32) {
    %c0_i32 = arith.constant 0 : i32
    %c0_i32_0 = arith.constant 0 : i32
    return %c0_i32, %arg0 : i32, i32
  }
  func.func @transform_5(%arg0: i32, %arg1: i32) -> (i32, i32) {
    %c0_i32 = arith.constant 0 : i32
    %c0_i32_0 = arith.constant 0 : i32
    return %c0_i32, %arg0 : i32, i32
  }
  func.func @transform_6(%arg0: i32, %arg1: i32) -> (i32, i32) {
    %c0_i32 = arith.constant 0 : i32
    %c0_i32_0 = arith.constant 0 : i32
    return %c0_i32, %arg0 : i32, i32
  }
  func.func @transform_7(%arg0: i32, %arg1: i32) -> (i32, i32) {
    %c0_i32 = arith.constant 0 : i32
    return %arg1, %arg0 : i32, i32
  }
}

</mosaic_0001>

<llo_original>
// kernel: tpu_custom_call.1
$region0: #{tpu_custom_call.1}
  #allocation0 [shape = 'u32[]', space=smem, size = 0x4, offset = 0x4, fixed_abs, tag = 'smem constant byte address 0x4 - core index']
  #allocation1 [shape = 'u32[72,128]{1,0:T(1,128)}', space=vmem, size = 0x9000, scoped, tag = 'internal scratch']
  #allocation2 [shape = 'bf16[256,256]{1,0:T(8,128)(2,1)}', space=vmem, size = 0x20000, scoped, tag = 'scratch operand']
  #allocation3 [shape = 'f32[1,256]{1,0:T(1,128)}', space=vmem, size = 0x400, scoped, tag = 'scratch operand']
  #allocation4 [shape = 'f32[3,128,256]{2,1,0:T(8,128)}', space=vmem, size = 0x60000, scoped, tag = 'scratch operand']
  #allocation5 [shape = 's32[3]{0}', space=sflag, size = 0xc, scoped, tag = 'scratch operand']
  #allocation13 [shape = 's32[]', space=sflag, size = 0x4, offset = 0, fixed_abs, tag = 'sflag constant byte address 0x0 - dummy sync flag']
  #allocation14 [shape = 's32[]', space=sflag, size = 0x4, offset = 0, fixed_abs, tag = 'sflag constant byte address 0x0 - dummy sync flag']
  #allocation15 [shape = 's32[]', space=sflag, size = 0x4, offset = 0, fixed_abs, tag = 'sflag constant byte address 0x0 - dummy sync flag']
  #allocation16 [shape = 's32[]', space=sflag, size = 0x4, offset = 0, fixed_abs, tag = 'sflag constant byte address 0x0 - dummy sync flag']
  #allocation17 [shape = 's32[]', space=sflag, size = 0x4, offset = 0, fixed_abs, tag = 'sflag constant byte address 0x0 - dummy sync flag']
  #allocation18 [shape = 's32[]', space=sflag, size = 0x4, offset = 0, fixed_abs, tag = 'sflag constant byte address 0x0 - dummy sync flag']
  %s0 = inlined_call_operand.hbm [shape: f32[512,256], index: 0, kind: input, shape index: {}]
  %s1 = inlined_call_operand.hbm [shape: f32[256,512], index: 1, kind: input, shape index: {}]
  %s2 = inlined_call_operand.hbm [shape: f32[256,512], index: 2, kind: input, shape index: {}]
  %s3 = inlined_call_operand.hbm [shape: f32[256,512], index: 3, kind: input, shape index: {}]
  %s4 = inlined_call_operand.hbm [shape: f32[1,512], index: 4, kind: input, shape index: {}]
  %s5 = inlined_call_operand.vmem [shape: f32[1,512], index: 5, kind: input, shape index: {}]
  %s6 = inlined_call_operand.hbm [shape: f32[1,512], index: 6, kind: input, shape index: {}]
  %s7 = inlined_call_operand.hbm [shape: f32[512,384], index: 7, kind: output, shape index: {}]
  %s8 = sld [smem:[#allocation0]]
  $region65: #{tpu_custom_call.1} parent=0
    _
  %s10 = ssub.s32 1, %s8
  %s11 = scalar_select 0, %s10, %s8
  $region1: #{tpu_custom_call.1} parent=0
    #allocation6 [shape = 'u8[524288]{0}', space=vmem, size = 0x80000, scoped, tag = 'input window, operand 0']
    #allocation7 [shape = 's32[2]{0}', space=sflag, size = 0x8, scoped, tag = 'scoped memory for tpu_custom_call.1']
    #allocation8 [shape = 's32[2]{0}', space=sflag, size = 0x8, scoped, tag = 'scoped memory for tpu_custom_call.1']
    #allocation9 [shape = 'u8[2048]{0}', space=vmem, size = 0x800, scoped, tag = 'input window, operand 4']
    #allocation10 [shape = 's32[2]{0}', space=sflag, size = 0x8, scoped, tag = 'scoped memory for tpu_custom_call.1']
    #allocation11 [shape = 'u8[2048]{0}', space=vmem, size = 0x800, scoped, tag = 'input window, operand 6']
    #allocation12 [shape = 'u8[524288]{0}', space=vmem, size = 0x80000, scoped, tag = 'output window, operand 0']
    %12 = vsyncpa [#allocation7], 0
    %s13 = scalar_lea.sflag [#allocation7], 1
    %14 = vsyncpa %s13, 0
    %15 = vsyncpa [#allocation10], 0
    %s16 = scalar_lea.sflag [#allocation10], 1
    %17 = vsyncpa %s16, 0
    %18 = vsyncpa [#allocation8], 0
    %s19 = scalar_lea.sflag [#allocation8], 1
    %20 = vsyncpa %s19, 0
    loop: start=0, step=1, limit=6
    $region2: #{tpu_custom_call.1} parent=1 // loop_pre_header
      _
    $region3: #{tpu_custom_call.1} parent=1 // loop_header
      %s22 = sphi 0, %s26
      %p23 = scmp.ge.s32.totalorder %s22, 6
      %s29 = sphi 0, %s41
      %s30 = sphi 0, %s37
      %s31 = sphi 0, %s29
      %s32 = sphi 0, %s30
      %s33 = sphi 0, %s31
      %s34 = sphi 0, %s32
      %s44 = sphi 0, %s46
      %s47 = sphi 0, %s44
      %s48 = sphi 0, %s47
      %s64 = sphi 0, %s48
      %s70 = sphi 0, %s72
      %s73 = sphi 0, %s70
      %s74 = sphi 0, %s73
      %s90 = sphi 0, %s74
      %s96 = sphi 0, %s98
      %s99 = sphi 0, %s96
      %s100 = sphi 0, %s99
      %s116 = sphi 0, %s100
      %s122 = sphi 0, %s124
      %s125 = sphi 0, %s122
      %s126 = sphi 0, %s125
      %s142 = sphi 0, %s126
      %s150 = sphi 0, %s152
      %s153 = sphi 0, %s150
      %s154 = sphi 0, %s153
      %s170 = sphi 0, %s154
    $region4: #{tpu_custom_call.1} parent=1 // loop_header_branch
      %25 = sbr.rel (%p23) target = $region8
    $region5: #{tpu_custom_call.1} parent=1 // loop_body
      %s27 = ssub.s32 %s22, 1
      %s28 = ssub.s32 %s22, 2
      %s35 = sadd.s32 1, %s30
      %p36 = scmp.ge.s32.totalorder %s35, 2
      %s37 = scalar_select %p36, 0, %s35
      %s38 = sadd.s32 1, %s29
      %s39 = scalar_select %p36, %s38, %s29
      %p40 = scmp.ge.s32.totalorder %s39, 2
      %s41 = scalar_select %p40, 0, %s39
      %s42 = ssub.s32 %s30, %s37
      %p43 = scmp.eq.s32.totalorder %s42, 0
      %s45 = sadd.s32 %s44, 1
      %s46 = scalar_select %p43, %s44, %s45
      %p49 = pneg %p43
      %p50 = scmp.eq.s32.totalorder %s22, 3
      %p51 = por %p49, %p50
      %p52 = scmp.ne.s32.totalorder %s44, %s47
      %p53 = scmp.eq.s32.totalorder %s22, 0
      %p54 = por %p52, %p53
      %p55 = scmp.ne.s32.totalorder %s44, %s47
      %p56 = scmp.eq.s32.totalorder %s27, 3
      %p57 = por %p55, %p56
      %p58 = scmp.ne.s32.totalorder %s47, %s48
      %p59 = scmp.eq.s32.totalorder %s27, 0
      %p60 = por %p58, %p59
      %p61 = scmp.ne.s32.totalorder %s47, %s48
      %p62 = scmp.eq.s32.totalorder %s28, 3
      %p63 = por %p61, %p62
      %p65 = scmp.ne.s32.totalorder %s48, %s64
      %p66 = scmp.eq.s32.totalorder %s28, 0
      %p67 = por %p65, %p66
      %s68 = ssub.s32 %s29, %s41
      %p69 = scmp.eq.s32.totalorder %s68, 0
      %s71 = sadd.s32 %s70, 1
      %s72 = scalar_select %p69, %s70, %s71
      %p75 = pneg %p69
      %p76 = scmp.eq.s32.totalorder %s22, 3
      %p77 = por %p75, %p76
      %p78 = scmp.ne.s32.totalorder %s70, %s73
      %p79 = scmp.eq.s32.totalorder %s22, 0
      %p80 = por %p78, %p79
      %p81 = scmp.ne.s32.totalorder %s70, %s73
      %p82 = scmp.eq.s32.totalorder %s27, 3
      %p83 = por %p81, %p82
      %p84 = scmp.ne.s32.totalorder %s73, %s74
      %p85 = scmp.eq.s32.totalorder %s27, 0
      %p86 = por %p84, %p85
      %p87 = scmp.ne.s32.totalorder %s73, %s74
      %p88 = scmp.eq.s32.totalorder %s28, 3
      %p89 = por %p87, %p88
      %p91 = scmp.ne.s32.totalorder %s74, %s90
      %p92 = scmp.eq.s32.totalorder %s28, 0
      %p93 = por %p91, %p92
      %s94 = ssub.s32 %s29, %s41
      %p95 = scmp.eq.s32.totalorder %s94, 0
      %s97 = sadd.s32 %s96, 1
      %s98 = scalar_select %p95, %s96, %s97
      %p101 = pneg %p95
      %p102 = scmp.eq.s32.totalorder %s22, 3
      %p103 = por %p101, %p102
      %p104 = scmp.ne.s32.totalorder %s96, %s99
      %p105 = scmp.eq.s32.totalorder %s22, 0
      %p106 = por %p104, %p105
      %p107 = scmp.ne.s32.totalorder %s96, %s99
      %p108 = scmp.eq.s32.totalorder %s27, 3
      %p109 = por %p107, %p108
      %p110 = scmp.ne.s32.totalorder %s99, %s100
      %p111 = scmp.eq.s32.totalorder %s27, 0
      %p112 = por %p110, %p111
      %p113 = scmp.ne.s32.totalorder %s99, %s100
      %p114 = scmp.eq.s32.totalorder %s28, 3
      %p115 = por %p113, %p114
      %p117 = scmp.ne.s32.totalorder %s100, %s116
      %p118 = scmp.eq.s32.totalorder %s28, 0
      %p119 = por %p117, %p118
      %s120 = ssub.s32 %s29, %s41
      %p121 = scmp.eq.s32.totalorder %s120, 0
      %s123 = sadd.s32 %s122, 1
      %s124 = scalar_select %p121, %s122, %s123
      %p127 = pneg %p121
      %p128 = scmp.eq.s32.totalorder %s22, 3
      %p129 = por %p127, %p128
      %p130 = scmp.ne.s32.totalorder %s122, %s125
      %p131 = scmp.eq.s32.totalorder %s22, 0
      %p132 = por %p130, %p131
      %p133 = scmp.ne.s32.totalorder %s122, %s125
      %p134 = scmp.eq.s32.totalorder %s27, 3
      %p135 = por %p133, %p134
      %p136 = scmp.ne.s32.totalorder %s125, %s126
      %p137 = scmp.eq.s32.totalorder %s27, 0
      %p138 = por %p136, %p137
      %p139 = scmp.ne.s32.totalorder %s125, %s126
      %p140 = scmp.eq.s32.totalorder %s28, 3
      %p141 = por %p139, %p140
      %p143 = scmp.ne.s32.totalorder %s126, %s142
      %p144 = scmp.eq.s32.totalorder %s28, 0
      %p145 = por %p143, %p144
      %s146 = ssub.s32 %s30, %s37
      %s147 = ssub.s32 %s29, %s41
      %s148 = sor.u32 %s146, %s147
      %p149 = scmp.eq.s32.totalorder %s148, 0
      %s151 = sadd.s32 %s150, 1
      %s152 = scalar_select %p149, %s150, %s151
      %p155 = pneg %p149
      %p156 = scmp.eq.s32.totalorder %s22, 3
      %p157 = por %p155, %p156
      %p158 = scmp.ne.s32.totalorder %s150, %s153
      %p159 = scmp.eq.s32.totalorder %s22, 0
      %p160 = por %p158, %p159
      %p161 = scmp.ne.s32.totalorder %s150, %s153
      %p162 = scmp.eq.s32.totalorder %s27, 3
      %p163 = por %p161, %p162
      %p164 = scmp.ne.s32.totalorder %s153, %s154
      %p165 = scmp.eq.s32.totalorder %s27, 0
      %p166 = por %p164, %p165
      %p167 = scmp.ne.s32.totalorder %s153, %s154
      %p168 = scmp.eq.s32.totalorder %s28, 3
      %p169 = por %p167, %p168
      %p171 = scmp.ne.s32.totalorder %s154, %s170
      %p172 = scmp.eq.s32.totalorder %s28, 0
      %p173 = por %p171, %p172
      %p174 = scmp.le.s32.totalorder 1, %s22
      %p175 = scmp.lt.s32.totalorder %s22, 5
      %p176 = pnand %p174, %p175
      %p177 = pneg %p176
      // Predicated region
      $region9: #{tpu_custom_call.1} parent=5 // pred_check
        _
      $region10: #{tpu_custom_call.1} parent=5 // pred_check_branch
        %179 = sbr.rel (%p176) target = $region12
      $region11: #{tpu_custom_call.1} parent=5 // pred_region
        %s180 = ssub.s32 %s22, 1
      $region12: #{tpu_custom_call.1} parent=5 // pred_fallthru
        _
      %p181 = scmp.lt.s32.totalorder %s22, 4
      // Predicated region
      $region13: #{tpu_custom_call.1} parent=5 // pred_check
        %p182 = pneg %p181
      $region14: #{tpu_custom_call.1} parent=5 // pred_check_branch
        %184 = sbr.rel (%p182) target = $region16
      $region15: #{tpu_custom_call.1} parent=5 // pred_region
        // Predicated region
        $region17: #{tpu_custom_call.1} parent=15 // pred_check
          %p185 = pneg %p54
        $region18: #{tpu_custom_call.1} parent=15 // pred_check_branch
          %187 = sbr.rel (%p185) target = $region20
        $region19: #{tpu_custom_call.1} parent=15 // pred_region
          %s188 = sand.u32 %s44, 1
          %s189 = scalar_lea.sflag [#allocation7], %s188
          %s190 = sand.u32 %s44, 1
          %s191 = smul.addr %s190, 512
          %s192 = scalar_lea.vmem [#allocation6], %s191
          %s193 = smul.u32 32, %s30
          %195 = vsyncadd %s189, 0
          %s196 = smul.addr %s193, 2
          %s197 = smul.addr %s196, 8
          %s198 = scalar_lea.hbm %s0, %s197
          %s199 = sshll.u32 %s198, 4
          %s200 = int_to_ptr.hbm [resolvable:$true] %s199
          %s201 = sshll.u32 %s192, 4
          %s202 = int_to_ptr.vmem [resolvable:$true] %s201
          %207 = dma.hbm_to_vmem [thread:$0]  %s200, 8192, %s202, %s189, 256, 256, 16
        $region20: #{tpu_custom_call.1} parent=15 // pred_fallthru
          _
        // Predicated region
        $region21: #{tpu_custom_call.1} parent=15 // pred_check
          %p208 = pneg %p80
        $region22: #{tpu_custom_call.1} parent=15 // pred_check_branch
          %210 = sbr.rel (%p208) target = $region24
        $region23: #{tpu_custom_call.1} parent=15 // pred_region
          %s211 = sand.u32 %s22, 1
          %s212 = scalar_lea.sflag [#allocation10], %s211
          %s213 = sand.u32 %s70, 1
          %s214 = smul.addr %s213, 2
          %s215 = scalar_lea.vmem [#allocation9], %s214
          %s216 = smul.u32 2, %s29
          %218 = vsyncadd %s212, 0
          %s219 = scalar_lea.hbm %s4, %s216
          %s221 = sshll.u32 %s219, 4
          %s222 = int_to_ptr.hbm [resolvable:$true] %s221
          %s223 = sshll.u32 %s215, 4
          %s224 = int_to_ptr.vmem [resolvable:$true] %s223
          %226 = dma.hbm_to_vmem [thread:$0]  %s222, 32, %s224, %s212
        $region24: #{tpu_custom_call.1} parent=15 // pred_fallthru
          _
        // Predicated region
        $region25: #{tpu_custom_call.1} parent=15 // pred_check
          %p227 = pneg %p106
        $region26: #{tpu_custom_call.1} parent=15 // pred_check_branch
          %229 = sbr.rel (%p227) target = $region28
        $region27: #{tpu_custom_call.1} parent=15 // pred_region
          %s230 = smul.u32 2, %s29
          %p231 = scmp.lt.s32.totalorder %s230, 3
          %s232 = scalar_select %p231, %s230, 3
          %s233 = scalar_lea.vmem %s5, %s232
          %s234 = smul.u32 2, %s29
        $region28: #{tpu_custom_call.1} parent=15 // pred_fallthru
          _
        // Predicated region
        $region29: #{tpu_custom_call.1} parent=15 // pred_check
          %p235 = pneg %p132
        $region30: #{tpu_custom_call.1} parent=15 // pred_check_branch
          %237 = sbr.rel (%p235) target = $region32
        $region31: #{tpu_custom_call.1} parent=15 // pred_region
          %s238 = sand.u32 %s22, 1
          %s239 = scalar_lea.sflag [#allocation10], %s238
          %s240 = sand.u32 %s122, 1
          %s241 = smul.addr %s240, 2
          %s242 = scalar_lea.vmem [#allocation11], %s241
          %s243 = smul.u32 2, %s29
          %245 = vsyncadd %s239, 0
          %s246 = scalar_lea.hbm %s6, %s243
          %s248 = sshll.u32 %s246, 4
          %s249 = int_to_ptr.hbm [resolvable:$true] %s248
          %s250 = sshll.u32 %s242, 4
          %s251 = int_to_ptr.vmem [resolvable:$true] %s250
          %253 = dma.hbm_to_vmem [thread:$0]  %s249, 32, %s251, %s239
        $region32: #{tpu_custom_call.1} parent=15 // pred_fallthru
          _
      $region16: #{tpu_custom_call.1} parent=5 // pred_fallthru
        _
      %p254 = scmp.le.s32.totalorder 1, %s22
      %p255 = scmp.lt.s32.totalorder %s22, 5
      %p256 = pnand %p254, %p255
      %p257 = pneg %p256
      // Predicated region
      $region33: #{tpu_custom_call.1} parent=5 // pred_check
        _
      $region34: #{tpu_custom_call.1} parent=5 // pred_check_branch
        %259 = sbr.rel (%p256) target = $region36
      $region35: #{tpu_custom_call.1} parent=5 // pred_region
        %s260 = ssub.s32 %s22, 1
        %s261 = sand.u32 %s47, 1
        %s262 = scalar_lea.sflag [#allocation7], %s261
        %s263 = sand.u32 %s47, 1
        %s264 = smul.addr %s263, 512
        %s265 = scalar_lea.vmem [#allocation6], %s264
        // Predicated region
        $region37: #{tpu_custom_call.1} parent=35 // pred_check
          %p266 = pneg %p60
        $region38: #{tpu_custom_call.1} parent=35 // pred_check_branch
          %268 = sbr.rel (%p266) target = $region40
        $region39: #{tpu_custom_call.1} parent=35 // pred_region
          %270 = dma.done %s262, 8192
        $region40: #{tpu_custom_call.1} parent=35 // pred_fallthru
          _
        %s271 = sand.u32 %s27, 1
        %s272 = scalar_lea.sflag [#allocation10], %s271
        %s273 = sand.u32 %s73, 1
        %s274 = smul.addr %s273, 2
        %s275 = scalar_lea.vmem [#allocation9], %s274
        // Predicated region
        $region41: #{tpu_custom_call.1} parent=35 // pred_check
          %p276 = pneg %p86
        $region42: #{tpu_custom_call.1} parent=35 // pred_check_branch
          %278 = sbr.rel (%p276) target = $region44
        $region43: #{tpu_custom_call.1} parent=35 // pred_region
          %280 = dma.done %s272, 32
        $region44: #{tpu_custom_call.1} parent=35 // pred_fallthru
          _
        %s281 = sand.u32 %s27, 1
        %s282 = scalar_lea.sflag [#allocation10], %s281
        %s283 = sand.u32 %s125, 1
        %s284 = smul.addr %s283, 2
        %s285 = scalar_lea.vmem [#allocation11], %s284
        // Predicated region
        $region45: #{tpu_custom_call.1} parent=35 // pred_check
          %p286 = pneg %p138
        $region46: #{tpu_custom_call.1} parent=35 // pred_check_branch
          %288 = sbr.rel (%p286) target = $region48
        $region47: #{tpu_custom_call.1} parent=35 // pred_region
          %290 = dma.done %s282, 32
        $region48: #{tpu_custom_call.1} parent=35 // pred_fallthru
          _
        %s291 = sand.u32 %s47, 1
        %s292 = scalar_lea.sflag [#allocation7], %s291
        %s293 = sand.u32 %s47, 1
        %s294 = smul.addr %s293, 512
        %s295 = scalar_lea.vmem [#allocation6], %s294
        %p296 = pneg %p60
        %p297 = pneg %p57
        %s298 = sand.u32 %s27, 1
        %s299 = scalar_lea.sflag [#allocation10], %s298
        %s300 = sand.u32 %s73, 1
        %s301 = smul.addr %s300, 2
        %s302 = scalar_lea.vmem [#allocation9], %s301
        %p303 = pneg %p86
        %p304 = pneg %p83
        %s305 = smul.u32 2, %s31
        %p306 = scmp.lt.s32.totalorder %s305, 3
        %s307 = scalar_select %p306, %s305, 3
        %s308 = scalar_lea.vmem %s5, %s307
        %p309 = pneg %p112
        %p310 = pneg %p109
        %s311 = sand.u32 %s27, 1
        %s312 = scalar_lea.sflag [#allocation10], %s311
        %s313 = sand.u32 %s125, 1
        %s314 = smul.addr %s313, 2
        %s315 = scalar_lea.vmem [#allocation11], %s314
        %p316 = pneg %p138
        %p317 = pneg %p135
        %p318 = pneg %p166
        %p319 = pneg %p163
        %s320 = sand.u32 %s153, 1
        %s321 = scalar_lea.sflag [#allocation8], %s320
        %s322 = sand.u32 %s153, 1
        %s323 = smul.addr %s322, 512
        %s324 = scalar_lea.vmem [#allocation12], %s323
        %s325 = smul.u32 32, %s32
        %s326 = smul.u32 2, %s31
        %s327 = smul.u32 2, %s31
        %p328 = scmp.lt.s32.totalorder %s327, 3
        %s329 = scalar_select %p328, %s327, 3
        %s330 = scalar_lea.vmem %s5, %s329
        %s331 = smul.u32 2, %s31
        %s332 = smul.u32 2, %s31
        %s333 = smul.u32 32, %s32
        %s334 = smul.u32 2, %s31
        %s335 = ssub.s32 3, %s334
        %p336 = scmp.lt.s32.totalorder %s335, 2
        %s337 = scalar_select %p336, %s335, 2
        %s338 = smul.u32 256, %s337
        %p339 = scmp.eq.s32.totalorder %s32, 0
        // Predicated region
        $region49: #{tpu_custom_call.1} parent=35 // pred_check
          %p340 = pneg %p339
        $region50: #{tpu_custom_call.1} parent=35 // pred_check_branch
          %342 = sbr.rel (%p340) target = $region52
        $region51: #{tpu_custom_call.1} parent=35 // pred_region
          %v343 = vld [vmem:[%s275] sm:$0x3]
          %v344 = vld [vmem:[%s330] sm:$0x3]
          %v345 = vmax.f32 %v344, 0.0
          %vm346 = vcmp.ne.f32.partialorder %v344, %v344
          %v347 = vadd.f32 %v344, 0.0
          %v348 = vand.u32 2147483647, %v344
          %v349 = vsub.f32 0.0, %v348
          %v350 = vmul.f32 %v349, 1.442695
          %v351 = vpow.pop %v350
          %v352 = vadd.f32 %v351, 1.0
          %v353 = vlog2.pop %v352
          %v354 = vmul.f32 %v353, 0.6931472
          %v355 = vmul.f32 -0.5, %v351
          %v356 = vadd.f32 %v355, 1.0
          %v357 = vmul.f32 %v356, %v351
          %v358 = vand.u32 2147483647, %v351
          %vm359 = vcmp.lt.f32.partialorder %v358, 0.0004427343
          %v360 = vsel %vm359, %v357, %v354
          %v361 = vadd.f32 %v345, %v360
          %v362 = vsel %vm346, %v347, %v361
          %v363 = vld [vmem:[%s285] sm:$0x3]
          %v364 = vmul.f32 %v362, %v363
          %v365 = vadd.f32 %v343, %v364
          %v366 = vlaneseq
          %vm367 = vcmp.ge.s32.totalorder %v366, 0
          %vm368 = vcmp.lt.s32.totalorder %v366, 256
          %vm369 = vmand %vm367, %vm368
          %370 = vst.msk [vmem:[#allocation3] sm:$0x3] %vm369, %v365
          %s371 = smul.u32 %s31, 256
          %s372 = sshra.s32 %s371, 7
          %s373 = sand.u32 %s371, 127
          %s374 = smul.addr %s372, 8
          %s375 = scalar_lea.hbm %s1, %s374
          %s376 = sshll.u32 %s375, 4
          %s377 = int_to_ptr.hbm [resolvable:$true] %s376
          %s378 = sshll.u32 [#allocation4], 4
          %s379 = int_to_ptr.vmem [resolvable:$true] %s378
          %383 = dma.hbm_to_vmem [thread:$0]  %s377, 4096, %s379, [#allocation5], 512, 256, 16
          %s384 = smul.addr %s372, 8
          %s385 = scalar_lea.hbm %s2, %s384
          %s386 = scalar_lea.vmem [#allocation4], 256
          %s387 = scalar_lea.sflag [#allocation5], 1
          %s388 = sshll.u32 %s385, 4
          %s389 = int_to_ptr.hbm [resolvable:$true] %s388
          %s390 = sshll.u32 %s386, 4
          %s391 = int_to_ptr.vmem [resolvable:$true] %s390
          %395 = dma.hbm_to_vmem [thread:$0]  %s389, 4096, %s391, %s387, 512, 256, 16
          %s396 = smul.addr %s372, 8
          %s397 = scalar_lea.hbm %s3, %s396
          %s398 = scalar_lea.vmem [#allocation4], 512
          %s399 = scalar_lea.sflag [#allocation5], 2
          %s400 = sshll.u32 %s397, 4
          %s401 = int_to_ptr.hbm [resolvable:$true] %s400
          %s402 = sshll.u32 %s398, 4
          %s403 = int_to_ptr.vmem [resolvable:$true] %s402
          %407 = dma.hbm_to_vmem [thread:$0]  %s401, 4096, %s403, %s399, 512, 256, 16
          %s408 = smul.u32 8, 16
          %s409 = smul.u32 %s408, 2
          %s410 = sshll.u32 %s409, 4
          %411 = dma.done [#allocation5], %s410
          %s412 = sshll.u32 %s409, 4
          %413 = dma.done %s387, %s412
          %s414 = sshll.u32 %s409, 4
          %415 = dma.done %s399, %s414
          %v416 = vld [vmem:[#allocation4] sm:$0xff]
          %v417 = vld [vmem:[#allocation4 + $0x8] sm:$0xff]
          %v418 = vld [vmem:[#allocation4 + $0x10] sm:$0xff]
          %v419 = vld [vmem:[#allocation4 + $0x18] sm:$0xff]
          %v420 = vld [vmem:[#allocation4 + $0x20] sm:$0xff]
          %v421 = vld [vmem:[#allocation4 + $0x28] sm:$0xff]
          %v422 = vld [vmem:[#allocation4 + $0x30] sm:$0xff]
          %v423 = vld [vmem:[#allocation4 + $0x38] sm:$0xff]
          %v424 = vld [vmem:[#allocation4 + $0x40] sm:$0xff]
          %v425 = vld [vmem:[#allocation4 + $0x48] sm:$0xff]
          %v426 = vld [vmem:[#allocation4 + $0x50] sm:$0xff]
          %v427 = vld [vmem:[#allocation4 + $0x58] sm:$0xff]
          %v428 = vld [vmem:[#allocation4 + $0x60] sm:$0xff]
          %v429 = vld [vmem:[#allocation4 + $0x68] sm:$0xff]
          %v430 = vld [vmem:[#allocation4 + $0x70] sm:$0xff]
          %v431 = vld [vmem:[#allocation4 + $0x78] sm:$0xff]
          %v432 = vld [vmem:[#allocation4 + $0x80] sm:$0xff]
          %v433 = vld [vmem:[#allocation4 + $0x88] sm:$0xff]
          %v434 = vld [vmem:[#allocation4 + $0x90] sm:$0xff]
          %v435 = vld [vmem:[#allocation4 + $0x98] sm:$0xff]
          %v436 = vld [vmem:[#allocation4 + $0xa0] sm:$0xff]
          %v437 = vld [vmem:[#allocation4 + $0xa8] sm:$0xff]
          %v438 = vld [vmem:[#allocation4 + $0xb0] sm:$0xff]
          %v439 = vld [vmem:[#allocation4 + $0xb8] sm:$0xff]
          %v440 = vld [vmem:[#allocation4 + $0xc0] sm:$0xff]
          %v441 = vld [vmem:[#allocation4 + $0xc8] sm:$0xff]
          %v442 = vld [vmem:[#allocation4 + $0xd0] sm:$0xff]
          %v443 = vld [vmem:[#allocation4 + $0xd8] sm:$0xff]
          %v444 = vld [vmem:[#allocation4 + $0xe0] sm:$0xff]
          %v445 = vld [vmem:[#allocation4 + $0xe8] sm:$0xff]
          %v446 = vld [vmem:[#allocation4 + $0xf0] sm:$0xff]
          %v447 = vld [vmem:[#allocation4 + $0xf8] sm:$0xff]
          %v448 = vld [vmem:[%s386] sm:$0xff]
          %v449 = vld [vmem:[%s386 + $0x8] sm:$0xff]
          %v450 = vld [vmem:[%s386 + $0x10] sm:$0xff]
          %v451 = vld [vmem:[%s386 + $0x18] sm:$0xff]
          %v452 = vld [vmem:[%s386 + $0x20] sm:$0xff]
          %v453 = vld [vmem:[%s386 + $0x28] sm:$0xff]
          %v454 = vld [vmem:[%s386 + $0x30] sm:$0xff]
          %v455 = vld [vmem:[%s386 + $0x38] sm:$0xff]
          %v456 = vld [vmem:[%s386 + $0x40] sm:$0xff]
          %v457 = vld [vmem:[%s386 + $0x48] sm:$0xff]
          %v458 = vld [vmem:[%s386 + $0x50] sm:$0xff]
          %v459 = vld [vmem:[%s386 + $0x58] sm:$0xff]
          %v460 = vld [vmem:[%s386 + $0x60] sm:$0xff]
          %v461 = vld [vmem:[%s386 + $0x68] sm:$0xff]
          %v462 = vld [vmem:[%s386 + $0x70] sm:$0xff]
          %v463 = vld [vmem:[%s386 + $0x78] sm:$0xff]
          %v464 = vld [vmem:[%s386 + $0x80] sm:$0xff]
          %v465 = vld [vmem:[%s386 + $0x88] sm:$0xff]
          %v466 = vld [vmem:[%s386 + $0x90] sm:$0xff]
          %v467 = vld [vmem:[%s386 + $0x98] sm:$0xff]
          %v468 = vld [vmem:[%s386 + $0xa0] sm:$0xff]
          %v469 = vld [vmem:[%s386 + $0xa8] sm:$0xff]
          %v470 = vld [vmem:[%s386 + $0xb0] sm:$0xff]
          %v471 = vld [vmem:[%s386 + $0xb8] sm:$0xff]
          %v472 = vld [vmem:[%s386 + $0xc0] sm:$0xff]
          %v473 = vld [vmem:[%s386 + $0xc8] sm:$0xff]
          %v474 = vld [vmem:[%s386 + $0xd0] sm:$0xff]
          %v475 = vld [vmem:[%s386 + $0xd8] sm:$0xff]
          %v476 = vld [vmem:[%s386 + $0xe0] sm:$0xff]
          %v477 = vld [vmem:[%s386 + $0xe8] sm:$0xff]
          %v478 = vld [vmem:[%s386 + $0xf0] sm:$0xff]
          %v479 = vld [vmem:[%s386 + $0xf8] sm:$0xff]
          %v480 = vld [vmem:[%s398] sm:$0xff]
          %v481 = vld [vmem:[%s398 + $0x8] sm:$0xff]
          %v482 = vld [vmem:[%s398 + $0x10] sm:$0xff]
          %v483 = vld [vmem:[%s398 + $0x18] sm:$0xff]
          %v484 = vld [vmem:[%s398 + $0x20] sm:$0xff]
          %v485 = vld [vmem:[%s398 + $0x28] sm:$0xff]
          %v486 = vld [vmem:[%s398 + $0x30] sm:$0xff]
          %v487 = vld [vmem:[%s398 + $0x38] sm:$0xff]
          %v488 = vld [vmem:[%s398 + $0x40] sm:$0xff]
          %v489 = vld [vmem:[%s398 + $0x48] sm:$0xff]
          %v490 = vld [vmem:[%s398 + $0x50] sm:$0xff]
          %v491 = vld [vmem:[%s398 + $0x58] sm:$0xff]
          %v492 = vld [vmem:[%s398 + $0x60] sm:$0xff]
          %v493 = vld [vmem:[%s398 + $0x68] sm:$0xff]
          %v494 = vld [vmem:[%s398 + $0x70] sm:$0xff]
          %v495 = vld [vmem:[%s398 + $0x78] sm:$0xff]
          %v496 = vld [vmem:[%s398 + $0x80] sm:$0xff]
          %v497 = vld [vmem:[%s398 + $0x88] sm:$0xff]
          %v498 = vld [vmem:[%s398 + $0x90] sm:$0xff]
          %v499 = vld [vmem:[%s398 + $0x98] sm:$0xff]
          %v500 = vld [vmem:[%s398 + $0xa0] sm:$0xff]
          %v501 = vld [vmem:[%s398 + $0xa8] sm:$0xff]
          %v502 = vld [vmem:[%s398 + $0xb0] sm:$0xff]
          %v503 = vld [vmem:[%s398 + $0xb8] sm:$0xff]
          %v504 = vld [vmem:[%s398 + $0xc0] sm:$0xff]
          %v505 = vld [vmem:[%s398 + $0xc8] sm:$0xff]
          %v506 = vld [vmem:[%s398 + $0xd0] sm:$0xff]
          %v507 = vld [vmem:[%s398 + $0xd8] sm:$0xff]
          %v508 = vld [vmem:[%s398 + $0xe0] sm:$0xff]
          %v509 = vld [vmem:[%s398 + $0xe8] sm:$0xff]
          %v510 = vld [vmem:[%s398 + $0xf0] sm:$0xff]
          %v511 = vld [vmem:[%s398 + $0xf8] sm:$0xff]
          %v512 = vmax.f32 %v448, 0.0
          %v513 = vmax.f32 %v449, 0.0
          %v514 = vmax.f32 %v450, 0.0
          %v515 = vmax.f32 %v451, 0.0
          %v516 = vmax.f32 %v452, 0.0
          %v517 = vmax.f32 %v453, 0.0
          %v518 = vmax.f32 %v454, 0.0
          %v519 = vmax.f32 %v455, 0.0
          %v520 = vmax.f32 %v456, 0.0
          %v521 = vmax.f32 %v457, 0.0
          %v522 = vmax.f32 %v458, 0.0
          %v523 = vmax.f32 %v459, 0.0
          %v524 = vmax.f32 %v460, 0.0
          %v525 = vmax.f32 %v461, 0.0
          %v526 = vmax.f32 %v462, 0.0
          %v527 = vmax.f32 %v463, 0.0
          %v528 = vmax.f32 %v464, 0.0
          %v529 = vmax.f32 %v465, 0.0
          %v530 = vmax.f32 %v466, 0.0
          %v531 = vmax.f32 %v467, 0.0
          %v532 = vmax.f32 %v468, 0.0
          %v533 = vmax.f32 %v469, 0.0
          %v534 = vmax.f32 %v470, 0.0
          %v535 = vmax.f32 %v471, 0.0
          %v536 = vmax.f32 %v472, 0.0
          %v537 = vmax.f32 %v473, 0.0
          %v538 = vmax.f32 %v474, 0.0
          %v539 = vmax.f32 %v475, 0.0
          %v540 = vmax.f32 %v476, 0.0
          %v541 = vmax.f32 %v477, 0.0
          %v542 = vmax.f32 %v478, 0.0
          %v543 = vmax.f32 %v479, 0.0
          %vm544 = vcmp.ne.f32.partialorder %v448, %v448
          %vm545 = vcmp.ne.f32.partialorder %v449, %v449
          %vm546 = vcmp.ne.f32.partialorder %v450, %v450
          %vm547 = vcmp.ne.f32.partialorder %v451, %v451
          %vm548 = vcmp.ne.f32.partialorder %v452, %v452
          %vm549 = vcmp.ne.f32.partialorder %v453, %v453
          %vm550 = vcmp.ne.f32.partialorder %v454, %v454
          %vm551 = vcmp.ne.f32.partialorder %v455, %v455
          %vm552 = vcmp.ne.f32.partialorder %v456, %v456
          %vm553 = vcmp.ne.f32.partialorder %v457, %v457
          %vm554 = vcmp.ne.f32.partialorder %v458, %v458
          %vm555 = vcmp.ne.f32.partialorder %v459, %v459
          %vm556 = vcmp.ne.f32.partialorder %v460, %v460
          %vm557 = vcmp.ne.f32.partialorder %v461, %v461
          %vm558 = vcmp.ne.f32.partialorder %v462, %v462
          %vm559 = vcmp.ne.f32.partialorder %v463, %v463
          %vm560 = vcmp.ne.f32.partialorder %v464, %v464
          %vm561 = vcmp.ne.f32.partialorder %v465, %v465
          %vm562 = vcmp.ne.f32.partialorder %v466, %v466
          %vm563 = vcmp.ne.f32.partialorder %v467, %v467
          %vm564 = vcmp.ne.f32.partialorder %v468, %v468
          %vm565 = vcmp.ne.f32.partialorder %v469, %v469
          %vm566 = vcmp.ne.f32.partialorder %v470, %v470
          %vm567 = vcmp.ne.f32.partialorder %v471, %v471
          %vm568 = vcmp.ne.f32.partialorder %v472, %v472
          %vm569 = vcmp.ne.f32.partialorder %v473, %v473
          %vm570 = vcmp.ne.f32.partialorder %v474, %v474
          %vm571 = vcmp.ne.f32.partialorder %v475, %v475
          %vm572 = vcmp.ne.f32.partialorder %v476, %v476
          %vm573 = vcmp.ne.f32.partialorder %v477, %v477
          %vm574 = vcmp.ne.f32.partialorder %v478, %v478
          %vm575 = vcmp.ne.f32.partialorder %v479, %v479
          %v576 = vadd.f32 %v448, 0.0
          %v577 = vadd.f32 %v449, 0.0
          %v578 = vadd.f32 %v450, 0.0
          %v579 = vadd.f32 %v451, 0.0
          %v580 = vadd.f32 %v452, 0.0
          %v581 = vadd.f32 %v453, 0.0
          %v582 = vadd.f32 %v454, 0.0
          %v583 = vadd.f32 %v455, 0.0
          %v584 = vadd.f32 %v456, 0.0
          %v585 = vadd.f32 %v457, 0.0
          %v586 = vadd.f32 %v458, 0.0
          %v587 = vadd.f32 %v459, 0.0
          %v588 = vadd.f32 %v460, 0.0
          %v589 = vadd.f32 %v461, 0.0
          %v590 = vadd.f32 %v462, 0.0
          %v591 = vadd.f32 %v463, 0.0
          %v592 = vadd.f32 %v464, 0.0
          %v593 = vadd.f32 %v465, 0.0
          %v594 = vadd.f32 %v466, 0.0
          %v595 = vadd.f32 %v467, 0.0
          %v596 = vadd.f32 %v468, 0.0
          %v597 = vadd.f32 %v469, 0.0
          %v598 = vadd.f32 %v470, 0.0
          %v599 = vadd.f32 %v471, 0.0
          %v600 = vadd.f32 %v472, 0.0
          %v601 = vadd.f32 %v473, 0.0
          %v602 = vadd.f32 %v474, 0.0
          %v603 = vadd.f32 %v475, 0.0
          %v604 = vadd.f32 %v476, 0.0
          %v605 = vadd.f32 %v477, 0.0
          %v606 = vadd.f32 %v478, 0.0
          %v607 = vadd.f32 %v479, 0.0
          %v608 = vand.u32 2147483647, %v448
          %v609 = vand.u32 2147483647, %v449
          %v610 = vand.u32 2147483647, %v450
          %v611 = vand.u32 2147483647, %v451
          %v612 = vand.u32 2147483647, %v452
          %v613 = vand.u32 2147483647, %v453
          %v614 = vand.u32 2147483647, %v454
          %v615 = vand.u32 2147483647, %v455
          %v616 = vand.u32 2147483647, %v456
          %v617 = vand.u32 2147483647, %v457
          %v618 = vand.u32 2147483647, %v458
          %v619 = vand.u32 2147483647, %v459
          %v620 = vand.u32 2147483647, %v460
          %v621 = vand.u32 2147483647, %v461
          %v622 = vand.u32 2147483647, %v462
          %v623 = vand.u32 2147483647, %v463
          %v624 = vand.u32 2147483647, %v464
          %v625 = vand.u32 2147483647, %v465
          %v626 = vand.u32 2147483647, %v466
          %v627 = vand.u32 2147483647, %v467
          %v628 = vand.u32 2147483647, %v468
          %v629 = vand.u32 2147483647, %v469
          %v630 = vand.u32 2147483647, %v470
          %v631 = vand.u32 2147483647, %v471
          %v632 = vand.u32 2147483647, %v472
          %v633 = vand.u32 2147483647, %v473
          %v634 = vand.u32 2147483647, %v474
          %v635 = vand.u32 2147483647, %v475
          %v636 = vand.u32 2147483647, %v476
          %v637 = vand.u32 2147483647, %v477
          %v638 = vand.u32 2147483647, %v478
          %v639 = vand.u32 2147483647, %v479
          %v640 = vsub.f32 0.0, %v608
          %v641 = vsub.f32 0.0, %v609
          %v642 = vsub.f32 0.0, %v610
          %v643 = vsub.f32 0.0, %v611
          %v644 = vsub.f32 0.0, %v612
          %v645 = vsub.f32 0.0, %v613
          %v646 = vsub.f32 0.0, %v614
          %v647 = vsub.f32 0.0, %v615
          %v648 = vsub.f32 0.0, %v616
          %v649 = vsub.f32 0.0, %v617
          %v650 = vsub.f32 0.0, %v618
          %v651 = vsub.f32 0.0, %v619
          %v652 = vsub.f32 0.0, %v620
          %v653 = vsub.f32 0.0, %v621
          %v654 = vsub.f32 0.0, %v622
          %v655 = vsub.f32 0.0, %v623
          %v656 = vsub.f32 0.0, %v624
          %v657 = vsub.f32 0.0, %v625
          %v658 = vsub.f32 0.0, %v626
          %v659 = vsub.f32 0.0, %v627
          %v660 = vsub.f32 0.0, %v628
          %v661 = vsub.f32 0.0, %v629
          %v662 = vsub.f32 0.0, %v630
          %v663 = vsub.f32 0.0, %v631
          %v664 = vsub.f32 0.0, %v632
          %v665 = vsub.f32 0.0, %v633
          %v666 = vsub.f32 0.0, %v634
          %v667 = vsub.f32 0.0, %v635
          %v668 = vsub.f32 0.0, %v636
          %v669 = vsub.f32 0.0, %v637
          %v670 = vsub.f32 0.0, %v638
          %v671 = vsub.f32 0.0, %v639
          %v672 = vmul.f32 %v640, 1.442695
          %v673 = vpow.pop %v672
          %v674 = vmul.f32 %v641, 1.442695
          %v675 = vpow.pop %v674
          %v676 = vmul.f32 %v642, 1.442695
          %v677 = vpow.pop %v676
          %v678 = vmul.f32 %v643, 1.442695
          %v679 = vpow.pop %v678
          %v680 = vmul.f32 %v644, 1.442695
          %v681 = vpow.pop %v680
          %v682 = vmul.f32 %v645, 1.442695
          %v683 = vpow.pop %v682
          %v684 = vmul.f32 %v646, 1.442695
          %v685 = vpow.pop %v684
          %v686 = vmul.f32 %v647, 1.442695
          %v687 = vpow.pop %v686
          %v688 = vmul.f32 %v648, 1.442695
          %v689 = vpow.pop %v688
          %v690 = vmul.f32 %v649, 1.442695
          %v691 = vpow.pop %v690
          %v692 = vmul.f32 %v650, 1.442695
          %v693 = vpow.pop %v692
          %v694 = vmul.f32 %v651, 1.442695
          %v695 = vpow.pop %v694
          %v696 = vmul.f32 %v652, 1.442695
          %v697 = vpow.pop %v696
          %v698 = vmul.f32 %v653, 1.442695
          %v699 = vpow.pop %v698
          %v700 = vmul.f32 %v654, 1.442695
          %v701 = vpow.pop %v700
          %v702 = vmul.f32 %v655, 1.442695
          %v703 = vpow.pop %v702
          %v704 = vmul.f32 %v656, 1.442695
          %v705 = vpow.pop %v704
          %v706 = vmul.f32 %v657, 1.442695
          %v707 = vpow.pop %v706
          %v708 = vmul.f32 %v658, 1.442695
          %v709 = vpow.pop %v708
          %v710 = vmul.f32 %v659, 1.442695
          %v711 = vpow.pop %v710
          %v712 = vmul.f32 %v660, 1.442695
          %v713 = vpow.pop %v712
          %v714 = vmul.f32 %v661, 1.442695
          %v715 = vpow.pop %v714
          %v716 = vmul.f32 %v662, 1.442695
          %v717 = vpow.pop %v716
          %v718 = vmul.f32 %v663, 1.442695
          %v719 = vpow.pop %v718
          %v720 = vmul.f32 %v664, 1.442695
          %v721 = vpow.pop %v720
          %v722 = vmul.f32 %v665, 1.442695
          %v723 = vpow.pop %v722
          %v724 = vmul.f32 %v666, 1.442695
          %v725 = vpow.pop %v724
          %v726 = vmul.f32 %v667, 1.442695
          %v727 = vpow.pop %v726
          %v728 = vmul.f32 %v668, 1.442695
          %v729 = vpow.pop %v728
          %v730 = vmul.f32 %v669, 1.442695
          %v731 = vpow.pop %v730
          %v732 = vmul.f32 %v670, 1.442695
          %v733 = vpow.pop %v732
          %v734 = vmul.f32 %v671, 1.442695
          %v735 = vpow.pop %v734
          %v736 = vadd.f32 %v673, 1.0
          %v737 = vlog2.pop %v736
          %v738 = vmul.f32 %v737, 0.6931472
          %v739 = vmul.f32 -0.5, %v673
          %v740 = vadd.f32 %v739, 1.0
          %v741 = vmul.f32 %v740, %v673
          %v742 = vand.u32 2147483647, %v673
          %vm743 = vcmp.lt.f32.partialorder %v742, 0.0004427343
          %v744 = vsel %vm743, %v741, %v738
          %v745 = vadd.f32 %v675, 1.0
          %v746 = vlog2.pop %v745
          %v747 = vmul.f32 %v746, 0.6931472
          %v748 = vmul.f32 -0.5, %v675
          %v749 = vadd.f32 %v748, 1.0
          %v750 = vmul.f32 %v749, %v675
          %v751 = vand.u32 2147483647, %v675
          %vm752 = vcmp.lt.f32.partialorder %v751, 0.0004427343
          %v753 = vsel %vm752, %v750, %v747
          %v754 = vadd.f32 %v677, 1.0
          %v755 = vlog2.pop %v754
          %v756 = vmul.f32 %v755, 0.6931472
          %v757 = vmul.f32 -0.5, %v677
          %v758 = vadd.f32 %v757, 1.0
          %v759 = vmul.f32 %v758, %v677
          %v760 = vand.u32 2147483647, %v677
          %vm761 = vcmp.lt.f32.partialorder %v760, 0.0004427343
          %v762 = vsel %vm761, %v759, %v756
          %v763 = vadd.f32 %v679, 1.0
          %v764 = vlog2.pop %v763
          %v765 = vmul.f32 %v764, 0.6931472
          %v766 = vmul.f32 -0.5, %v679
          %v767 = vadd.f32 %v766, 1.0
          %v768 = vmul.f32 %v767, %v679
          %v769 = vand.u32 2147483647, %v679
          %vm770 = vcmp.lt.f32.partialorder %v769, 0.0004427343
          %v771 = vsel %vm770, %v768, %v765
          %v772 = vadd.f32 %v681, 1.0
          %v773 = vlog2.pop %v772
          %v774 = vmul.f32 %v773, 0.6931472
          %v775 = vmul.f32 -0.5, %v681
          %v776 = vadd.f32 %v775, 1.0
          %v777 = vmul.f32 %v776, %v681
          %v778 = vand.u32 2147483647, %v681
          %vm779 = vcmp.lt.f32.partialorder %v778, 0.0004427343
          %v780 = vsel %vm779, %v777, %v774
          %v781 = vadd.f32 %v683, 1.0
          %v782 = vlog2.pop %v781
          %v783 = vmul.f32 %v782, 0.6931472
          %v784 = vmul.f32 -0.5, %v683
          %v785 = vadd.f32 %v784, 1.0
          %v786 = vmul.f32 %v785, %v683
          %v787 = vand.u32 2147483647, %v683
          %vm788 = vcmp.lt.f32.partialorder %v787, 0.0004427343
          %v789 = vsel %vm788, %v786, %v783
          %v790 = vadd.f32 %v685, 1.0
          %v791 = vlog2.pop %v790
          %v792 = vmul.f32 %v791, 0.6931472
          %v793 = vmul.f32 -0.5, %v685
          %v794 = vadd.f32 %v793, 1.0
          %v795 = vmul.f32 %v794, %v685
          %v796 = vand.u32 2147483647, %v685
          %vm797 = vcmp.lt.f32.partialorder %v796, 0.0004427343
          %v798 = vsel %vm797, %v795, %v792
          %v799 = vadd.f32 %v687, 1.0
          %v800 = vlog2.pop %v799
          %v801 = vmul.f32 %v800, 0.6931472
          %v802 = vmul.f32 -0.5, %v687
          %v803 = vadd.f32 %v802, 1.0
          %v804 = vmul.f32 %v803, %v687
          %v805 = vand.u32 2147483647, %v687
          %vm806 = vcmp.lt.f32.partialorder %v805, 0.0004427343
          %v807 = vsel %vm806, %v804, %v801
          %v808 = vadd.f32 %v689, 1.0
          %v809 = vlog2.pop %v808
          %v810 = vmul.f32 %v809, 0.6931472
          %v811 = vmul.f32 -0.5, %v689
          %v812 = vadd.f32 %v811, 1.0
          %v813 = vmul.f32 %v812, %v689
          %v814 = vand.u32 2147483647, %v689
          %vm815 = vcmp.lt.f32.partialorder %v814, 0.0004427343
          %v816 = vsel %vm815, %v813, %v810
          %v817 = vadd.f32 %v691, 1.0
          %v818 = vlog2.pop %v817
          %v819 = vmul.f32 %v818, 0.6931472
          %v820 = vmul.f32 -0.5, %v691
          %v821 = vadd.f32 %v820, 1.0
          %v822 = vmul.f32 %v821, %v691
          %v823 = vand.u32 2147483647, %v691
          %vm824 = vcmp.lt.f32.partialorder %v823, 0.0004427343
          %v825 = vsel %vm824, %v822, %v819
          %v826 = vadd.f32 %v693, 1.0
          %v827 = vlog2.pop %v826
          %v828 = vmul.f32 %v827, 0.6931472
          %v829 = vmul.f32 -0.5, %v693
          %v830 = vadd.f32 %v829, 1.0
          %v831 = vmul.f32 %v830, %v693
          %v832 = vand.u32 2147483647, %v693
          %vm833 = vcmp.lt.f32.partialorder %v832, 0.0004427343
          %v834 = vsel %vm833, %v831, %v828
          %v835 = vadd.f32 %v695, 1.0
          %v836 = vlog2.pop %v835
          %v837 = vmul.f32 %v836, 0.6931472
          %v838 = vmul.f32 -0.5, %v695
          %v839 = vadd.f32 %v838, 1.0
          %v840 = vmul.f32 %v839, %v695
          %v841 = vand.u32 2147483647, %v695
          %vm842 = vcmp.lt.f32.partialorder %v841, 0.0004427343
          %v843 = vsel %vm842, %v840, %v837
          %v844 = vadd.f32 %v697, 1.0
          %v845 = vlog2.pop %v844
          %v846 = vmul.f32 %v845, 0.6931472
          %v847 = vmul.f32 -0.5, %v697
          %v848 = vadd.f32 %v847, 1.0
          %v849 = vmul.f32 %v848, %v697
          %v850 = vand.u32 2147483647, %v697
          %vm851 = vcmp.lt.f32.partialorder %v850, 0.0004427343
          %v852 = vsel %vm851, %v849, %v846
          %v853 = vadd.f32 %v699, 1.0
          %v854 = vlog2.pop %v853
          %v855 = vmul.f32 %v854, 0.6931472
          %v856 = vmul.f32 -0.5, %v699
          %v857 = vadd.f32 %v856, 1.0
          %v858 = vmul.f32 %v857, %v699
          %v859 = vand.u32 2147483647, %v699
          %vm860 = vcmp.lt.f32.partialorder %v859, 0.0004427343
          %v861 = vsel %vm860, %v858, %v855
          %v862 = vadd.f32 %v701, 1.0
          %v863 = vlog2.pop %v862
          %v864 = vmul.f32 %v863, 0.6931472
          %v865 = vmul.f32 -0.5, %v701
          %v866 = vadd.f32 %v865, 1.0
          %v867 = vmul.f32 %v866, %v701
          %v868 = vand.u32 2147483647, %v701
          %vm869 = vcmp.lt.f32.partialorder %v868, 0.0004427343
          %v870 = vsel %vm869, %v867, %v864
          %v871 = vadd.f32 %v703, 1.0
          %v872 = vlog2.pop %v871
          %v873 = vmul.f32 %v872, 0.6931472
          %v874 = vmul.f32 -0.5, %v703
          %v875 = vadd.f32 %v874, 1.0
          %v876 = vmul.f32 %v875, %v703
          %v877 = vand.u32 2147483647, %v703
          %vm878 = vcmp.lt.f32.partialorder %v877, 0.0004427343
          %v879 = vsel %vm878, %v876, %v873
          %v880 = vadd.f32 %v705, 1.0
          %v881 = vlog2.pop %v880
          %v882 = vmul.f32 %v881, 0.6931472
          %v883 = vmul.f32 -0.5, %v705
          %v884 = vadd.f32 %v883, 1.0
          %v885 = vmul.f32 %v884, %v705
          %v886 = vand.u32 2147483647, %v705
          %vm887 = vcmp.lt.f32.partialorder %v886, 0.0004427343
          %v888 = vsel %vm887, %v885, %v882
          %v889 = vadd.f32 %v707, 1.0
          %v890 = vlog2.pop %v889
          %v891 = vmul.f32 %v890, 0.6931472
          %v892 = vmul.f32 -0.5, %v707
          %v893 = vadd.f32 %v892, 1.0
          %v894 = vmul.f32 %v893, %v707
          %v895 = vand.u32 2147483647, %v707
          %vm896 = vcmp.lt.f32.partialorder %v895, 0.0004427343
          %v897 = vsel %vm896, %v894, %v891
          %v898 = vadd.f32 %v709, 1.0
          %v899 = vlog2.pop %v898
          %v900 = vmul.f32 %v899, 0.6931472
          %v901 = vmul.f32 -0.5, %v709
          %v902 = vadd.f32 %v901, 1.0
          %v903 = vmul.f32 %v902, %v709
          %v904 = vand.u32 2147483647, %v709
          %vm905 = vcmp.lt.f32.partialorder %v904, 0.0004427343
          %v906 = vsel %vm905, %v903, %v900
          %v907 = vadd.f32 %v711, 1.0
          %v908 = vlog2.pop %v907
          %v909 = vmul.f32 %v908, 0.6931472
          %v910 = vmul.f32 -0.5, %v711
          %v911 = vadd.f32 %v910, 1.0
          %v912 = vmul.f32 %v911, %v711
          %v913 = vand.u32 2147483647, %v711
          %vm914 = vcmp.lt.f32.partialorder %v913, 0.0004427343
          %v915 = vsel %vm914, %v912, %v909
          %v916 = vadd.f32 %v713, 1.0
          %v917 = vlog2.pop %v916
          %v918 = vmul.f32 %v917, 0.6931472
          %v919 = vmul.f32 -0.5, %v713
          %v920 = vadd.f32 %v919, 1.0
          %v921 = vmul.f32 %v920, %v713
          %v922 = vand.u32 2147483647, %v713
          %vm923 = vcmp.lt.f32.partialorder %v922, 0.0004427343
          %v924 = vsel %vm923, %v921, %v918
          %v925 = vadd.f32 %v715, 1.0
          %v926 = vlog2.pop %v925
          %v927 = vmul.f32 %v926, 0.6931472
          %v928 = vmul.f32 -0.5, %v715
          %v929 = vadd.f32 %v928, 1.0
          %v930 = vmul.f32 %v929, %v715
          %v931 = vand.u32 2147483647, %v715
          %vm932 = vcmp.lt.f32.partialorder %v931, 0.0004427343
          %v933 = vsel %vm932, %v930, %v927
          %v934 = vadd.f32 %v717, 1.0
          %v935 = vlog2.pop %v934
          %v936 = vmul.f32 %v935, 0.6931472
          %v937 = vmul.f32 -0.5, %v717
          %v938 = vadd.f32 %v937, 1.0
          %v939 = vmul.f32 %v938, %v717
          %v940 = vand.u32 2147483647, %v717
          %vm941 = vcmp.lt.f32.partialorder %v940, 0.0004427343
          %v942 = vsel %vm941, %v939, %v936
          %v943 = vadd.f32 %v719, 1.0
          %v944 = vlog2.pop %v943
          %v945 = vmul.f32 %v944, 0.6931472
          %v946 = vmul.f32 -0.5, %v719
          %v947 = vadd.f32 %v946, 1.0
          %v948 = vmul.f32 %v947, %v719
          %v949 = vand.u32 2147483647, %v719
          %vm950 = vcmp.lt.f32.partialorder %v949, 0.0004427343
          %v951 = vsel %vm950, %v948, %v945
          %v952 = vadd.f32 %v721, 1.0
          %v953 = vlog2.pop %v952
          %v954 = vmul.f32 %v953, 0.6931472
          %v955 = vmul.f32 -0.5, %v721
          %v956 = vadd.f32 %v955, 1.0
          %v957 = vmul.f32 %v956, %v721
          %v958 = vand.u32 2147483647, %v721
          %vm959 = vcmp.lt.f32.partialorder %v958, 0.0004427343
          %v960 = vsel %vm959, %v957, %v954
          %v961 = vadd.f32 %v723, 1.0
          %v962 = vlog2.pop %v961
          %v963 = vmul.f32 %v962, 0.6931472
          %v964 = vmul.f32 -0.5, %v723
          %v965 = vadd.f32 %v964, 1.0
          %v966 = vmul.f32 %v965, %v723
          %v967 = vand.u32 2147483647, %v723
          %vm968 = vcmp.lt.f32.partialorder %v967, 0.0004427343
          %v969 = vsel %vm968, %v966, %v963
          %v970 = vadd.f32 %v725, 1.0
          %v971 = vlog2.pop %v970
          %v972 = vmul.f32 %v971, 0.6931472
          %v973 = vmul.f32 -0.5, %v725
          %v974 = vadd.f32 %v973, 1.0
          %v975 = vmul.f32 %v974, %v725
          %v976 = vand.u32 2147483647, %v725
          %vm977 = vcmp.lt.f32.partialorder %v976, 0.0004427343
          %v978 = vsel %vm977, %v975, %v972
          %v979 = vadd.f32 %v727, 1.0
          %v980 = vlog2.pop %v979
          %v981 = vmul.f32 %v980, 0.6931472
          %v982 = vmul.f32 -0.5, %v727
          %v983 = vadd.f32 %v982, 1.0
          %v984 = vmul.f32 %v983, %v727
          %v985 = vand.u32 2147483647, %v727
          %vm986 = vcmp.lt.f32.partialorder %v985, 0.0004427343
          %v987 = vsel %vm986, %v984, %v981
          %v988 = vadd.f32 %v729, 1.0
          %v989 = vlog2.pop %v988
          %v990 = vmul.f32 %v989, 0.6931472
          %v991 = vmul.f32 -0.5, %v729
          %v992 = vadd.f32 %v991, 1.0
          %v993 = vmul.f32 %v992, %v729
          %v994 = vand.u32 2147483647, %v729
          %vm995 = vcmp.lt.f32.partialorder %v994, 0.0004427343
          %v996 = vsel %vm995, %v993, %v990
          %v997 = vadd.f32 %v731, 1.0
          %v998 = vlog2.pop %v997
          %v999 = vmul.f32 %v998, 0.6931472
          %v1000 = vmul.f32 -0.5, %v731
          %v1001 = vadd.f32 %v1000, 1.0
          %v1002 = vmul.f32 %v1001, %v731
          %v1003 = vand.u32 2147483647, %v731
          %vm1004 = vcmp.lt.f32.partialorder %v1003, 0.0004427343
          %v1005 = vsel %vm1004, %v1002, %v999
          %v1006 = vadd.f32 %v733, 1.0
          %v1007 = vlog2.pop %v1006
          %v1008 = vmul.f32 %v1007, 0.6931472
          %v1009 = vmul.f32 -0.5, %v733
          %v1010 = vadd.f32 %v1009, 1.0
          %v1011 = vmul.f32 %v1010, %v733
          %v1012 = vand.u32 2147483647, %v733
          %vm1013 = vcmp.lt.f32.partialorder %v1012, 0.0004427343
          %v1014 = vsel %vm1013, %v1011, %v1008
          %v1015 = vadd.f32 %v735, 1.0
          %v1016 = vlog2.pop %v1015
          %v1017 = vmul.f32 %v1016, 0.6931472
          %v1018 = vmul.f32 -0.5, %v735
          %v1019 = vadd.f32 %v1018, 1.0
          %v1020 = vmul.f32 %v1019, %v735
          %v1021 = vand.u32 2147483647, %v735
          %vm1022 = vcmp.lt.f32.partialorder %v1021, 0.0004427343
          %v1023 = vsel %vm1022, %v1020, %v1017
          %v1024 = vadd.f32 %v512, %v744
          %v1025 = vadd.f32 %v513, %v753
          %v1026 = vadd.f32 %v514, %v762
          %v1027 = vadd.f32 %v515, %v771
          %v1028 = vadd.f32 %v516, %v780
          %v1029 = vadd.f32 %v517, %v789
          %v1030 = vadd.f32 %v518, %v798
          %v1031 = vadd.f32 %v519, %v807
          %v1032 = vadd.f32 %v520, %v816
          %v1033 = vadd.f32 %v521, %v825
          %v1034 = vadd.f32 %v522, %v834
          %v1035 = vadd.f32 %v523, %v843
          %v1036 = vadd.f32 %v524, %v852
          %v1037 = vadd.f32 %v525, %v861
          %v1038 = vadd.f32 %v526, %v870
          %v1039 = vadd.f32 %v527, %v879
          %v1040 = vadd.f32 %v528, %v888
          %v1041 = vadd.f32 %v529, %v897
          %v1042 = vadd.f32 %v530, %v906
          %v1043 = vadd.f32 %v531, %v915
          %v1044 = vadd.f32 %v532, %v924
          %v1045 = vadd.f32 %v533, %v933
          %v1046 = vadd.f32 %v534, %v942
          %v1047 = vadd.f32 %v535, %v951
          %v1048 = vadd.f32 %v536, %v960
          %v1049 = vadd.f32 %v537, %v969
          %v1050 = vadd.f32 %v538, %v978
          %v1051 = vadd.f32 %v539, %v987
          %v1052 = vadd.f32 %v540, %v996
          %v1053 = vadd.f32 %v541, %v1005
          %v1054 = vadd.f32 %v542, %v1014
          %v1055 = vadd.f32 %v543, %v1023
          %v1056 = vsel %vm544, %v576, %v1024
          %v1057 = vsel %vm545, %v577, %v1025
          %v1058 = vsel %vm546, %v578, %v1026
          %v1059 = vsel %vm547, %v579, %v1027
          %v1060 = vsel %vm548, %v580, %v1028
          %v1061 = vsel %vm549, %v581, %v1029
          %v1062 = vsel %vm550, %v582, %v1030
          %v1063 = vsel %vm551, %v583, %v1031
          %v1064 = vsel %vm552, %v584, %v1032
          %v1065 = vsel %vm553, %v585, %v1033
          %v1066 = vsel %vm554, %v586, %v1034
          %v1067 = vsel %vm555, %v587, %v1035
          %v1068 = vsel %vm556, %v588, %v1036
          %v1069 = vsel %vm557, %v589, %v1037
          %v1070 = vsel %vm558, %v590, %v1038
          %v1071 = vsel %vm559, %v591, %v1039
          %v1072 = vsel %vm560, %v592, %v1040
          %v1073 = vsel %vm561, %v593, %v1041
          %v1074 = vsel %vm562, %v594, %v1042
          %v1075 = vsel %vm563, %v595, %v1043
          %v1076 = vsel %vm564, %v596, %v1044
          %v1077 = vsel %vm565, %v597, %v1045
          %v1078 = vsel %vm566, %v598, %v1046
          %v1079 = vsel %vm567, %v599, %v1047
          %v1080 = vsel %vm568, %v600, %v1048
          %v1081 = vsel %vm569, %v601, %v1049
          %v1082 = vsel %vm570, %v602, %v1050
          %v1083 = vsel %vm571, %v603, %v1051
          %v1084 = vsel %vm572, %v604, %v1052
          %v1085 = vsel %vm573, %v605, %v1053
          %v1086 = vsel %vm574, %v606, %v1054
          %v1087 = vsel %vm575, %v607, %v1055
          %v1088 = vmul.f32 %v1056, %v480
          %v1089 = vmul.f32 %v1057, %v481
          %v1090 = vmul.f32 %v1058, %v482
          %v1091 = vmul.f32 %v1059, %v483
          %v1092 = vmul.f32 %v1060, %v484
          %v1093 = vmul.f32 %v1061, %v485
          %v1094 = vmul.f32 %v1062, %v486
          %v1095 = vmul.f32 %v1063, %v487
          %v1096 = vmul.f32 %v1064, %v488
          %v1097 = vmul.f32 %v1065, %v489
          %v1098 = vmul.f32 %v1066, %v490
          %v1099 = vmul.f32 %v1067, %v491
          %v1100 = vmul.f32 %v1068, %v492
          %v1101 = vmul.f32 %v1069, %v493
          %v1102 = vmul.f32 %v1070, %v494
          %v1103 = vmul.f32 %v1071, %v495
          %v1104 = vmul.f32 %v1072, %v496
          %v1105 = vmul.f32 %v1073, %v497
          %v1106 = vmul.f32 %v1074, %v498
          %v1107 = vmul.f32 %v1075, %v499
          %v1108 = vmul.f32 %v1076, %v500
          %v1109 = vmul.f32 %v1077, %v501
          %v1110 = vmul.f32 %v1078, %v502
          %v1111 = vmul.f32 %v1079, %v503
          %v1112 = vmul.f32 %v1080, %v504
          %v1113 = vmul.f32 %v1081, %v505
          %v1114 = vmul.f32 %v1082, %v506
          %v1115 = vmul.f32 %v1083, %v507
          %v1116 = vmul.f32 %v1084, %v508
          %v1117 = vmul.f32 %v1085, %v509
          %v1118 = vmul.f32 %v1086, %v510
          %v1119 = vmul.f32 %v1087, %v511
          %v1120 = vadd.f32 %v416, %v1088
          %v1121 = vadd.f32 %v417, %v1089
          %v1122 = vadd.f32 %v418, %v1090
          %v1123 = vadd.f32 %v419, %v1091
          %v1124 = vadd.f32 %v420, %v1092
          %v1125 = vadd.f32 %v421, %v1093
          %v1126 = vadd.f32 %v422, %v1094
          %v1127 = vadd.f32 %v423, %v1095
          %v1128 = vadd.f32 %v424, %v1096
          %v1129 = vadd.f32 %v425, %v1097
          %v1130 = vadd.f32 %v426, %v1098
          %v1131 = vadd.f32 %v427, %v1099
          %v1132 = vadd.f32 %v428, %v1100
          %v1133 = vadd.f32 %v429, %v1101
          %v1134 = vadd.f32 %v430, %v1102
          %v1135 = vadd.f32 %v431, %v1103
          %v1136 = vadd.f32 %v432, %v1104
          %v1137 = vadd.f32 %v433, %v1105
          %v1138 = vadd.f32 %v434, %v1106
          %v1139 = vadd.f32 %v435, %v1107
          %v1140 = vadd.f32 %v436, %v1108
          %v1141 = vadd.f32 %v437, %v1109
          %v1142 = vadd.f32 %v438, %v1110
          %v1143 = vadd.f32 %v439, %v1111
          %v1144 = vadd.f32 %v440, %v1112
          %v1145 = vadd.f32 %v441, %v1113
          %v1146 = vadd.f32 %v442, %v1114
          %v1147 = vadd.f32 %v443, %v1115
          %v1148 = vadd.f32 %v444, %v1116
          %v1149 = vadd.f32 %v445, %v1117
          %v1150 = vadd.f32 %v446, %v1118
          %v1151 = vadd.f32 %v447, %v1119
          %v1152 = vpack.c.bf16 %v1121, %v1120
          %v1153 = vpack.c.bf16 %v1123, %v1122
          %v1154 = vpack.c.bf16 %v1125, %v1124
          %v1155 = vpack.c.bf16 %v1127, %v1126
          %v1156 = vpack.c.bf16 %v1129, %v1128
          %v1157 = vpack.c.bf16 %v1131, %v1130
          %v1158 = vpack.c.bf16 %v1133, %v1132
          %v1159 = vpack.c.bf16 %v1135, %v1134
          %v1160 = vpack.c.bf16 %v1137, %v1136
          %v1161 = vpack.c.bf16 %v1139, %v1138
          %v1162 = vpack.c.bf16 %v1141, %v1140
          %v1163 = vpack.c.bf16 %v1143, %v1142
          %v1164 = vpack.c.bf16 %v1145, %v1144
          %v1165 = vpack.c.bf16 %v1147, %v1146
          %v1166 = vpack.c.bf16 %v1149, %v1148
          %v1167 = vpack.c.bf16 %v1151, %v1150
          %1168 = vst [vmem:[#allocation2] sm:$0xff] %v1152
          %1169 = vst [vmem:[#allocation2 + $0x8] sm:$0xff] %v1153
          %1170 = vst [vmem:[#allocation2 + $0x10] sm:$0xff] %v1154
          %1171 = vst [vmem:[#allocation2 + $0x18] sm:$0xff] %v1155
          %1172 = vst [vmem:[#allocation2 + $0x20] sm:$0xff] %v1156
          %1173 = vst [vmem:[#allocation2 + $0x28] sm:$0xff] %v1157
          %1174 = vst [vmem:[#allocation2 + $0x30] sm:$0xff] %v1158
          %1175 = vst [vmem:[#allocation2 + $0x38] sm:$0xff] %v1159
          %1176 = vst [vmem:[#allocation2 + $0x40] sm:$0xff] %v1160
          %1177 = vst [vmem:[#allocation2 + $0x48] sm:$0xff] %v1161
          %1178 = vst [vmem:[#allocation2 + $0x50] sm:$0xff] %v1162
          %1179 = vst [vmem:[#allocation2 + $0x58] sm:$0xff] %v1163
          %1180 = vst [vmem:[#allocation2 + $0x60] sm:$0xff] %v1164
          %1181 = vst [vmem:[#allocation2 + $0x68] sm:$0xff] %v1165
          %1182 = vst [vmem:[#allocation2 + $0x70] sm:$0xff] %v1166
          %1183 = vst [vmem:[#allocation2 + $0x78] sm:$0xff] %v1167
          %s1184 = sadd.s32 %s372, 64
          %s1185 = smul.addr %s1184, 8
          %s1186 = scalar_lea.hbm %s1, %s1185
          %s1187 = sshll.u32 %s1186, 4
          %s1188 = int_to_ptr.hbm [resolvable:$true] %s1187
          %s1189 = sshll.u32 [#allocation4], 4
          %s1190 = int_to_ptr.vmem [resolvable:$true] %s1189
          %1194 = dma.hbm_to_vmem [thread:$0]  %s1188, 4096, %s1190, [#allocation5], 512, 256, 16
          %s1195 = smul.addr %s1184, 8
          %s1196 = scalar_lea.hbm %s2, %s1195
          %s1197 = sshll.u32 %s1196, 4
          %s1198 = int_to_ptr.hbm [resolvable:$true] %s1197
          %s1199 = sshll.u32 %s386, 4
          %s1200 = int_to_ptr.vmem [resolvable:$true] %s1199
          %1204 = dma.hbm_to_vmem [thread:$0]  %s1198, 4096, %s1200, %s387, 512, 256, 16
          %s1205 = smul.addr %s1184, 8
          %s1206 = scalar_lea.hbm %s3, %s1205
          %s1207 = sshll.u32 %s1206, 4
          %s1208 = int_to_ptr.hbm [resolvable:$true] %s1207
          %s1209 = sshll.u32 %s398, 4
          %s1210 = int_to_ptr.vmem [resolvable:$true] %s1209
          %1214 = dma.hbm_to_vmem [thread:$0]  %s1208, 4096, %s1210, %s399, 512, 256, 16
          %s1215 = sshll.u32 %s409, 4
          %1216 = dma.done [#allocation5], %s1215
          %s1217 = sshll.u32 %s409, 4
          %1218 = dma.done %s387, %s1217
          %s1219 = sshll.u32 %s409, 4
          %1220 = dma.done %s399, %s1219
          %v1221 = vld [vmem:[#allocation4] sm:$0xff]
          %v1222 = vld [vmem:[#allocation4 + $0x8] sm:$0xff]
          %v1223 = vld [vmem:[#allocation4 + $0x10] sm:$0xff]
          %v1224 = vld [vmem:[#allocation4 + $0x18] sm:$0xff]
          %v1225 = vld [vmem:[#allocation4 + $0x20] sm:$0xff]
          %v1226 = vld [vmem:[#allocation4 + $0x28] sm:$0xff]
          %v1227 = vld [vmem:[#allocation4 + $0x30] sm:$0xff]
          %v1228 = vld [vmem:[#allocation4 + $0x38] sm:$0xff]
          %v1229 = vld [vmem:[#allocation4 + $0x40] sm:$0xff]
          %v1230 = vld [vmem:[#allocation4 + $0x48] sm:$0xff]
          %v1231 = vld [vmem:[#allocation4 + $0x50] sm:$0xff]
          %v1232 = vld [vmem:[#allocation4 + $0x58] sm:$0xff]
          %v1233 = vld [vmem:[#allocation4 + $0x60] sm:$0xff]
          %v1234 = vld [vmem:[#allocation4 + $0x68] sm:$0xff]
          %v1235 = vld [vmem:[#allocation4 + $0x70] sm:$0xff]
          %v1236 = vld [vmem:[#allocation4 + $0x78] sm:$0xff]
          %v1237 = vld [vmem:[#allocation4 + $0x80] sm:$0xff]
          %v1238 = vld [vmem:[#allocation4 + $0x88] sm:$0xff]
          %v1239 = vld [vmem:[#allocation4 + $0x90] sm:$0xff]
          %v1240 = vld [vmem:[#allocation4 + $0x98] sm:$0xff]
          %v1241 = vld [vmem:[#allocation4 + $0xa0] sm:$0xff]
          %v1242 = vld [vmem:[#allocation4 + $0xa8] sm:$0xff]
          %v1243 = vld [vmem:[#allocation4 + $0xb0] sm:$0xff]
          %v1244 = vld [vmem:[#allocation4 + $0xb8] sm:$0xff]
          %v1245 = vld [vmem:[#allocation4 + $0xc0] sm:$0xff]
          %v1246 = vld [vmem:[#allocation4 + $0xc8] sm:$0xff]
          %v1247 = vld [vmem:[#allocation4 + $0xd0] sm:$0xff]
          %v1248 = vld [vmem:[#allocation4 + $0xd8] sm:$0xff]
          %v1249 = vld [vmem:[#allocation4 + $0xe0] sm:$0xff]
          %v1250 = vld [vmem:[#allocation4 + $0xe8] sm:$0xff]
          %v1251 = vld [vmem:[#allocation4 + $0xf0] sm:$0xff]
          %v1252 = vld [vmem:[#allocation4 + $0xf8] sm:$0xff]
          %v1253 = vld [vmem:[%s386] sm:$0xff]
          %v1254 = vld [vmem:[%s386 + $0x8] sm:$0xff]
          %v1255 = vld [vmem:[%s386 + $0x10] sm:$0xff]
          %v1256 = vld [vmem:[%s386 + $0x18] sm:$0xff]
          %v1257 = vld [vmem:[%s386 + $0x20] sm:$0xff]
          %v1258 = vld [vmem:[%s386 + $0x28] sm:$0xff]
          %v1259 = vld [vmem:[%s386 + $0x30] sm:$0xff]
          %v1260 = vld [vmem:[%s386 + $0x38] sm:$0xff]
          %v1261 = vld [vmem:[%s386 + $0x40] sm:$0xff]
          %v1262 = vld [vmem:[%s386 + $0x48] sm:$0xff]
          %v1263 = vld [vmem:[%s386 + $0x50] sm:$0xff]
          %v1264 = vld [vmem:[%s386 + $0x58] sm:$0xff]
          %v1265 = vld [vmem:[%s386 + $0x60] sm:$0xff]
          %v1266 = vld [vmem:[%s386 + $0x68] sm:$0xff]
          %v1267 = vld [vmem:[%s386 + $0x70] sm:$0xff]
          %v1268 = vld [vmem:[%s386 + $0x78] sm:$0xff]
          %v1269 = vld [vmem:[%s386 + $0x80] sm:$0xff]
          %v1270 = vld [vmem:[%s386 + $0x88] sm:$0xff]
          %v1271 = vld [vmem:[%s386 + $0x90] sm:$0xff]
          %v1272 = vld [vmem:[%s386 + $0x98] sm:$0xff]
          %v1273 = vld [vmem:[%s386 + $0xa0] sm:$0xff]
          %v1274 = vld [vmem:[%s386 + $0xa8] sm:$0xff]
          %v1275 = vld [vmem:[%s386 + $0xb0] sm:$0xff]
          %v1276 = vld [vmem:[%s386 + $0xb8] sm:$0xff]
          %v1277 = vld [vmem:[%s386 + $0xc0] sm:$0xff]
          %v1278 = vld [vmem:[%s386 + $0xc8] sm:$0xff]
          %v1279 = vld [vmem:[%s386 + $0xd0] sm:$0xff]
          %v1280 = vld [vmem:[%s386 + $0xd8] sm:$0xff]
          %v1281 = vld [vmem:[%s386 + $0xe0] sm:$0xff]
          %v1282 = vld [vmem:[%s386 + $0xe8] sm:$0xff]
          %v1283 = vld [vmem:[%s386 + $0xf0] sm:$0xff]
          %v1284 = vld [vmem:[%s386 + $0xf8] sm:$0xff]
          %v1285 = vld [vmem:[%s398] sm:$0xff]
          %v1286 = vld [vmem:[%s398 + $0x8] sm:$0xff]
          %v1287 = vld [vmem:[%s398 + $0x10] sm:$0xff]
          %v1288 = vld [vmem:[%s398 + $0x18] sm:$0xff]
          %v1289 = vld [vmem:[%s398 + $0x20] sm:$0xff]
          %v1290 = vld [vmem:[%s398 + $0x28] sm:$0xff]
          %v1291 = vld [vmem:[%s398 + $0x30] sm:$0xff]
          %v1292 = vld [vmem:[%s398 + $0x38] sm:$0xff]
          %v1293 = vld [vmem:[%s398 + $0x40] sm:$0xff]
          %v1294 = vld [vmem:[%s398 + $0x48] sm:$0xff]
          %v1295 = vld [vmem:[%s398 + $0x50] sm:$0xff]
          %v1296 = vld [vmem:[%s398 + $0x58] sm:$0xff]
          %v1297 = vld [vmem:[%s398 + $0x60] sm:$0xff]
          %v1298 = vld [vmem:[%s398 + $0x68] sm:$0xff]
          %v1299 = vld [vmem:[%s398 + $0x70] sm:$0xff]
          %v1300 = vld [vmem:[%s398 + $0x78] sm:$0xff]
          %v1301 = vld [vmem:[%s398 + $0x80] sm:$0xff]
          %v1302 = vld [vmem:[%s398 + $0x88] sm:$0xff]
          %v1303 = vld [vmem:[%s398 + $0x90] sm:$0xff]
          %v1304 = vld [vmem:[%s398 + $0x98] sm:$0xff]
          %v1305 = vld [vmem:[%s398 + $0xa0] sm:$0xff]
          %v1306 = vld [vmem:[%s398 + $0xa8] sm:$0xff]
          %v1307 = vld [vmem:[%s398 + $0xb0] sm:$0xff]
          %v1308 = vld [vmem:[%s398 + $0xb8] sm:$0xff]
          %v1309 = vld [vmem:[%s398 + $0xc0] sm:$0xff]
          %v1310 = vld [vmem:[%s398 + $0xc8] sm:$0xff]
          %v1311 = vld [vmem:[%s398 + $0xd0] sm:$0xff]
          %v1312 = vld [vmem:[%s398 + $0xd8] sm:$0xff]
          %v1313 = vld [vmem:[%s398 + $0xe0] sm:$0xff]
          %v1314 = vld [vmem:[%s398 + $0xe8] sm:$0xff]
          %v1315 = vld [vmem:[%s398 + $0xf0] sm:$0xff]
          %v1316 = vld [vmem:[%s398 + $0xf8] sm:$0xff]
          %v1317 = vmax.f32 %v1253, 0.0
          %v1318 = vmax.f32 %v1254, 0.0
          %v1319 = vmax.f32 %v1255, 0.0
          %v1320 = vmax.f32 %v1256, 0.0
          %v1321 = vmax.f32 %v1257, 0.0
          %v1322 = vmax.f32 %v1258, 0.0
          %v1323 = vmax.f32 %v1259, 0.0
          %v1324 = vmax.f32 %v1260, 0.0
          %v1325 = vmax.f32 %v1261, 0.0
          %v1326 = vmax.f32 %v1262, 0.0
          %v1327 = vmax.f32 %v1263, 0.0
          %v1328 = vmax.f32 %v1264, 0.0
          %v1329 = vmax.f32 %v1265, 0.0
          %v1330 = vmax.f32 %v1266, 0.0
          %v1331 = vmax.f32 %v1267, 0.0
          %v1332 = vmax.f32 %v1268, 0.0
          %v1333 = vmax.f32 %v1269, 0.0
          %v1334 = vmax.f32 %v1270, 0.0
          %v1335 = vmax.f32 %v1271, 0.0
          %v1336 = vmax.f32 %v1272, 0.0
          %v1337 = vmax.f32 %v1273, 0.0
          %v1338 = vmax.f32 %v1274, 0.0
          %v1339 = vmax.f32 %v1275, 0.0
          %v1340 = vmax.f32 %v1276, 0.0
          %v1341 = vmax.f32 %v1277, 0.0
          %v1342 = vmax.f32 %v1278, 0.0
          %v1343 = vmax.f32 %v1279, 0.0
          %v1344 = vmax.f32 %v1280, 0.0
          %v1345 = vmax.f32 %v1281, 0.0
          %v1346 = vmax.f32 %v1282, 0.0
          %v1347 = vmax.f32 %v1283, 0.0
          %v1348 = vmax.f32 %v1284, 0.0
          %vm1349 = vcmp.ne.f32.partialorder %v1253, %v1253
          %vm1350 = vcmp.ne.f32.partialorder %v1254, %v1254
          %vm1351 = vcmp.ne.f32.partialorder %v1255, %v1255
          %vm1352 = vcmp.ne.f32.partialorder %v1256, %v1256
          %vm1353 = vcmp.ne.f32.partialorder %v1257, %v1257
          %vm1354 = vcmp.ne.f32.partialorder %v1258, %v1258
          %vm1355 = vcmp.ne.f32.partialorder %v1259, %v1259
          %vm1356 = vcmp.ne.f32.partialorder %v1260, %v1260
          %vm1357 = vcmp.ne.f32.partialorder %v1261, %v1261
          %vm1358 = vcmp.ne.f32.partialorder %v1262, %v1262
          %vm1359 = vcmp.ne.f32.partialorder %v1263, %v1263
          %vm1360 = vcmp.ne.f32.partialorder %v1264, %v1264
          %vm1361 = vcmp.ne.f32.partialorder %v1265, %v1265
          %vm1362 = vcmp.ne.f32.partialorder %v1266, %v1266
          %vm1363 = vcmp.ne.f32.partialorder %v1267, %v1267
          %vm1364 = vcmp.ne.f32.partialorder %v1268, %v1268
          %vm1365 = vcmp.ne.f32.partialorder %v1269, %v1269
          %vm1366 = vcmp.ne.f32.partialorder %v1270, %v1270
          %vm1367 = vcmp.ne.f32.partialorder %v1271, %v1271
          %vm1368 = vcmp.ne.f32.partialorder %v1272, %v1272
          %vm1369 = vcmp.ne.f32.partialorder %v1273, %v1273
          %vm1370 = vcmp.ne.f32.partialorder %v1274, %v1274
          %vm1371 = vcmp.ne.f32.partialorder %v1275, %v1275
          %vm1372 = vcmp.ne.f32.partialorder %v1276, %v1276
          %vm1373 = vcmp.ne.f32.partialorder %v1277, %v1277
          %vm1374 = vcmp.ne.f32.partialorder %v1278, %v1278
          %vm1375 = vcmp.ne.f32.partialorder %v1279, %v1279
          %vm1376 = vcmp.ne.f32.partialorder %v1280, %v1280
          %vm1377 = vcmp.ne.f32.partialorder %v1281, %v1281
          %vm1378 = vcmp.ne.f32.partialorder %v1282, %v1282
          %vm1379 = vcmp.ne.f32.partialorder %v1283, %v1283
          %vm1380 = vcmp.ne.f32.partialorder %v1284, %v1284
          %v1381 = vadd.f32 %v1253, 0.0
          %v1382 = vadd.f32 %v1254, 0.0
          %v1383 = vadd.f32 %v1255, 0.0
          %v1384 = vadd.f32 %v1256, 0.0
          %v1385 = vadd.f32 %v1257, 0.0
          %v1386 = vadd.f32 %v1258, 0.0
          %v1387 = vadd.f32 %v1259, 0.0
          %v1388 = vadd.f32 %v1260, 0.0
          %v1389 = vadd.f32 %v1261, 0.0
          %v1390 = vadd.f32 %v1262, 0.0
          %v1391 = vadd.f32 %v1263, 0.0
          %v1392 = vadd.f32 %v1264, 0.0
          %v1393 = vadd.f32 %v1265, 0.0
          %v1394 = vadd.f32 %v1266, 0.0
          %v1395 = vadd.f32 %v1267, 0.0
          %v1396 = vadd.f32 %v1268, 0.0
          %v1397 = vadd.f32 %v1269, 0.0
          %v1398 = vadd.f32 %v1270, 0.0
          %v1399 = vadd.f32 %v1271, 0.0
          %v1400 = vadd.f32 %v1272, 0.0
          %v1401 = vadd.f32 %v1273, 0.0
          %v1402 = vadd.f32 %v1274, 0.0
          %v1403 = vadd.f32 %v1275, 0.0
          %v1404 = vadd.f32 %v1276, 0.0
          %v1405 = vadd.f32 %v1277, 0.0
          %v1406 = vadd.f32 %v1278, 0.0
          %v1407 = vadd.f32 %v1279, 0.0
          %v1408 = vadd.f32 %v1280, 0.0
          %v1409 = vadd.f32 %v1281, 0.0
          %v1410 = vadd.f32 %v1282, 0.0
          %v1411 = vadd.f32 %v1283, 0.0
          %v1412 = vadd.f32 %v1284, 0.0
          %v1413 = vand.u32 2147483647, %v1253
          %v1414 = vand.u32 2147483647, %v1254
          %v1415 = vand.u32 2147483647, %v1255
          %v1416 = vand.u32 2147483647, %v1256
          %v1417 = vand.u32 2147483647, %v1257
          %v1418 = vand.u32 2147483647, %v1258
          %v1419 = vand.u32 2147483647, %v1259
          %v1420 = vand.u32 2147483647, %v1260
          %v1421 = vand.u32 2147483647, %v1261
          %v1422 = vand.u32 2147483647, %v1262
          %v1423 = vand.u32 2147483647, %v1263
          %v1424 = vand.u32 2147483647, %v1264
          %v1425 = vand.u32 2147483647, %v1265
          %v1426 = vand.u32 2147483647, %v1266
          %v1427 = vand.u32 2147483647, %v1267
          %v1428 = vand.u32 2147483647, %v1268
          %v1429 = vand.u32 2147483647, %v1269
          %v1430 = vand.u32 2147483647, %v1270
          %v1431 = vand.u32 2147483647, %v1271
          %v1432 = vand.u32 2147483647, %v1272
          %v1433 = vand.u32 2147483647, %v1273
          %v1434 = vand.u32 2147483647, %v1274
          %v1435 = vand.u32 2147483647, %v1275
          %v1436 = vand.u32 2147483647, %v1276
          %v1437 = vand.u32 2147483647, %v1277
          %v1438 = vand.u32 2147483647, %v1278
          %v1439 = vand.u32 2147483647, %v1279
          %v1440 = vand.u32 2147483647, %v1280
          %v1441 = vand.u32 2147483647, %v1281
          %v1442 = vand.u32 2147483647, %v1282
          %v1443 = vand.u32 2147483647, %v1283
          %v1444 = vand.u32 2147483647, %v1284
          %v1445 = vsub.f32 0.0, %v1413
          %v1446 = vsub.f32 0.0, %v1414
          %v1447 = vsub.f32 0.0, %v1415
          %v1448 = vsub.f32 0.0, %v1416
          %v1449 = vsub.f32 0.0, %v1417
          %v1450 = vsub.f32 0.0, %v1418
          %v1451 = vsub.f32 0.0, %v1419
          %v1452 = vsub.f32 0.0, %v1420
          %v1453 = vsub.f32 0.0, %v1421
          %v1454 = vsub.f32 0.0, %v1422
          %v1455 = vsub.f32 0.0, %v1423
          %v1456 = vsub.f32 0.0, %v1424
          %v1457 = vsub.f32 0.0, %v1425
          %v1458 = vsub.f32 0.0, %v1426
          %v1459 = vsub.f32 0.0, %v1427
          %v1460 = vsub.f32 0.0, %v1428
          %v1461 = vsub.f32 0.0, %v1429
          %v1462 = vsub.f32 0.0, %v1430
          %v1463 = vsub.f32 0.0, %v1431
          %v1464 = vsub.f32 0.0, %v1432
          %v1465 = vsub.f32 0.0, %v1433
          %v1466 = vsub.f32 0.0, %v1434
          %v1467 = vsub.f32 0.0, %v1435
          %v1468 = vsub.f32 0.0, %v1436
          %v1469 = vsub.f32 0.0, %v1437
          %v1470 = vsub.f32 0.0, %v1438
          %v1471 = vsub.f32 0.0, %v1439
          %v1472 = vsub.f32 0.0, %v1440
          %v1473 = vsub.f32 0.0, %v1441
          %v1474 = vsub.f32 0.0, %v1442
          %v1475 = vsub.f32 0.0, %v1443
          %v1476 = vsub.f32 0.0, %v1444
          %v1477 = vmul.f32 %v1445, 1.442695
          %v1478 = vpow.pop %v1477
          %v1479 = vmul.f32 %v1446, 1.442695
          %v1480 = vpow.pop %v1479
          %v1481 = vmul.f32 %v1447, 1.442695
          %v1482 = vpow.pop %v1481
          %v1483 = vmul.f32 %v1448, 1.442695
          %v1484 = vpow.pop %v1483
          %v1485 = vmul.f32 %v1449, 1.442695
          %v1486 = vpow.pop %v1485
          %v1487 = vmul.f32 %v1450, 1.442695
          %v1488 = vpow.pop %v1487
          %v1489 = vmul.f32 %v1451, 1.442695
          %v1490 = vpow.pop %v1489
          %v1491 = vmul.f32 %v1452, 1.442695
          %v1492 = vpow.pop %v1491
          %v1493 = vmul.f32 %v1453, 1.442695
          %v1494 = vpow.pop %v1493
          %v1495 = vmul.f32 %v1454, 1.442695
          %v1496 = vpow.pop %v1495
          %v1497 = vmul.f32 %v1455, 1.442695
          %v1498 = vpow.pop %v1497
          %v1499 = vmul.f32 %v1456, 1.442695
          %v1500 = vpow.pop %v1499
          %v1501 = vmul.f32 %v1457, 1.442695
          %v1502 = vpow.pop %v1501
          %v1503 = vmul.f32 %v1458, 1.442695
          %v1504 = vpow.pop %v1503
          %v1505 = vmul.f32 %v1459, 1.442695
          %v1506 = vpow.pop %v1505
          %v1507 = vmul.f32 %v1460, 1.442695
          %v1508 = vpow.pop %v1507
          %v1509 = vmul.f32 %v1461, 1.442695
          %v1510 = vpow.pop %v1509
          %v1511 = vmul.f32 %v1462, 1.442695
          %v1512 = vpow.pop %v1511
          %v1513 = vmul.f32 %v1463, 1.442695
          %v1514 = vpow.pop %v1513
          %v1515 = vmul.f32 %v1464, 1.442695
          %v1516 = vpow.pop %v1515
          %v1517 = vmul.f32 %v1465, 1.442695
          %v1518 = vpow.pop %v1517
          %v1519 = vmul.f32 %v1466, 1.442695
          %v1520 = vpow.pop %v1519
          %v1521 = vmul.f32 %v1467, 1.442695
          %v1522 = vpow.pop %v1521
          %v1523 = vmul.f32 %v1468, 1.442695
          %v1524 = vpow.pop %v1523
          %v1525 = vmul.f32 %v1469, 1.442695
          %v1526 = vpow.pop %v1525
          %v1527 = vmul.f32 %v1470, 1.442695
          %v1528 = vpow.pop %v1527
          %v1529 = vmul.f32 %v1471, 1.442695
          %v1530 = vpow.pop %v1529
          %v1531 = vmul.f32 %v1472, 1.442695
          %v1532 = vpow.pop %v1531
          %v1533 = vmul.f32 %v1473, 1.442695
          %v1534 = vpow.pop %v1533
          %v1535 = vmul.f32 %v1474, 1.442695
          %v1536 = vpow.pop %v1535
          %v1537 = vmul.f32 %v1475, 1.442695
          %v1538 = vpow.pop %v1537
          %v1539 = vmul.f32 %v1476, 1.442695
          %v1540 = vpow.pop %v1539
          %v1541 = vadd.f32 %v1478, 1.0
          %v1542 = vlog2.pop %v1541
          %v1543 = vmul.f32 %v1542, 0.6931472
          %v1544 = vmul.f32 -0.5, %v1478
          %v1545 = vadd.f32 %v1544, 1.0
          %v1546 = vmul.f32 %v1545, %v1478
          %v1547 = vand.u32 2147483647, %v1478
          %vm1548 = vcmp.lt.f32.partialorder %v1547, 0.0004427343
          %v1549 = vsel %vm1548, %v1546, %v1543
          %v1550 = vadd.f32 %v1480, 1.0
          %v1551 = vlog2.pop %v1550
          %v1552 = vmul.f32 %v1551, 0.6931472
          %v1553 = vmul.f32 -0.5, %v1480
          %v1554 = vadd.f32 %v1553, 1.0
          %v1555 = vmul.f32 %v1554, %v1480
          %v1556 = vand.u32 2147483647, %v1480
          %vm1557 = vcmp.lt.f32.partialorder %v1556, 0.0004427343
          %v1558 = vsel %vm1557, %v1555, %v1552
          %v1559 = vadd.f32 %v1482, 1.0
          %v1560 = vlog2.pop %v1559
          %v1561 = vmul.f32 %v1560, 0.6931472
          %v1562 = vmul.f32 -0.5, %v1482
          %v1563 = vadd.f32 %v1562, 1.0
          %v1564 = vmul.f32 %v1563, %v1482
          %v1565 = vand.u32 2147483647, %v1482
          %vm1566 = vcmp.lt.f32.partialorder %v1565, 0.0004427343
          %v1567 = vsel %vm1566, %v1564, %v1561
          %v1568 = vadd.f32 %v1484, 1.0
          %v1569 = vlog2.pop %v1568
          %v1570 = vmul.f32 %v1569, 0.6931472
          %v1571 = vmul.f32 -0.5, %v1484
          %v1572 = vadd.f32 %v1571, 1.0
          %v1573 = vmul.f32 %v1572, %v1484
          %v1574 = vand.u32 2147483647, %v1484
          %vm1575 = vcmp.lt.f32.partialorder %v1574, 0.0004427343
          %v1576 = vsel %vm1575, %v1573, %v1570
          %v1577 = vadd.f32 %v1486, 1.0
          %v1578 = vlog2.pop %v1577
          %v1579 = vmul.f32 %v1578, 0.6931472
          %v1580 = vmul.f32 -0.5, %v1486
          %v1581 = vadd.f32 %v1580, 1.0
          %v1582 = vmul.f32 %v1581, %v1486
          %v1583 = vand.u32 2147483647, %v1486
          %vm1584 = vcmp.lt.f32.partialorder %v1583, 0.0004427343
          %v1585 = vsel %vm1584, %v1582, %v1579
          %v1586 = vadd.f32 %v1488, 1.0
          %v1587 = vlog2.pop %v1586
          %v1588 = vmul.f32 %v1587, 0.6931472
          %v1589 = vmul.f32 -0.5, %v1488
          %v1590 = vadd.f32 %v1589, 1.0
          %v1591 = vmul.f32 %v1590, %v1488
          %v1592 = vand.u32 2147483647, %v1488
          %vm1593 = vcmp.lt.f32.partialorder %v1592, 0.0004427343
          %v1594 = vsel %vm1593, %v1591, %v1588
          %v1595 = vadd.f32 %v1490, 1.0
          %v1596 = vlog2.pop %v1595
          %v1597 = vmul.f32 %v1596, 0.6931472
          %v1598 = vmul.f32 -0.5, %v1490
          %v1599 = vadd.f32 %v1598, 1.0
          %v1600 = vmul.f32 %v1599, %v1490
          %v1601 = vand.u32 2147483647, %v1490
          %vm1602 = vcmp.lt.f32.partialorder %v1601, 0.0004427343
          %v1603 = vsel %vm1602, %v1600, %v1597
          %v1604 = vadd.f32 %v1492, 1.0
          %v1605 = vlog2.pop %v1604
          %v1606 = vmul.f32 %v1605, 0.6931472
          %v1607 = vmul.f32 -0.5, %v1492
          %v1608 = vadd.f32 %v1607, 1.0
          %v1609 = vmul.f32 %v1608, %v1492
          %v1610 = vand.u32 2147483647, %v1492
          %vm1611 = vcmp.lt.f32.partialorder %v1610, 0.0004427343
          %v1612 = vsel %vm1611, %v1609, %v1606
          %v1613 = vadd.f32 %v1494, 1.0
          %v1614 = vlog2.pop %v1613
          %v1615 = vmul.f32 %v1614, 0.6931472
          %v1616 = vmul.f32 -0.5, %v1494
          %v1617 = vadd.f32 %v1616, 1.0
          %v1618 = vmul.f32 %v1617, %v1494
          %v1619 = vand.u32 2147483647, %v1494
          %vm1620 = vcmp.lt.f32.partialorder %v1619, 0.0004427343
          %v1621 = vsel %vm1620, %v1618, %v1615
          %v1622 = vadd.f32 %v1496, 1.0
          %v1623 = vlog2.pop %v1622
          %v1624 = vmul.f32 %v1623, 0.6931472
          %v1625 = vmul.f32 -0.5, %v1496
          %v1626 = vadd.f32 %v1625, 1.0
          %v1627 = vmul.f32 %v1626, %v1496
          %v1628 = vand.u32 2147483647, %v1496
          %vm1629 = vcmp.lt.f32.partialorder %v1628, 0.0004427343
          %v1630 = vsel %vm1629, %v1627, %v1624
          %v1631 = vadd.f32 %v1498, 1.0
          %v1632 = vlog2.pop %v1631
          %v1633 = vmul.f32 %v1632, 0.6931472
          %v1634 = vmul.f32 -0.5, %v1498
          %v1635 = vadd.f32 %v1634, 1.0
          %v1636 = vmul.f32 %v1635, %v1498
          %v1637 = vand.u32 2147483647, %v1498
          %vm1638 = vcmp.lt.f32.partialorder %v1637, 0.0004427343
          %v1639 = vsel %vm1638, %v1636, %v1633
          %v1640 = vadd.f32 %v1500, 1.0
          %v1641 = vlog2.pop %v1640
          %v1642 = vmul.f32 %v1641, 0.6931472
          %v1643 = vmul.f32 -0.5, %v1500
          %v1644 = vadd.f32 %v1643, 1.0
          %v1645 = vmul.f32 %v1644, %v1500
          %v1646 = vand.u32 2147483647, %v1500
          %vm1647 = vcmp.lt.f32.partialorder %v1646, 0.0004427343
          %v1648 = vsel %vm1647, %v1645, %v1642
          %v1649 = vadd.f32 %v1502, 1.0
          %v1650 = vlog2.pop %v1649
          %v1651 = vmul.f32 %v1650, 0.6931472
          %v1652 = vmul.f32 -0.5, %v1502
          %v1653 = vadd.f32 %v1652, 1.0
          %v1654 = vmul.f32 %v1653, %v1502
          %v1655 = vand.u32 2147483647, %v1502
          %vm1656 = vcmp.lt.f32.partialorder %v1655, 0.0004427343
          %v1657 = vsel %vm1656, %v1654, %v1651
          %v1658 = vadd.f32 %v1504, 1.0
          %v1659 = vlog2.pop %v1658
          %v1660 = vmul.f32 %v1659, 0.6931472
          %v1661 = vmul.f32 -0.5, %v1504
          %v1662 = vadd.f32 %v1661, 1.0
          %v1663 = vmul.f32 %v1662, %v1504
          %v1664 = vand.u32 2147483647, %v1504
          %vm1665 = vcmp.lt.f32.partialorder %v1664, 0.0004427343
          %v1666 = vsel %vm1665, %v1663, %v1660
          %v1667 = vadd.f32 %v1506, 1.0
          %v1668 = vlog2.pop %v1667
          %v1669 = vmul.f32 %v1668, 0.6931472
          %v1670 = vmul.f32 -0.5, %v1506
          %v1671 = vadd.f32 %v1670, 1.0
          %v1672 = vmul.f32 %v1671, %v1506
          %v1673 = vand.u32 2147483647, %v1506
          %vm1674 = vcmp.lt.f32.partialorder %v1673, 0.0004427343
          %v1675 = vsel %vm1674, %v1672, %v1669
          %v1676 = vadd.f32 %v1508, 1.0
          %v1677 = vlog2.pop %v1676
          %v1678 = vmul.f32 %v1677, 0.6931472
          %v1679 = vmul.f32 -0.5, %v1508
          %v1680 = vadd.f32 %v1679, 1.0
          %v1681 = vmul.f32 %v1680, %v1508
          %v1682 = vand.u32 2147483647, %v1508
          %vm1683 = vcmp.lt.f32.partialorder %v1682, 0.0004427343
          %v1684 = vsel %vm1683, %v1681, %v1678
          %v1685 = vadd.f32 %v1510, 1.0
          %v1686 = vlog2.pop %v1685
          %v1687 = vmul.f32 %v1686, 0.6931472
          %v1688 = vmul.f32 -0.5, %v1510
          %v1689 = vadd.f32 %v1688, 1.0
          %v1690 = vmul.f32 %v1689, %v1510
          %v1691 = vand.u32 2147483647, %v1510
          %vm1692 = vcmp.lt.f32.partialorder %v1691, 0.0004427343
          %v1693 = vsel %vm1692, %v1690, %v1687
          %v1694 = vadd.f32 %v1512, 1.0
          %v1695 = vlog2.pop %v1694
          %v1696 = vmul.f32 %v1695, 0.6931472
          %v1697 = vmul.f32 -0.5, %v1512
          %v1698 = vadd.f32 %v1697, 1.0
          %v1699 = vmul.f32 %v1698, %v1512
          %v1700 = vand.u32 2147483647, %v1512
          %vm1701 = vcmp.lt.f32.partialorder %v1700, 0.0004427343
          %v1702 = vsel %vm1701, %v1699, %v1696
          %v1703 = vadd.f32 %v1514, 1.0
          %v1704 = vlog2.pop %v1703
          %v1705 = vmul.f32 %v1704, 0.6931472
          %v1706 = vmul.f32 -0.5, %v1514
          %v1707 = vadd.f32 %v1706, 1.0
          %v1708 = vmul.f32 %v1707, %v1514
          %v1709 = vand.u32 2147483647, %v1514
          %vm1710 = vcmp.lt.f32.partialorder %v1709, 0.0004427343
          %v1711 = vsel %vm1710, %v1708, %v1705
          %v1712 = vadd.f32 %v1516, 1.0
          %v1713 = vlog2.pop %v1712
          %v1714 = vmul.f32 %v1713, 0.6931472
          %v1715 = vmul.f32 -0.5, %v1516
          %v1716 = vadd.f32 %v1715, 1.0
          %v1717 = vmul.f32 %v1716, %v1516
          %v1718 = vand.u32 2147483647, %v1516
          %vm1719 = vcmp.lt.f32.partialorder %v1718, 0.0004427343
          %v1720 = vsel %vm1719, %v1717, %v1714
          %v1721 = vadd.f32 %v1518, 1.0
          %v1722 = vlog2.pop %v1721
          %v1723 = vmul.f32 %v1722, 0.6931472
          %v1724 = vmul.f32 -0.5, %v1518
          %v1725 = vadd.f32 %v1724, 1.0
          %v1726 = vmul.f32 %v1725, %v1518
          %v1727 = vand.u32 2147483647, %v1518
          %vm1728 = vcmp.lt.f32.partialorder %v1727, 0.0004427343
          %v1729 = vsel %vm1728, %v1726, %v1723
          %v1730 = vadd.f32 %v1520, 1.0
          %v1731 = vlog2.pop %v1730
          %v1732 = vmul.f32 %v1731, 0.6931472
          %v1733 = vmul.f32 -0.5, %v1520
          %v1734 = vadd.f32 %v1733, 1.0
          %v1735 = vmul.f32 %v1734, %v1520
          %v1736 = vand.u32 2147483647, %v1520
          %vm1737 = vcmp.lt.f32.partialorder %v1736, 0.0004427343
          %v1738 = vsel %vm1737, %v1735, %v1732
          %v1739 = vadd.f32 %v1522, 1.0
          %v1740 = vlog2.pop %v1739
          %v1741 = vmul.f32 %v1740, 0.6931472
          %v1742 = vmul.f32 -0.5, %v1522
          %v1743 = vadd.f32 %v1742, 1.0
          %v1744 = vmul.f32 %v1743, %v1522
          %v1745 = vand.u32 2147483647, %v1522
          %vm1746 = vcmp.lt.f32.partialorder %v1745, 0.0004427343
          %v1747 = vsel %vm1746, %v1744, %v1741
          %v1748 = vadd.f32 %v1524, 1.0
          %v1749 = vlog2.pop %v1748
          %v1750 = vmul.f32 %v1749, 0.6931472
          %v1751 = vmul.f32 -0.5, %v1524
          %v1752 = vadd.f32 %v1751, 1.0
          %v1753 = vmul.f32 %v1752, %v1524
          %v1754 = vand.u32 2147483647, %v1524
          %vm1755 = vcmp.lt.f32.partialorder %v1754, 0.0004427343
          %v1756 = vsel %vm1755, %v1753, %v1750
          %v1757 = vadd.f32 %v1526, 1.0
          %v1758 = vlog2.pop %v1757
          %v1759 = vmul.f32 %v1758, 0.6931472
          %v1760 = vmul.f32 -0.5, %v1526
          %v1761 = vadd.f32 %v1760, 1.0
          %v1762 = vmul.f32 %v1761, %v1526
          %v1763 = vand.u32 2147483647, %v1526
          %vm1764 = vcmp.lt.f32.partialorder %v1763, 0.0004427343
          %v1765 = vsel %vm1764, %v1762, %v1759
          %v1766 = vadd.f32 %v1528, 1.0
          %v1767 = vlog2.pop %v1766
          %v1768 = vmul.f32 %v1767, 0.6931472
          %v1769 = vmul.f32 -0.5, %v1528
          %v1770 = vadd.f32 %v1769, 1.0
          %v1771 = vmul.f32 %v1770, %v1528
          %v1772 = vand.u32 2147483647, %v1528
          %vm1773 = vcmp.lt.f32.partialorder %v1772, 0.0004427343
          %v1774 = vsel %vm1773, %v1771, %v1768
          %v1775 = vadd.f32 %v1530, 1.0
          %v1776 = vlog2.pop %v1775
          %v1777 = vmul.f32 %v1776, 0.6931472
          %v1778 = vmul.f32 -0.5, %v1530
          %v1779 = vadd.f32 %v1778, 1.0
          %v1780 = vmul.f32 %v1779, %v1530
          %v1781 = vand.u32 2147483647, %v1530
          %vm1782 = vcmp.lt.f32.partialorder %v1781, 0.0004427343
          %v1783 = vsel %vm1782, %v1780, %v1777
          %v1784 = vadd.f32 %v1532, 1.0
          %v1785 = vlog2.pop %v1784
          %v1786 = vmul.f32 %v1785, 0.6931472
          %v1787 = vmul.f32 -0.5, %v1532
          %v1788 = vadd.f32 %v1787, 1.0
          %v1789 = vmul.f32 %v1788, %v1532
          %v1790 = vand.u32 2147483647, %v1532
          %vm1791 = vcmp.lt.f32.partialorder %v1790, 0.0004427343
          %v1792 = vsel %vm1791, %v1789, %v1786
          %v1793 = vadd.f32 %v1534, 1.0
          %v1794 = vlog2.pop %v1793
          %v1795 = vmul.f32 %v1794, 0.6931472
          %v1796 = vmul.f32 -0.5, %v1534
          %v1797 = vadd.f32 %v1796, 1.0
          %v1798 = vmul.f32 %v1797, %v1534
          %v1799 = vand.u32 2147483647, %v1534
          %vm1800 = vcmp.lt.f32.partialorder %v1799, 0.0004427343
          %v1801 = vsel %vm1800, %v1798, %v1795
          %v1802 = vadd.f32 %v1536, 1.0
          %v1803 = vlog2.pop %v1802
          %v1804 = vmul.f32 %v1803, 0.6931472
          %v1805 = vmul.f32 -0.5, %v1536
          %v1806 = vadd.f32 %v1805, 1.0
          %v1807 = vmul.f32 %v1806, %v1536
          %v1808 = vand.u32 2147483647, %v1536
          %vm1809 = vcmp.lt.f32.partialorder %v1808, 0.0004427343
          %v1810 = vsel %vm1809, %v1807, %v1804
          %v1811 = vadd.f32 %v1538, 1.0
          %v1812 = vlog2.pop %v1811
          %v1813 = vmul.f32 %v1812, 0.6931472
          %v1814 = vmul.f32 -0.5, %v1538
          %v1815 = vadd.f32 %v1814, 1.0
          %v1816 = vmul.f32 %v1815, %v1538
          %v1817 = vand.u32 2147483647, %v1538
          %vm1818 = vcmp.lt.f32.partialorder %v1817, 0.0004427343
          %v1819 = vsel %vm1818, %v1816, %v1813
          %v1820 = vadd.f32 %v1540, 1.0
          %v1821 = vlog2.pop %v1820
          %v1822 = vmul.f32 %v1821, 0.6931472
          %v1823 = vmul.f32 -0.5, %v1540
          %v1824 = vadd.f32 %v1823, 1.0
          %v1825 = vmul.f32 %v1824, %v1540
          %v1826 = vand.u32 2147483647, %v1540
          %vm1827 = vcmp.lt.f32.partialorder %v1826, 0.0004427343
          %v1828 = vsel %vm1827, %v1825, %v1822
          %v1829 = vadd.f32 %v1317, %v1549
          %v1830 = vadd.f32 %v1318, %v1558
          %v1831 = vadd.f32 %v1319, %v1567
          %v1832 = vadd.f32 %v1320, %v1576
          %v1833 = vadd.f32 %v1321, %v1585
          %v1834 = vadd.f32 %v1322, %v1594
          %v1835 = vadd.f32 %v1323, %v1603
          %v1836 = vadd.f32 %v1324, %v1612
          %v1837 = vadd.f32 %v1325, %v1621
          %v1838 = vadd.f32 %v1326, %v1630
          %v1839 = vadd.f32 %v1327, %v1639
          %v1840 = vadd.f32 %v1328, %v1648
          %v1841 = vadd.f32 %v1329, %v1657
          %v1842 = vadd.f32 %v1330, %v1666
          %v1843 = vadd.f32 %v1331, %v1675
          %v1844 = vadd.f32 %v1332, %v1684
          %v1845 = vadd.f32 %v1333, %v1693
          %v1846 = vadd.f32 %v1334, %v1702
          %v1847 = vadd.f32 %v1335, %v1711
          %v1848 = vadd.f32 %v1336, %v1720
          %v1849 = vadd.f32 %v1337, %v1729
          %v1850 = vadd.f32 %v1338, %v1738
          %v1851 = vadd.f32 %v1339, %v1747
          %v1852 = vadd.f32 %v1340, %v1756
          %v1853 = vadd.f32 %v1341, %v1765
          %v1854 = vadd.f32 %v1342, %v1774
          %v1855 = vadd.f32 %v1343, %v1783
          %v1856 = vadd.f32 %v1344, %v1792
          %v1857 = vadd.f32 %v1345, %v1801
          %v1858 = vadd.f32 %v1346, %v1810
          %v1859 = vadd.f32 %v1347, %v1819
          %v1860 = vadd.f32 %v1348, %v1828
          %v1861 = vsel %vm1349, %v1381, %v1829
          %v1862 = vsel %vm1350, %v1382, %v1830
          %v1863 = vsel %vm1351, %v1383, %v1831
          %v1864 = vsel %vm1352, %v1384, %v1832
          %v1865 = vsel %vm1353, %v1385, %v1833
          %v1866 = vsel %vm1354, %v1386, %v1834
          %v1867 = vsel %vm1355, %v1387, %v1835
          %v1868 = vsel %vm1356, %v1388, %v1836
          %v1869 = vsel %vm1357, %v1389, %v1837
          %v1870 = vsel %vm1358, %v1390, %v1838
          %v1871 = vsel %vm1359, %v1391, %v1839
          %v1872 = vsel %vm1360, %v1392, %v1840
          %v1873 = vsel %vm1361, %v1393, %v1841
          %v1874 = vsel %vm1362, %v1394, %v1842
          %v1875 = vsel %vm1363, %v1395, %v1843
          %v1876 = vsel %vm1364, %v1396, %v1844
          %v1877 = vsel %vm1365, %v1397, %v1845
          %v1878 = vsel %vm1366, %v1398, %v1846
          %v1879 = vsel %vm1367, %v1399, %v1847
          %v1880 = vsel %vm1368, %v1400, %v1848
          %v1881 = vsel %vm1369, %v1401, %v1849
          %v1882 = vsel %vm1370, %v1402, %v1850
          %v1883 = vsel %vm1371, %v1403, %v1851
          %v1884 = vsel %vm1372, %v1404, %v1852
          %v1885 = vsel %vm1373, %v1405, %v1853
          %v1886 = vsel %vm1374, %v1406, %v1854
          %v1887 = vsel %vm1375, %v1407, %v1855
          %v1888 = vsel %vm1376, %v1408, %v1856
          %v1889 = vsel %vm1377, %v1409, %v1857
          %v1890 = vsel %vm1378, %v1410, %v1858
          %v1891 = vsel %vm1379, %v1411, %v1859
          %v1892 = vsel %vm1380, %v1412, %v1860
          %v1893 = vmul.f32 %v1861, %v1285
          %v1894 = vmul.f32 %v1862, %v1286
          %v1895 = vmul.f32 %v1863, %v1287
          %v1896 = vmul.f32 %v1864, %v1288
          %v1897 = vmul.f32 %v1865, %v1289
          %v1898 = vmul.f32 %v1866, %v1290
          %v1899 = vmul.f32 %v1867, %v1291
          %v1900 = vmul.f32 %v1868, %v1292
          %v1901 = vmul.f32 %v1869, %v1293
          %v1902 = vmul.f32 %v1870, %v1294
          %v1903 = vmul.f32 %v1871, %v1295
          %v1904 = vmul.f32 %v1872, %v1296
          %v1905 = vmul.f32 %v1873, %v1297
          %v1906 = vmul.f32 %v1874, %v1298
          %v1907 = vmul.f32 %v1875, %v1299
          %v1908 = vmul.f32 %v1876, %v1300
          %v1909 = vmul.f32 %v1877, %v1301
          %v1910 = vmul.f32 %v1878, %v1302
          %v1911 = vmul.f32 %v1879, %v1303
          %v1912 = vmul.f32 %v1880, %v1304
          %v1913 = vmul.f32 %v1881, %v1305
          %v1914 = vmul.f32 %v1882, %v1306
          %v1915 = vmul.f32 %v1883, %v1307
          %v1916 = vmul.f32 %v1884, %v1308
          %v1917 = vmul.f32 %v1885, %v1309
          %v1918 = vmul.f32 %v1886, %v1310
          %v1919 = vmul.f32 %v1887, %v1311
          %v1920 = vmul.f32 %v1888, %v1312
          %v1921 = vmul.f32 %v1889, %v1313
          %v1922 = vmul.f32 %v1890, %v1314
          %v1923 = vmul.f32 %v1891, %v1315
          %v1924 = vmul.f32 %v1892, %v1316
          %v1925 = vadd.f32 %v1221, %v1893
          %v1926 = vadd.f32 %v1222, %v1894
          %v1927 = vadd.f32 %v1223, %v1895
          %v1928 = vadd.f32 %v1224, %v1896
          %v1929 = vadd.f32 %v1225, %v1897
          %v1930 = vadd.f32 %v1226, %v1898
          %v1931 = vadd.f32 %v1227, %v1899
          %v1932 = vadd.f32 %v1228, %v1900
          %v1933 = vadd.f32 %v1229, %v1901
          %v1934 = vadd.f32 %v1230, %v1902
          %v1935 = vadd.f32 %v1231, %v1903
          %v1936 = vadd.f32 %v1232, %v1904
          %v1937 = vadd.f32 %v1233, %v1905
          %v1938 = vadd.f32 %v1234, %v1906
          %v1939 = vadd.f32 %v1235, %v1907
          %v1940 = vadd.f32 %v1236, %v1908
          %v1941 = vadd.f32 %v1237, %v1909
          %v1942 = vadd.f32 %v1238, %v1910
          %v1943 = vadd.f32 %v1239, %v1911
          %v1944 = vadd.f32 %v1240, %v1912
          %v1945 = vadd.f32 %v1241, %v1913
          %v1946 = vadd.f32 %v1242, %v1914
          %v1947 = vadd.f32 %v1243, %v1915
          %v1948 = vadd.f32 %v1244, %v1916
          %v1949 = vadd.f32 %v1245, %v1917
          %v1950 = vadd.f32 %v1246, %v1918
          %v1951 = vadd.f32 %v1247, %v1919
          %v1952 = vadd.f32 %v1248, %v1920
          %v1953 = vadd.f32 %v1249, %v1921
          %v1954 = vadd.f32 %v1250, %v1922
          %v1955 = vadd.f32 %v1251, %v1923
          %v1956 = vadd.f32 %v1252, %v1924
          %v1957 = vpack.c.bf16 %v1926, %v1925
          %v1958 = vpack.c.bf16 %v1928, %v1927
          %v1959 = vpack.c.bf16 %v1930, %v1929
          %v1960 = vpack.c.bf16 %v1932, %v1931
          %v1961 = vpack.c.bf16 %v1934, %v1933
          %v1962 = vpack.c.bf16 %v1936, %v1935
          %v1963 = vpack.c.bf16 %v1938, %v1937
          %v1964 = vpack.c.bf16 %v1940, %v1939
          %v1965 = vpack.c.bf16 %v1942, %v1941
          %v1966 = vpack.c.bf16 %v1944, %v1943
          %v1967 = vpack.c.bf16 %v1946, %v1945
          %v1968 = vpack.c.bf16 %v1948, %v1947
          %v1969 = vpack.c.bf16 %v1950, %v1949
          %v1970 = vpack.c.bf16 %v1952, %v1951
          %v1971 = vpack.c.bf16 %v1954, %v1953
          %v1972 = vpack.c.bf16 %v1956, %v1955
          %1973 = vst [vmem:[#allocation2 + $0x80] sm:$0xff] %v1957
          %1974 = vst [vmem:[#allocation2 + $0x88] sm:$0xff] %v1958
          %1975 = vst [vmem:[#allocation2 + $0x90] sm:$0xff] %v1959
          %1976 = vst [vmem:[#allocation2 + $0x98] sm:$0xff] %v1960
          %1977 = vst [vmem:[#allocation2 + $0xa0] sm:$0xff] %v1961
          %1978 = vst [vmem:[#allocation2 + $0xa8] sm:$0xff] %v1962
          %1979 = vst [vmem:[#allocation2 + $0xb0] sm:$0xff] %v1963
          %1980 = vst [vmem:[#allocation2 + $0xb8] sm:$0xff] %v1964
          %1981 = vst [vmem:[#allocation2 + $0xc0] sm:$0xff] %v1965
          %1982 = vst [vmem:[#allocation2 + $0xc8] sm:$0xff] %v1966
          %1983 = vst [vmem:[#allocation2 + $0xd0] sm:$0xff] %v1967
          %1984 = vst [vmem:[#allocation2 + $0xd8] sm:$0xff] %v1968
          %1985 = vst [vmem:[#allocation2 + $0xe0] sm:$0xff] %v1969
          %1986 = vst [vmem:[#allocation2 + $0xe8] sm:$0xff] %v1970
          %1987 = vst [vmem:[#allocation2 + $0xf0] sm:$0xff] %v1971
          %1988 = vst [vmem:[#allocation2 + $0xf8] sm:$0xff] %v1972
        $region52: #{tpu_custom_call.1} parent=35 // pred_fallthru
          _
        %v1989 = vld [vmem:[%s265] sm:$0xff]
        %v1990 = vld [vmem:[%s265 + $0x8] sm:$0xff]
        %v1991 = vld [vmem:[%s265 + $0x10] sm:$0xff]
        %v1992 = vld [vmem:[%s265 + $0x18] sm:$0xff]
        %v1993 = vld [vmem:[%s265 + $0x20] sm:$0xff]
        %v1994 = vld [vmem:[%s265 + $0x28] sm:$0xff]
        %v1995 = vld [vmem:[%s265 + $0x30] sm:$0xff]
        %v1996 = vld [vmem:[%s265 + $0x38] sm:$0xff]
        %v1997 = vld [vmem:[%s265 + $0x40] sm:$0xff]
        %v1998 = vld [vmem:[%s265 + $0x48] sm:$0xff]
        %v1999 = vld [vmem:[%s265 + $0x50] sm:$0xff]
        %v2000 = vld [vmem:[%s265 + $0x58] sm:$0xff]
        %v2001 = vld [vmem:[%s265 + $0x60] sm:$0xff]
        %v2002 = vld [vmem:[%s265 + $0x68] sm:$0xff]
        %v2003 = vld [vmem:[%s265 + $0x70] sm:$0xff]
        %v2004 = vld [vmem:[%s265 + $0x78] sm:$0xff]
        %v2005 = vld [vmem:[%s265 + $0x80] sm:$0xff]
        %v2006 = vld [vmem:[%s265 + $0x88] sm:$0xff]
        %v2007 = vld [vmem:[%s265 + $0x90] sm:$0xff]
        %v2008 = vld [vmem:[%s265 + $0x98] sm:$0xff]
        %v2009 = vld [vmem:[%s265 + $0xa0] sm:$0xff]
        %v2010 = vld [vmem:[%s265 + $0xa8] sm:$0xff]
        %v2011 = vld [vmem:[%s265 + $0xb0] sm:$0xff]
        %v2012 = vld [vmem:[%s265 + $0xb8] sm:$0xff]
        %v2013 = vld [vmem:[%s265 + $0xc0] sm:$0xff]
        %v2014 = vld [vmem:[%s265 + $0xc8] sm:$0xff]
        %v2015 = vld [vmem:[%s265 + $0xd0] sm:$0xff]
        %v2016 = vld [vmem:[%s265 + $0xd8] sm:$0xff]
        %v2017 = vld [vmem:[%s265 + $0xe0] sm:$0xff]
        %v2018 = vld [vmem:[%s265 + $0xe8] sm:$0xff]
        %v2019 = vld [vmem:[%s265 + $0xf0] sm:$0xff]
        %v2020 = vld [vmem:[%s265 + $0xf8] sm:$0xff]
        %v2021 = vld [vmem:[%s265 + $0x100] sm:$0xff]
        %v2022 = vld [vmem:[%s265 + $0x108] sm:$0xff]
        %v2023 = vld [vmem:[%s265 + $0x110] sm:$0xff]
        %v2024 = vld [vmem:[%s265 + $0x118] sm:$0xff]
        %v2025 = vld [vmem:[%s265 + $0x120] sm:$0xff]
        %v2026 = vld [vmem:[%s265 + $0x128] sm:$0xff]
        %v2027 = vld [vmem:[%s265 + $0x130] sm:$0xff]
        %v2028 = vld [vmem:[%s265 + $0x138] sm:$0xff]
        %v2029 = vld [vmem:[%s265 + $0x140] sm:$0xff]
        %v2030 = vld [vmem:[%s265 + $0x148] sm:$0xff]
        %v2031 = vld [vmem:[%s265 + $0x150] sm:$0xff]
        %v2032 = vld [vmem:[%s265 + $0x158] sm:$0xff]
        %v2033 = vld [vmem:[%s265 + $0x160] sm:$0xff]
        %v2034 = vld [vmem:[%s265 + $0x168] sm:$0xff]
        %v2035 = vld [vmem:[%s265 + $0x170] sm:$0xff]
        %v2036 = vld [vmem:[%s265 + $0x178] sm:$0xff]
        %v2037 = vld [vmem:[%s265 + $0x180] sm:$0xff]
        %v2038 = vld [vmem:[%s265 + $0x188] sm:$0xff]
        %v2039 = vld [vmem:[%s265 + $0x190] sm:$0xff]
        %v2040 = vld [vmem:[%s265 + $0x198] sm:$0xff]
        %v2041 = vld [vmem:[%s265 + $0x1a0] sm:$0xff]
        %v2042 = vld [vmem:[%s265 + $0x1a8] sm:$0xff]
        %v2043 = vld [vmem:[%s265 + $0x1b0] sm:$0xff]
        %v2044 = vld [vmem:[%s265 + $0x1b8] sm:$0xff]
        %v2045 = vld [vmem:[%s265 + $0x1c0] sm:$0xff]
        %v2046 = vld [vmem:[%s265 + $0x1c8] sm:$0xff]
        %v2047 = vld [vmem:[%s265 + $0x1d0] sm:$0xff]
        %v2048 = vld [vmem:[%s265 + $0x1d8] sm:$0xff]
        %v2049 = vld [vmem:[%s265 + $0x1e0] sm:$0xff]
        %v2050 = vld [vmem:[%s265 + $0x1e8] sm:$0xff]
        %v2051 = vld [vmem:[%s265 + $0x1f0] sm:$0xff]
        %v2052 = vld [vmem:[%s265 + $0x1f8] sm:$0xff]
        %v2053 = vpack.c.bf16 %v1991, %v1989
        %v2054 = vpack.c.bf16 %v1992, %v1990
        %v2055 = vpack.c.bf16 %v1995, %v1993
        %v2056 = vpack.c.bf16 %v1996, %v1994
        %v2057 = vpack.c.bf16 %v1999, %v1997
        %v2058 = vpack.c.bf16 %v2000, %v1998
        %v2059 = vpack.c.bf16 %v2003, %v2001
        %v2060 = vpack.c.bf16 %v2004, %v2002
        %v2061 = vpack.c.bf16 %v2007, %v2005
        %v2062 = vpack.c.bf16 %v2008, %v2006
        %v2063 = vpack.c.bf16 %v2011, %v2009
        %v2064 = vpack.c.bf16 %v2012, %v2010
        %v2065 = vpack.c.bf16 %v2015, %v2013
        %v2066 = vpack.c.bf16 %v2016, %v2014
        %v2067 = vpack.c.bf16 %v2019, %v2017
        %v2068 = vpack.c.bf16 %v2020, %v2018
        %v2069 = vpack.c.bf16 %v2023, %v2021
        %v2070 = vpack.c.bf16 %v2024, %v2022
        %v2071 = vpack.c.bf16 %v2027, %v2025
        %v2072 = vpack.c.bf16 %v2028, %v2026
        %v2073 = vpack.c.bf16 %v2031, %v2029
        %v2074 = vpack.c.bf16 %v2032, %v2030
        %v2075 = vpack.c.bf16 %v2035, %v2033
        %v2076 = vpack.c.bf16 %v2036, %v2034
        %v2077 = vpack.c.bf16 %v2039, %v2037
        %v2078 = vpack.c.bf16 %v2040, %v2038
        %v2079 = vpack.c.bf16 %v2043, %v2041
        %v2080 = vpack.c.bf16 %v2044, %v2042
        %v2081 = vpack.c.bf16 %v2047, %v2045
        %v2082 = vpack.c.bf16 %v2048, %v2046
        %v2083 = vpack.c.bf16 %v2051, %v2049
        %v2084 = vpack.c.bf16 %v2052, %v2050
        %v2085 = vld [vmem:[#allocation2] sm:$0xff]
        %v2086 = vld [vmem:[#allocation2 + $0x8] sm:$0xff]
        %v2087 = vld [vmem:[#allocation2 + $0x10] sm:$0xff]
        %v2088 = vld [vmem:[#allocation2 + $0x18] sm:$0xff]
        %v2089 = vld [vmem:[#allocation2 + $0x20] sm:$0xff]
        %v2090 = vld [vmem:[#allocation2 + $0x28] sm:$0xff]
        %v2091 = vld [vmem:[#allocation2 + $0x30] sm:$0xff]
        %v2092 = vld [vmem:[#allocation2 + $0x38] sm:$0xff]
        %v2093 = vld [vmem:[#allocation2 + $0x40] sm:$0xff]
        %v2094 = vld [vmem:[#allocation2 + $0x48] sm:$0xff]
        %v2095 = vld [vmem:[#allocation2 + $0x50] sm:$0xff]
        %v2096 = vld [vmem:[#allocation2 + $0x58] sm:$0xff]
        %v2097 = vld [vmem:[#allocation2 + $0x60] sm:$0xff]
        %v2098 = vld [vmem:[#allocation2 + $0x68] sm:$0xff]
        %v2099 = vld [vmem:[#allocation2 + $0x70] sm:$0xff]
        %v2100 = vld [vmem:[#allocation2 + $0x78] sm:$0xff]
        %v2101 = vld [vmem:[#allocation2 + $0x80] sm:$0xff]
        %v2102 = vld [vmem:[#allocation2 + $0x88] sm:$0xff]
        %v2103 = vld [vmem:[#allocation2 + $0x90] sm:$0xff]
        %v2104 = vld [vmem:[#allocation2 + $0x98] sm:$0xff]
        %v2105 = vld [vmem:[#allocation2 + $0xa0] sm:$0xff]
        %v2106 = vld [vmem:[#allocation2 + $0xa8] sm:$0xff]
        %v2107 = vld [vmem:[#allocation2 + $0xb0] sm:$0xff]
        %v2108 = vld [vmem:[#allocation2 + $0xb8] sm:$0xff]
        %v2109 = vld [vmem:[#allocation2 + $0xc0] sm:$0xff]
        %v2110 = vld [vmem:[#allocation2 + $0xc8] sm:$0xff]
        %v2111 = vld [vmem:[#allocation2 + $0xd0] sm:$0xff]
        %v2112 = vld [vmem:[#allocation2 + $0xd8] sm:$0xff]
        %v2113 = vld [vmem:[#allocation2 + $0xe0] sm:$0xff]
        %v2114 = vld [vmem:[#allocation2 + $0xe8] sm:$0xff]
        %v2115 = vld [vmem:[#allocation2 + $0xf0] sm:$0xff]
        %v2116 = vld [vmem:[#allocation2 + $0xf8] sm:$0xff]
        %v2117 = vld [vmem:[#allocation3] sm:$0x3]
        %v2119 = vperm.slane %v2117, 0
        %v2120 = vperm.slane %v2117, 1
        %v2155 = vunpack.c.l.b16 %v2085
        %v2156 = vunpack.c.h.b16 %v2085
        %v2157 = vunpack.c.l.b16 %v2086
        %v2158 = vunpack.c.h.b16 %v2086
        %v2159 = vunpack.c.l.b16 %v2087
        %v2160 = vunpack.c.h.b16 %v2087
        %v2161 = vunpack.c.l.b16 %v2088
        %v2162 = vunpack.c.h.b16 %v2088
        %v2163 = vunpack.c.l.b16 %v2089
        %v2164 = vunpack.c.h.b16 %v2089
        %v2165 = vunpack.c.l.b16 %v2090
        %v2166 = vunpack.c.h.b16 %v2090
        %v2167 = vunpack.c.l.b16 %v2091
        %v2168 = vunpack.c.h.b16 %v2091
        %v2169 = vunpack.c.l.b16 %v2092
        %v2170 = vunpack.c.h.b16 %v2092
        %v2171 = vunpack.c.l.b16 %v2093
        %v2172 = vunpack.c.h.b16 %v2093
        %v2173 = vunpack.c.l.b16 %v2094
        %v2174 = vunpack.c.h.b16 %v2094
        %v2175 = vunpack.c.l.b16 %v2095
        %v2176 = vunpack.c.h.b16 %v2095
        %v2177 = vunpack.c.l.b16 %v2096
        %v2178 = vunpack.c.h.b16 %v2096
        %v2179 = vunpack.c.l.b16 %v2097
        %v2180 = vunpack.c.h.b16 %v2097
        %v2181 = vunpack.c.l.b16 %v2098
        %v2182 = vunpack.c.h.b16 %v2098
        %v2183 = vunpack.c.l.b16 %v2099
        %v2184 = vunpack.c.h.b16 %v2099
        %v2185 = vunpack.c.l.b16 %v2100
        %v2186 = vunpack.c.h.b16 %v2100
        %v2187 = vunpack.c.l.b16 %v2101
        %v2188 = vunpack.c.h.b16 %v2101
        %v2189 = vunpack.c.l.b16 %v2102
        %v2190 = vunpack.c.h.b16 %v2102
        %v2191 = vunpack.c.l.b16 %v2103
        %v2192 = vunpack.c.h.b16 %v2103
        %v2193 = vunpack.c.l.b16 %v2104
        %v2194 = vunpack.c.h.b16 %v2104
        %v2195 = vunpack.c.l.b16 %v2105
        %v2196 = vunpack.c.h.b16 %v2105
        %v2197 = vunpack.c.l.b16 %v2106
        %v2198 = vunpack.c.h.b16 %v2106
        %v2199 = vunpack.c.l.b16 %v2107
        %v2200 = vunpack.c.h.b16 %v2107
        %v2201 = vunpack.c.l.b16 %v2108
        %v2202 = vunpack.c.h.b16 %v2108
        %v2203 = vunpack.c.l.b16 %v2109
        %v2204 = vunpack.c.h.b16 %v2109
        %v2205 = vunpack.c.l.b16 %v2110
        %v2206 = vunpack.c.h.b16 %v2110
        %v2207 = vunpack.c.l.b16 %v2111
        %v2208 = vunpack.c.h.b16 %v2111
        %v2209 = vunpack.c.l.b16 %v2112
        %v2210 = vunpack.c.h.b16 %v2112
        %v2211 = vunpack.c.l.b16 %v2113
        %v2212 = vunpack.c.h.b16 %v2113
        %v2213 = vunpack.c.l.b16 %v2114
        %v2214 = vunpack.c.h.b16 %v2114
        %v2215 = vunpack.c.l.b16 %v2115
        %v2216 = vunpack.c.h.b16 %v2115
        %v2217 = vunpack.c.l.b16 %v2116
        %v2218 = vunpack.c.h.b16 %v2116
        %v2219 = vpack.c.b16 %v2157, %v2155
        %v2220 = vpack.c.b16 %v2158, %v2156
        %v2221 = vpack.c.b16 %v2161, %v2159
        %v2222 = vpack.c.b16 %v2162, %v2160
        %v2223 = vpack.c.b16 %v2165, %v2163
        %v2224 = vpack.c.b16 %v2166, %v2164
        %v2225 = vpack.c.b16 %v2169, %v2167
        %v2226 = vpack.c.b16 %v2170, %v2168
        %v2227 = vpack.c.b16 %v2173, %v2171
        %v2228 = vpack.c.b16 %v2174, %v2172
        %v2229 = vpack.c.b16 %v2177, %v2175
        %v2230 = vpack.c.b16 %v2178, %v2176
        %v2231 = vpack.c.b16 %v2181, %v2179
        %v2232 = vpack.c.b16 %v2182, %v2180
        %v2233 = vpack.c.b16 %v2185, %v2183
        %v2234 = vpack.c.b16 %v2186, %v2184
        %v2235 = vpack.c.b16 %v2189, %v2187
        %v2236 = vpack.c.b16 %v2190, %v2188
        %v2237 = vpack.c.b16 %v2193, %v2191
        %v2238 = vpack.c.b16 %v2194, %v2192
        %v2239 = vpack.c.b16 %v2197, %v2195
        %v2240 = vpack.c.b16 %v2198, %v2196
        %v2241 = vpack.c.b16 %v2201, %v2199
        %v2242 = vpack.c.b16 %v2202, %v2200
        %v2243 = vpack.c.b16 %v2205, %v2203
        %v2244 = vpack.c.b16 %v2206, %v2204
        %v2245 = vpack.c.b16 %v2209, %v2207
        %v2246 = vpack.c.b16 %v2210, %v2208
        %v2247 = vpack.c.b16 %v2213, %v2211
        %v2248 = vpack.c.b16 %v2214, %v2212
        %v2249 = vpack.c.b16 %v2217, %v2215
        %v2250 = vpack.c.b16 %v2218, %v2216
        %2283 = vmatpush.bf16.msra.mxu0 %v2233
        %2284 = vmatpush.bf16.msra.mxu0 %v2231
        %2285 = vmatpush.bf16.msra.mxu0 %v2229
        %2286 = vmatpush.bf16.msra.mxu0 %v2227
        %2287 = vmatpush.bf16.msra.mxu0 %v2225
        %2288 = vmatpush.bf16.msra.mxu0 %v2223
        %2289 = vmatpush.bf16.msra.mxu0 %v2221
        %2290 = vmatpush.bf16.msra.mxu0 %v2219
        %2291 = vmatmul.bf16.gmra.mxu0 %v2053
        %v2292 = vpop.f32.mrf.mxu0
        %v2293 = vadd.f32 %v2119, %v2292
        %v2294 = vpop.f32.mrf.mxu0
        %v2295 = vadd.f32 %v2119, %v2294
        %2296 = vmatmul.bf16.gmra.mxu0 %v2055
        %v2297 = vpop.f32.mrf.mxu0
        %v2298 = vadd.f32 %v2119, %v2297
        %v2299 = vpop.f32.mrf.mxu0
        %v2300 = vadd.f32 %v2119, %v2299
        %2301 = vmatmul.bf16.gmra.mxu0 %v2057
        %v2302 = vpop.f32.mrf.mxu0
        %v2303 = vadd.f32 %v2119, %v2302
        %v2304 = vpop.f32.mrf.mxu0
        %v2305 = vadd.f32 %v2119, %v2304
        %2306 = vmatmul.bf16.gmra.mxu0 %v2059
        %v2307 = vpop.f32.mrf.mxu0
        %v2308 = vadd.f32 %v2119, %v2307
        %v2309 = vpop.f32.mrf.mxu0
        %v2310 = vadd.f32 %v2119, %v2309
        %2311 = vmatmul.bf16.gmra.mxu0 %v2061
        %v2312 = vpop.f32.mrf.mxu0
        %v2313 = vadd.f32 %v2119, %v2312
        %v2314 = vpop.f32.mrf.mxu0
        %v2315 = vadd.f32 %v2119, %v2314
        %2316 = vmatmul.bf16.gmra.mxu0 %v2063
        %v2317 = vpop.f32.mrf.mxu0
        %v2318 = vadd.f32 %v2119, %v2317
        %v2319 = vpop.f32.mrf.mxu0
        %v2320 = vadd.f32 %v2119, %v2319
        %2321 = vmatmul.bf16.gmra.mxu0 %v2065
        %v2322 = vpop.f32.mrf.mxu0
        %v2323 = vadd.f32 %v2119, %v2322
        %v2324 = vpop.f32.mrf.mxu0
        %v2325 = vadd.f32 %v2119, %v2324
        %2326 = vmatmul.bf16.gmra.mxu0 %v2067
        %v2327 = vpop.f32.mrf.mxu0
        %v2328 = vadd.f32 %v2119, %v2327
        %v2329 = vpop.f32.mrf.mxu0
        %v2330 = vadd.f32 %v2119, %v2329
        %2331 = vmatmul.bf16.gmra.mxu0 %v2069
        %v2332 = vpop.f32.mrf.mxu0
        %v2333 = vadd.f32 %v2119, %v2332
        %v2334 = vpop.f32.mrf.mxu0
        %v2335 = vadd.f32 %v2119, %v2334
        %2336 = vmatmul.bf16.gmra.mxu0 %v2071
        %v2337 = vpop.f32.mrf.mxu0
        %v2338 = vadd.f32 %v2119, %v2337
        %v2339 = vpop.f32.mrf.mxu0
        %v2340 = vadd.f32 %v2119, %v2339
        %2341 = vmatmul.bf16.gmra.mxu0 %v2073
        %v2342 = vpop.f32.mrf.mxu0
        %v2343 = vadd.f32 %v2119, %v2342
        %v2344 = vpop.f32.mrf.mxu0
        %v2345 = vadd.f32 %v2119, %v2344
        %2346 = vmatmul.bf16.gmra.mxu0 %v2075
        %v2347 = vpop.f32.mrf.mxu0
        %v2348 = vadd.f32 %v2119, %v2347
        %v2349 = vpop.f32.mrf.mxu0
        %v2350 = vadd.f32 %v2119, %v2349
        %2351 = vmatmul.bf16.gmra.mxu0 %v2077
        %v2352 = vpop.f32.mrf.mxu0
        %v2353 = vadd.f32 %v2119, %v2352
        %v2354 = vpop.f32.mrf.mxu0
        %v2355 = vadd.f32 %v2119, %v2354
        %2356 = vmatmul.bf16.gmra.mxu0 %v2079
        %v2357 = vpop.f32.mrf.mxu0
        %v2358 = vadd.f32 %v2119, %v2357
        %v2359 = vpop.f32.mrf.mxu0
        %v2360 = vadd.f32 %v2119, %v2359
        %2361 = vmatmul.bf16.gmra.mxu0 %v2081
        %v2362 = vpop.f32.mrf.mxu0
        %v2363 = vadd.f32 %v2119, %v2362
        %v2364 = vpop.f32.mrf.mxu0
        %v2365 = vadd.f32 %v2119, %v2364
        %2366 = vmatmul.bf16.gmra.mxu0 %v2083
        %v2367 = vpop.f32.mrf.mxu0
        %v2368 = vadd.f32 %v2119, %v2367
        %v2369 = vpop.f32.mrf.mxu0
        %v2370 = vadd.f32 %v2119, %v2369
        %2371 = vdwg.mxu0
        %2372 = vmatpush.bf16.msra.mxu0 %v2249
        %2373 = vmatpush.bf16.msra.mxu0 %v2247
        %2374 = vmatpush.bf16.msra.mxu0 %v2245
        %2375 = vmatpush.bf16.msra.mxu0 %v2243
        %2376 = vmatpush.bf16.msra.mxu0 %v2241
        %2377 = vmatpush.bf16.msra.mxu0 %v2239
        %2378 = vmatpush.bf16.msra.mxu0 %v2237
        %2379 = vmatpush.bf16.msra.mxu0 %v2235
        %2380 = vmatmul.bf16.gmra.mxu0 %v2054
        %v2381 = vpop.f32.mrf.mxu0
        %v2382 = vadd.f32 %v2293, %v2381
        %v2383 = vpop.f32.mrf.mxu0
        %v2384 = vadd.f32 %v2295, %v2383
        %2385 = vmatmul.bf16.gmra.mxu0 %v2056
        %v2386 = vpop.f32.mrf.mxu0
        %v2387 = vadd.f32 %v2298, %v2386
        %v2388 = vpop.f32.mrf.mxu0
        %v2389 = vadd.f32 %v2300, %v2388
        %2390 = vmatmul.bf16.gmra.mxu0 %v2058
        %v2391 = vpop.f32.mrf.mxu0
        %v2392 = vadd.f32 %v2303, %v2391
        %v2393 = vpop.f32.mrf.mxu0
        %v2394 = vadd.f32 %v2305, %v2393
        %2395 = vmatmul.bf16.gmra.mxu0 %v2060
        %v2396 = vpop.f32.mrf.mxu0
        %v2397 = vadd.f32 %v2308, %v2396
        %v2398 = vpop.f32.mrf.mxu0
        %v2399 = vadd.f32 %v2310, %v2398
        %2400 = vmatmul.bf16.gmra.mxu0 %v2062
        %v2401 = vpop.f32.mrf.mxu0
        %v2402 = vadd.f32 %v2313, %v2401
        %v2403 = vpop.f32.mrf.mxu0
        %v2404 = vadd.f32 %v2315, %v2403
        %2405 = vmatmul.bf16.gmra.mxu0 %v2064
        %v2406 = vpop.f32.mrf.mxu0
        %v2407 = vadd.f32 %v2318, %v2406
        %v2408 = vpop.f32.mrf.mxu0
        %v2409 = vadd.f32 %v2320, %v2408
        %2410 = vmatmul.bf16.gmra.mxu0 %v2066
        %v2411 = vpop.f32.mrf.mxu0
        %v2412 = vadd.f32 %v2323, %v2411
        %v2413 = vpop.f32.mrf.mxu0
        %v2414 = vadd.f32 %v2325, %v2413
        %2415 = vmatmul.bf16.gmra.mxu0 %v2068
        %v2416 = vpop.f32.mrf.mxu0
        %v2417 = vadd.f32 %v2328, %v2416
        %v2418 = vpop.f32.mrf.mxu0
        %v2419 = vadd.f32 %v2330, %v2418
        %2420 = vmatmul.bf16.gmra.mxu0 %v2070
        %v2421 = vpop.f32.mrf.mxu0
        %v2422 = vadd.f32 %v2333, %v2421
        %v2423 = vpop.f32.mrf.mxu0
        %v2424 = vadd.f32 %v2335, %v2423
        %2425 = vmatmul.bf16.gmra.mxu0 %v2072
        %v2426 = vpop.f32.mrf.mxu0
        %v2427 = vadd.f32 %v2338, %v2426
        %v2428 = vpop.f32.mrf.mxu0
        %v2429 = vadd.f32 %v2340, %v2428
        %2430 = vmatmul.bf16.gmra.mxu0 %v2074
        %v2431 = vpop.f32.mrf.mxu0
        %v2432 = vadd.f32 %v2343, %v2431
        %v2433 = vpop.f32.mrf.mxu0
        %v2434 = vadd.f32 %v2345, %v2433
        %2435 = vmatmul.bf16.gmra.mxu0 %v2076
        %v2436 = vpop.f32.mrf.mxu0
        %v2437 = vadd.f32 %v2348, %v2436
        %v2438 = vpop.f32.mrf.mxu0
        %v2439 = vadd.f32 %v2350, %v2438
        %2440 = vmatmul.bf16.gmra.mxu0 %v2078
        %v2441 = vpop.f32.mrf.mxu0
        %v2442 = vadd.f32 %v2353, %v2441
        %v2443 = vpop.f32.mrf.mxu0
        %v2444 = vadd.f32 %v2355, %v2443
        %2445 = vmatmul.bf16.gmra.mxu0 %v2080
        %v2446 = vpop.f32.mrf.mxu0
        %v2447 = vadd.f32 %v2358, %v2446
        %v2448 = vpop.f32.mrf.mxu0
        %v2449 = vadd.f32 %v2360, %v2448
        %2450 = vmatmul.bf16.gmra.mxu0 %v2082
        %v2451 = vpop.f32.mrf.mxu0
        %v2452 = vadd.f32 %v2363, %v2451
        %v2453 = vpop.f32.mrf.mxu0
        %v2454 = vadd.f32 %v2365, %v2453
        %2455 = vmatmul.bf16.gmra.mxu0 %v2084
        %v2456 = vpop.f32.mrf.mxu0
        %v2457 = vadd.f32 %v2368, %v2456
        %v2458 = vpop.f32.mrf.mxu0
        %v2459 = vadd.f32 %v2370, %v2458
        %2460 = vdwg.mxu0
        %2461 = vmatpush.bf16.msra.mxu0 %v2234
        %2462 = vmatpush.bf16.msra.mxu0 %v2232
        %2463 = vmatpush.bf16.msra.mxu0 %v2230
        %2464 = vmatpush.bf16.msra.mxu0 %v2228
        %2465 = vmatpush.bf16.msra.mxu0 %v2226
        %2466 = vmatpush.bf16.msra.mxu0 %v2224
        %2467 = vmatpush.bf16.msra.mxu0 %v2222
        %2468 = vmatpush.bf16.msra.mxu0 %v2220
        %2469 = vmatmul.bf16.gmra.mxu0 %v2053
        %v2470 = vpop.f32.mrf.mxu0
        %v2471 = vadd.f32 %v2120, %v2470
        %v2472 = vpop.f32.mrf.mxu0
        %v2473 = vadd.f32 %v2120, %v2472
        %2474 = vmatmul.bf16.gmra.mxu0 %v2055
        %v2475 = vpop.f32.mrf.mxu0
        %v2476 = vadd.f32 %v2120, %v2475
        %v2477 = vpop.f32.mrf.mxu0
        %v2478 = vadd.f32 %v2120, %v2477
        %2479 = vmatmul.bf16.gmra.mxu0 %v2057
        %v2480 = vpop.f32.mrf.mxu0
        %v2481 = vadd.f32 %v2120, %v2480
        %v2482 = vpop.f32.mrf.mxu0
        %v2483 = vadd.f32 %v2120, %v2482
        %2484 = vmatmul.bf16.gmra.mxu0 %v2059
        %v2485 = vpop.f32.mrf.mxu0
        %v2486 = vadd.f32 %v2120, %v2485
        %v2487 = vpop.f32.mrf.mxu0
        %v2488 = vadd.f32 %v2120, %v2487
        %2489 = vmatmul.bf16.gmra.mxu0 %v2061
        %v2490 = vpop.f32.mrf.mxu0
        %v2491 = vadd.f32 %v2120, %v2490
        %v2492 = vpop.f32.mrf.mxu0
        %v2493 = vadd.f32 %v2120, %v2492
        %2494 = vmatmul.bf16.gmra.mxu0 %v2063
        %v2495 = vpop.f32.mrf.mxu0
        %v2496 = vadd.f32 %v2120, %v2495
        %v2497 = vpop.f32.mrf.mxu0
        %v2498 = vadd.f32 %v2120, %v2497
        %2499 = vmatmul.bf16.gmra.mxu0 %v2065
        %v2500 = vpop.f32.mrf.mxu0
        %v2501 = vadd.f32 %v2120, %v2500
        %v2502 = vpop.f32.mrf.mxu0
        %v2503 = vadd.f32 %v2120, %v2502
        %2504 = vmatmul.bf16.gmra.mxu0 %v2067
        %v2505 = vpop.f32.mrf.mxu0
        %v2506 = vadd.f32 %v2120, %v2505
        %v2507 = vpop.f32.mrf.mxu0
        %v2508 = vadd.f32 %v2120, %v2507
        %2509 = vmatmul.bf16.gmra.mxu0 %v2069
        %v2510 = vpop.f32.mrf.mxu0
        %v2511 = vadd.f32 %v2120, %v2510
        %v2512 = vpop.f32.mrf.mxu0
        %v2513 = vadd.f32 %v2120, %v2512
        %2514 = vmatmul.bf16.gmra.mxu0 %v2071
        %v2515 = vpop.f32.mrf.mxu0
        %v2516 = vadd.f32 %v2120, %v2515
        %v2517 = vpop.f32.mrf.mxu0
        %v2518 = vadd.f32 %v2120, %v2517
        %2519 = vmatmul.bf16.gmra.mxu0 %v2073
        %v2520 = vpop.f32.mrf.mxu0
        %v2521 = vadd.f32 %v2120, %v2520
        %v2522 = vpop.f32.mrf.mxu0
        %v2523 = vadd.f32 %v2120, %v2522
        %2524 = vmatmul.bf16.gmra.mxu0 %v2075
        %v2525 = vpop.f32.mrf.mxu0
        %v2526 = vadd.f32 %v2120, %v2525
        %v2527 = vpop.f32.mrf.mxu0
        %v2528 = vadd.f32 %v2120, %v2527
        %2529 = vmatmul.bf16.gmra.mxu0 %v2077
        %v2530 = vpop.f32.mrf.mxu0
        %v2531 = vadd.f32 %v2120, %v2530
        %v2532 = vpop.f32.mrf.mxu0
        %v2533 = vadd.f32 %v2120, %v2532
        %2534 = vmatmul.bf16.gmra.mxu0 %v2079
        %v2535 = vpop.f32.mrf.mxu0
        %v2536 = vadd.f32 %v2120, %v2535
        %v2537 = vpop.f32.mrf.mxu0
        %v2538 = vadd.f32 %v2120, %v2537
        %2539 = vmatmul.bf16.gmra.mxu0 %v2081
        %v2540 = vpop.f32.mrf.mxu0
        %v2541 = vadd.f32 %v2120, %v2540
        %v2542 = vpop.f32.mrf.mxu0
        %v2543 = vadd.f32 %v2120, %v2542
        %2544 = vmatmul.bf16.gmra.mxu0 %v2083
        %v2545 = vpop.f32.mrf.mxu0
        %v2546 = vadd.f32 %v2120, %v2545
        %v2547 = vpop.f32.mrf.mxu0
        %v2548 = vadd.f32 %v2120, %v2547
        %2549 = vdwg.mxu0
        %2550 = vmatpush.bf16.msra.mxu0 %v2250
        %2551 = vmatpush.bf16.msra.mxu0 %v2248
        %2552 = vmatpush.bf16.msra.mxu0 %v2246
        %2553 = vmatpush.bf16.msra.mxu0 %v2244
        %2554 = vmatpush.bf16.msra.mxu0 %v2242
        %2555 = vmatpush.bf16.msra.mxu0 %v2240
        %2556 = vmatpush.bf16.msra.mxu0 %v2238
        %2557 = vmatpush.bf16.msra.mxu0 %v2236
        %2558 = vmatmul.bf16.gmra.mxu0 %v2054
        %v2559 = vpop.f32.mrf.mxu0
        %v2560 = vadd.f32 %v2471, %v2559
        %v2561 = vpop.f32.mrf.mxu0
        %v2562 = vadd.f32 %v2473, %v2561
        %2563 = vmatmul.bf16.gmra.mxu0 %v2056
        %v2564 = vpop.f32.mrf.mxu0
        %v2565 = vadd.f32 %v2476, %v2564
        %v2566 = vpop.f32.mrf.mxu0
        %v2567 = vadd.f32 %v2478, %v2566
        %2568 = vmatmul.bf16.gmra.mxu0 %v2058
        %v2569 = vpop.f32.mrf.mxu0
        %v2570 = vadd.f32 %v2481, %v2569
        %v2571 = vpop.f32.mrf.mxu0
        %v2572 = vadd.f32 %v2483, %v2571
        %2573 = vmatmul.bf16.gmra.mxu0 %v2060
        %v2574 = vpop.f32.mrf.mxu0
        %v2575 = vadd.f32 %v2486, %v2574
        %v2576 = vpop.f32.mrf.mxu0
        %v2577 = vadd.f32 %v2488, %v2576
        %2578 = vmatmul.bf16.gmra.mxu0 %v2062
        %v2579 = vpop.f32.mrf.mxu0
        %v2580 = vadd.f32 %v2491, %v2579
        %v2581 = vpop.f32.mrf.mxu0
        %v2582 = vadd.f32 %v2493, %v2581
        %2583 = vmatmul.bf16.gmra.mxu0 %v2064
        %v2584 = vpop.f32.mrf.mxu0
        %v2585 = vadd.f32 %v2496, %v2584
        %v2586 = vpop.f32.mrf.mxu0
        %v2587 = vadd.f32 %v2498, %v2586
        %2588 = vmatmul.bf16.gmra.mxu0 %v2066
        %v2589 = vpop.f32.mrf.mxu0
        %v2590 = vadd.f32 %v2501, %v2589
        %v2591 = vpop.f32.mrf.mxu0
        %v2592 = vadd.f32 %v2503, %v2591
        %2593 = vmatmul.bf16.gmra.mxu0 %v2068
        %v2594 = vpop.f32.mrf.mxu0
        %v2595 = vadd.f32 %v2506, %v2594
        %v2596 = vpop.f32.mrf.mxu0
        %v2597 = vadd.f32 %v2508, %v2596
        %2598 = vmatmul.bf16.gmra.mxu0 %v2070
        %v2599 = vpop.f32.mrf.mxu0
        %v2600 = vadd.f32 %v2511, %v2599
        %v2601 = vpop.f32.mrf.mxu0
        %v2602 = vadd.f32 %v2513, %v2601
        %2603 = vmatmul.bf16.gmra.mxu0 %v2072
        %v2604 = vpop.f32.mrf.mxu0
        %v2605 = vadd.f32 %v2516, %v2604
        %v2606 = vpop.f32.mrf.mxu0
        %v2607 = vadd.f32 %v2518, %v2606
        %2608 = vmatmul.bf16.gmra.mxu0 %v2074
        %v2609 = vpop.f32.mrf.mxu0
        %v2610 = vadd.f32 %v2521, %v2609
        %v2611 = vpop.f32.mrf.mxu0
        %v2612 = vadd.f32 %v2523, %v2611
        %2613 = vmatmul.bf16.gmra.mxu0 %v2076
        %v2614 = vpop.f32.mrf.mxu0
        %v2615 = vadd.f32 %v2526, %v2614
        %v2616 = vpop.f32.mrf.mxu0
        %v2617 = vadd.f32 %v2528, %v2616
        %2618 = vmatmul.bf16.gmra.mxu0 %v2078
        %v2619 = vpop.f32.mrf.mxu0
        %v2620 = vadd.f32 %v2531, %v2619
        %v2621 = vpop.f32.mrf.mxu0
        %v2622 = vadd.f32 %v2533, %v2621
        %2623 = vmatmul.bf16.gmra.mxu0 %v2080
        %v2624 = vpop.f32.mrf.mxu0
        %v2625 = vadd.f32 %v2536, %v2624
        %v2626 = vpop.f32.mrf.mxu0
        %v2627 = vadd.f32 %v2538, %v2626
        %2628 = vmatmul.bf16.gmra.mxu0 %v2082
        %v2629 = vpop.f32.mrf.mxu0
        %v2630 = vadd.f32 %v2541, %v2629
        %v2631 = vpop.f32.mrf.mxu0
        %v2632 = vadd.f32 %v2543, %v2631
        %2633 = vmatmul.bf16.gmra.mxu0 %v2084
        %v2634 = vpop.f32.mrf.mxu0
        %v2635 = vadd.f32 %v2546, %v2634
        %v2636 = vpop.f32.mrf.mxu0
        %v2637 = vadd.f32 %v2548, %v2636
        %2638 = vdwg.mxu0
        %2639 = vst [vmem:[%s324] sm:$0xff] %v2382
        %2640 = vst [vmem:[%s324 + $0x8] sm:$0xff] %v2560
        %2641 = vst [vmem:[%s324 + $0x10] sm:$0xff] %v2384
        %2642 = vst [vmem:[%s324 + $0x18] sm:$0xff] %v2562
        %2643 = vst [vmem:[%s324 + $0x20] sm:$0xff] %v2387
        %2644 = vst [vmem:[%s324 + $0x28] sm:$0xff] %v2565
        %2645 = vst [vmem:[%s324 + $0x30] sm:$0xff] %v2389
        %2646 = vst [vmem:[%s324 + $0x38] sm:$0xff] %v2567
        %2647 = vst [vmem:[%s324 + $0x40] sm:$0xff] %v2392
        %2648 = vst [vmem:[%s324 + $0x48] sm:$0xff] %v2570
        %2649 = vst [vmem:[%s324 + $0x50] sm:$0xff] %v2394
        %2650 = vst [vmem:[%s324 + $0x58] sm:$0xff] %v2572
        %2651 = vst [vmem:[%s324 + $0x60] sm:$0xff] %v2397
        %2652 = vst [vmem:[%s324 + $0x68] sm:$0xff] %v2575
        %2653 = vst [vmem:[%s324 + $0x70] sm:$0xff] %v2399
        %2654 = vst [vmem:[%s324 + $0x78] sm:$0xff] %v2577
        %2655 = vst [vmem:[%s324 + $0x80] sm:$0xff] %v2402
        %2656 = vst [vmem:[%s324 + $0x88] sm:$0xff] %v2580
        %2657 = vst [vmem:[%s324 + $0x90] sm:$0xff] %v2404
        %2658 = vst [vmem:[%s324 + $0x98] sm:$0xff] %v2582
        %2659 = vst [vmem:[%s324 + $0xa0] sm:$0xff] %v2407
        %2660 = vst [vmem:[%s324 + $0xa8] sm:$0xff] %v2585
        %2661 = vst [vmem:[%s324 + $0xb0] sm:$0xff] %v2409
        %2662 = vst [vmem:[%s324 + $0xb8] sm:$0xff] %v2587
        %2663 = vst [vmem:[%s324 + $0xc0] sm:$0xff] %v2412
        %2664 = vst [vmem:[%s324 + $0xc8] sm:$0xff] %v2590
        %2665 = vst [vmem:[%s324 + $0xd0] sm:$0xff] %v2414
        %2666 = vst [vmem:[%s324 + $0xd8] sm:$0xff] %v2592
        %2667 = vst [vmem:[%s324 + $0xe0] sm:$0xff] %v2417
        %2668 = vst [vmem:[%s324 + $0xe8] sm:$0xff] %v2595
        %2669 = vst [vmem:[%s324 + $0xf0] sm:$0xff] %v2419
        %2670 = vst [vmem:[%s324 + $0xf8] sm:$0xff] %v2597
        %2671 = vst [vmem:[%s324 + $0x100] sm:$0xff] %v2422
        %2672 = vst [vmem:[%s324 + $0x108] sm:$0xff] %v2600
        %2673 = vst [vmem:[%s324 + $0x110] sm:$0xff] %v2424
        %2674 = vst [vmem:[%s324 + $0x118] sm:$0xff] %v2602
        %2675 = vst [vmem:[%s324 + $0x120] sm:$0xff] %v2427
        %2676 = vst [vmem:[%s324 + $0x128] sm:$0xff] %v2605
        %2677 = vst [vmem:[%s324 + $0x130] sm:$0xff] %v2429
        %2678 = vst [vmem:[%s324 + $0x138] sm:$0xff] %v2607
        %2679 = vst [vmem:[%s324 + $0x140] sm:$0xff] %v2432
        %2680 = vst [vmem:[%s324 + $0x148] sm:$0xff] %v2610
        %2681 = vst [vmem:[%s324 + $0x150] sm:$0xff] %v2434
        %2682 = vst [vmem:[%s324 + $0x158] sm:$0xff] %v2612
        %2683 = vst [vmem:[%s324 + $0x160] sm:$0xff] %v2437
        %2684 = vst [vmem:[%s324 + $0x168] sm:$0xff] %v2615
        %2685 = vst [vmem:[%s324 + $0x170] sm:$0xff] %v2439
        %2686 = vst [vmem:[%s324 + $0x178] sm:$0xff] %v2617
        %2687 = vst [vmem:[%s324 + $0x180] sm:$0xff] %v2442
        %2688 = vst [vmem:[%s324 + $0x188] sm:$0xff] %v2620
        %2689 = vst [vmem:[%s324 + $0x190] sm:$0xff] %v2444
        %2690 = vst [vmem:[%s324 + $0x198] sm:$0xff] %v2622
        %2691 = vst [vmem:[%s324 + $0x1a0] sm:$0xff] %v2447
        %2692 = vst [vmem:[%s324 + $0x1a8] sm:$0xff] %v2625
        %2693 = vst [vmem:[%s324 + $0x1b0] sm:$0xff] %v2449
        %2694 = vst [vmem:[%s324 + $0x1b8] sm:$0xff] %v2627
        %2695 = vst [vmem:[%s324 + $0x1c0] sm:$0xff] %v2452
        %2696 = vst [vmem:[%s324 + $0x1c8] sm:$0xff] %v2630
        %2697 = vst [vmem:[%s324 + $0x1d0] sm:$0xff] %v2454
        %2698 = vst [vmem:[%s324 + $0x1d8] sm:$0xff] %v2632
        %2699 = vst [vmem:[%s324 + $0x1e0] sm:$0xff] %v2457
        %2700 = vst [vmem:[%s324 + $0x1e8] sm:$0xff] %v2635
        %2701 = vst [vmem:[%s324 + $0x1f0] sm:$0xff] %v2459
        %2702 = vst [vmem:[%s324 + $0x1f8] sm:$0xff] %v2637
        %s2703 = sand.u32 %s153, 1
        %s2704 = scalar_lea.sflag [#allocation8], %s2703
        %s2705 = sand.u32 %s153, 1
        %s2706 = smul.addr %s2705, 512
        %s2707 = scalar_lea.vmem [#allocation12], %s2706
        // Predicated region
        $region53: #{tpu_custom_call.1} parent=35 // pred_check
          %p2708 = pneg %p163
        $region54: #{tpu_custom_call.1} parent=35 // pred_check_branch
          %2710 = sbr.rel (%p2708) target = $region56
        $region55: #{tpu_custom_call.1} parent=35 // pred_region
          %s2711 = smul.u32 32, %s32
          %s2712 = smul.u32 2, %s31
          %s2713 = ssub.s32 3, %s2712
          %p2714 = scmp.lt.s32.totalorder %s2713, 2
          %s2715 = scalar_select %p2714, %s2713, 2
          %s2716 = smul.u32 256, %s2715
          %s2717 = ssub.s32 512, %s2716
          %s2718 = sshll.u32 %s2717, 4
          %2719 = vsyncadd %s2704, %s2718
          %p2720 = scmp.ne.s32.totalorder 0, %s2716
          %s2721 = smul.addr %s2711, 3
          %s2722 = sadd.s32 %s2712, %s2721
          %s2723 = smul.addr %s2722, 8
          %s2724 = scalar_lea.hbm %s7, %s2723
          %s2725 = smul.u32 %s2715, 8
          %s2726 = smul.u32 %s2725, 32
          %s2727 = sshll.u32 %s2707, 4
          %s2728 = int_to_ptr.vmem [resolvable:$true] %s2727
          %s2729 = sshll.u32 %s2724, 4
          %s2730 = int_to_ptr.hbm [resolvable:$true] %s2729
          %s2731 = sshll.u32 %s2726, 4
          %2735 = dma.vmem_to_hbm [thread:$0]  (%p2720), %s2728, %s2731, %s2730, %s2704, 256, 384, %s2725
        $region56: #{tpu_custom_call.1} parent=35 // pred_fallthru
          _
      $region36: #{tpu_custom_call.1} parent=5 // pred_fallthru
        _
      %p2736 = scmp.le.s32.totalorder 2, %s22
      // Predicated region
      $region57: #{tpu_custom_call.1} parent=5 // pred_check
        %p2737 = pneg %p2736
      $region58: #{tpu_custom_call.1} parent=5 // pred_check_branch
        %2739 = sbr.rel (%p2737) target = $region60
      $region59: #{tpu_custom_call.1} parent=5 // pred_region
        %s2740 = ssub.s32 %s22, 2
        // Predicated region
        $region61: #{tpu_custom_call.1} parent=59 // pred_check
          %p2741 = pneg %p169
        $region62: #{tpu_custom_call.1} parent=59 // pred_check_branch
          %2743 = sbr.rel (%p2741) target = $region64
        $region63: #{tpu_custom_call.1} parent=59 // pred_region
          %s2744 = sand.u32 %s154, 1
          %s2745 = scalar_lea.sflag [#allocation8], %s2744
          %s2746 = sand.u32 %s154, 1
          %s2747 = smul.addr %s2746, 512
          %s2748 = scalar_lea.vmem [#allocation12], %s2747
          %2750 = dma.done %s2745, 8192
        $region64: #{tpu_custom_call.1} parent=59 // pred_fallthru
          _
      $region60: #{tpu_custom_call.1} parent=5 // pred_fallthru
        _
    $region6: #{tpu_custom_call.1} parent=1 // loop_footer
      %s26 = sadd.s32 1, %s22
    $region7: #{tpu_custom_call.1} parent=1 // loop_footer_branch
      %21 = sbr.rel target = $region3
    $region8: #{tpu_custom_call.1} parent=1 // loop_exit
      _
    %2751 = vsyncpa [#allocation7], 1
    %s2752 = scalar_lea.sflag [#allocation7], 1
    %2753 = vsyncpa %s2752, 1
    %2754 = vsyncpa [#allocation10], 1
    %s2755 = scalar_lea.sflag [#allocation10], 1
    %2756 = vsyncpa %s2755, 1
    %2757 = vsyncpa [#allocation8], 1
    %s2758 = scalar_lea.sflag [#allocation8], 1
    %2759 = vsyncpa %s2758, 1
  %2760 = vsyncmov [#allocation5]
  %s2761 = vpop.sfrf %2760
  %p2762 = scmp.eq.s32.totalorder %s2761, 0
  %p2763 = pneg %p2762
  %2765 = shalt.err (%p2763)
  %s2766 = scalar_lea.sflag [#allocation5], 1
  %2767 = vsyncmov %s2766
  %s2768 = vpop.sfrf %2767
  %p2769 = scmp.eq.s32.totalorder %s2768, 0
  %p2770 = pneg %p2769
  %2772 = shalt.err (%p2770)
  %s2773 = scalar_lea.sflag [#allocation5], 2
  %2774 = vsyncmov %s2773
  %s2775 = vpop.sfrf %2774
  %p2776 = scmp.eq.s32.totalorder %s2775, 0
  %p2777 = pneg %p2776
  %2779 = shalt.err (%p2777)

</llo_original>
